<compile_context>
chip_gen: v6e
topology: v6e:2x2x1
jax: 0.10.0
libtpu: 0.0.40
codegen_flags: <defaults>
</compile_context>

<pallas_src>
import jax
import jax.numpy as jnp
from jax.experimental import pallas as pl
from jax.experimental.pallas import tpu as pltpu

EPS = 1e-5  # torch.nn.BatchNorm2d default


def _round_up(v, m):
    return ((v + m - 1) // m) * m


def _chan_sum(a):
    """Sum a (N, tc, L) block over axes (0, 2) -> (1, tc, 1)."""
    s = jnp.sum(a, axis=2, keepdims=True)   # lane reduction (XLU)
    s = jnp.sum(s, axis=0, keepdims=True)   # batch (trivial for N=1)
    return s


def bn_tanh_bn_tanh_kernel(x_ref, p_ref, o_ref):
    # x_ref: (N, tc, L) f32 block holding the full per-channel reduction extent.
    # p_ref: (4, tc, 1) f32 packed params: [gamma1, beta1, gamma2, beta2].
    x = x_ref[...].astype(jnp.float32)
    n = x.shape[0]
    l = x.shape[2]
    inv_cnt = 1.0 / float(n * l)

    p = p_ref[...]
    g1 = p[0:1]   # (1, tc, 1) -- broadcasts along lanes against (N, tc, L)
    b1 = p[1:2]
    g2 = p[2:3]
    b2 = p[3:4]

    # --- bn1 (training-mode batch stats, biased variance) + tanh ---
    mean1 = _chan_sum(x) * inv_cnt
    d1 = x - mean1                          # consumed only by the variance pass
    var1 = _chan_sum(d1 * d1) * inv_cnt
    scale1 = g1 * jax.lax.rsqrt(var1 + EPS)
    shift1 = b1 - mean1 * scale1            # fold mean into bias: normalize pass
    v2 = jnp.tanh(x * scale1 + shift1)      # re-reads x, no centered slab kept live

    # --- bn2 + tanh (two-pass variance kept for strict f32 parity) ---
    mean2 = _chan_sum(v2) * inv_cnt
    d2 = v2 - mean2
    var2 = _chan_sum(d2 * d2) * inv_cnt
    scale2 = g2 * jax.lax.rsqrt(var2 + EPS)
    shift2 = b2 - mean2 * scale2
    o_ref[...] = jnp.tanh(v2 * scale2 + shift2).astype(o_ref.dtype)


def _vmem_budget_bytes():
    """Per-TensorCore VMEM budget: 75% of min(physical, 64 MiB) (v7x-safe)."""
    try:
        phys = int(pltpu.get_tpu_info().vmem_capacity_bytes)
    except Exception:
        phys = 64 * 1024 * 1024
    per_core = min(phys, 64 * 1024 * 1024)
    return (per_core * 3) // 4


def _pick_channel_tile(c_padded, elems_per_channel, vmem_budget, target_steps=4):
    """Largest multiple-of-8 divisor of c_padded whose block footprint
    (2 input bufs + 2 output bufs + ~3 live f32 slabs ~= 7 copies) fits the
    budget, preferring >= target_steps grid steps (megacore balance on v7x,
    DMA/compute overlap on v5e)."""
    per_chan_bytes = elems_per_channel * 4
    live_copies = 7
    cap = max(8, (vmem_budget // (per_chan_bytes * live_copies)) // 8 * 8)
    cands = [d for d in range(8, c_padded + 1, 8)
             if c_padded % d == 0 and d <= cap]
    if not cands:
        return 8
    good = [d for d in cands if c_padded // d >= target_steps]
    return max(good) if good else min(cands)


def model_tanh_forward(x_nchw, g1, b1, g2, b2):
    """x_nchw: (N, C, H, W) float32. Returns tanh(bn2(tanh(bn1(x)))) in NCHW."""
    N, C, H, W = x_nchw.shape
    L = H * W

    # Pad channels to a multiple of 32 so tc = Cp//4 is a multiple of 8 and the
    # grid has an even number of steps (>= 4).  Pad channels are zero-filled
    # (gamma=1, beta=0) and sliced off after the call.
    Cp = max(32, _round_up(C, 32))

    x3 = x_nchw.reshape(N, C, L)                       # free reshape (contiguous)
    if Cp != C:
        x3 = jnp.pad(x3, ((0, 0), (0, Cp - C), (0, 0)))

    def pad_param(p, fill):
        p = p.astype(jnp.float32)
        if Cp == C:
            return p
        return jnp.concatenate([p, jnp.full((Cp - C,), fill, jnp.float32)])

    params = jnp.stack([pad_param(g1, 1.0), pad_param(b1, 0.0),
                        pad_param(g2, 1.0), pad_param(b2, 0.0)]).reshape(4, Cp, 1)

    vmem_budget = _vmem_budget_bytes()
    tc = _pick_channel_tile(Cp, N * L, vmem_budget)

    block_bytes = N * tc * L * 4
    param_buf_bytes = 2 * 4 * tc * 128 * 4             # lane-padded, double-buffered
    need = block_bytes * 7 + param_buf_bytes
    vmem_limit = int(min(vmem_budget, max(32 * 1024 * 1024, need + (8 << 20))))

    cost = pl.CostEstimate(
        flops=12 * N * Cp * L,          # BN sum/var/normalize passes
        transcendentals=2 * N * Cp * L,  # two tanh per element
        bytes_accessed=2 * N * Cp * L * 4 + 4 * Cp * 4,
    )

    out3 = pl.pallas_call(
        bn_tanh_bn_tanh_kernel,
        out_shape=jax.ShapeDtypeStruct((N, Cp, L), x_nchw.dtype),
        grid_spec=pltpu.PrefetchScalarGridSpec(
            num_scalar_prefetch=0,
            grid=(Cp // tc,),
            in_specs=[
                pl.BlockSpec((N, tc, L), lambda i: (0, i, 0)),
                pl.BlockSpec((4, tc, 1), lambda i: (0, i, 0)),
            ],
            out_specs=pl.BlockSpec((N, tc, L), lambda i: (0, i, 0)),
        ),
        compiler_params=pltpu.CompilerParams(
            dimension_semantics=("parallel",),
            vmem_limit_bytes=vmem_limit,
        ),
        cost_estimate=cost,
    )(x3, params)

    return out3[:, :C, :].reshape(N, C, H, W)


def _reference(x, g1, b1, g2, b2):
    def bn(x, g, b):
        m = jnp.mean(x, axis=(0, 2, 3), keepdims=True)
        v = jnp.mean((x - m) ** 2, axis=(0, 2, 3), keepdims=True)
        return (x - m) * jax.lax.rsqrt(v + EPS) * g[None, :, None, None] \
            + b[None, :, None, None]
    return jnp.tanh(bn(jnp.tanh(bn(x, g1, b1)), g2, b2))


if __name__ == "__main__":
    # Shape from the PyTorch spec: x = torch.randn(1, 111, 128, 64),
    # BatchNorm2d(111) twice (~3.6 MB input -- small).
    N, C, H, W = 1, 111, 128, 64
    key = jax.random.PRNGKey(0)
    kx, kg1, kb1, kg2, kb2 = jax.random.split(key, 5)
    x = jax.random.normal(kx, (N, C, H, W), dtype=jnp.float32)

    # nn.BatchNorm2d defaults are gamma=1, beta=0; perturb deterministically so
    # the affine path is actually exercised.
    g1 = 1.0 + 0.1 * jax.random.normal(kg1, (C,), dtype=jnp.float32)
    b1 = 0.1 * jax.random.normal(kb1, (C,), dtype=jnp.float32)
    g2 = 1.0 + 0.1 * jax.random.normal(kg2, (C,), dtype=jnp.float32)
    b2 = 0.1 * jax.random.normal(kb2, (C,), dtype=jnp.float32)

    out = model_tanh_forward(x, g1, b1, g2, b2)
    out = jax.block_until_ready(out)

    ref = _reference(x, g1, b1, g2, b2)
    assert out.shape == (N, C, H, W)
    assert jnp.allclose(out, ref, atol=1e-5, rtol=1e-5), float(
        jnp.max(jnp.abs(out - ref)))
    print("KERNEL_OK")
</pallas_src>

<mosaic_0001>
module attributes {stable_mosaic.version = 11 : i64} {
  func.func @bn_tanh_bn_tanh_kernel(%arg0: i32, %arg1: memref<1x32x8192xf32, #tpu.memory_space<vmem>>, %arg2: memref<4x32x1xf32, #tpu.memory_space<vmem>>, %arg3: memref<1x32x8192xf32, #tpu.memory_space<vmem>>) attributes {dimension_semantics = [#tpu.dimension_semantics<parallel>], iteration_bounds = array<i64: 4>, scalar_prefetch = 0 : i64, scratch_operands = 0 : i64, tpu.core_type = #tpu.core_type<tc>, window_params = [{transform_indices = @transform_0, window_bounds = array<i64: 1, 32, 8192>}, {transform_indices = @transform_1, window_bounds = array<i64: 4, 32, 1>}, {transform_indices = @transform_2, window_bounds = array<i64: 1, 32, 8192>}]} {
    %c0 = arith.constant 0 : index
    %c0_0 = arith.constant 0 : index
    %c0_1 = arith.constant 0 : index
    %0 = vector.load %arg1[%c0, %c0_0, %c0_1] : memref<1x32x8192xf32, #tpu.memory_space<vmem>>, vector<1x32x8192xf32>
    %c0_2 = arith.constant 0 : index
    %c0_3 = arith.constant 0 : index
    %c0_4 = arith.constant 0 : index
    %1 = vector.load %arg2[%c0_2, %c0_3, %c0_4] : memref<4x32x1xf32, #tpu.memory_space<vmem>>, vector<4x32x1xf32>
    %2 = vector.extract_strided_slice %1 {offsets = [0, 0, 0], sizes = [1, 32, 1], strides = [1, 1, 1]} : vector<4x32x1xf32> to vector<1x32x1xf32>
    %3 = vector.extract_strided_slice %1 {offsets = [1, 0, 0], sizes = [1, 32, 1], strides = [1, 1, 1]} : vector<4x32x1xf32> to vector<1x32x1xf32>
    %4 = vector.extract_strided_slice %1 {offsets = [2, 0, 0], sizes = [1, 32, 1], strides = [1, 1, 1]} : vector<4x32x1xf32> to vector<1x32x1xf32>
    %5 = vector.extract_strided_slice %1 {offsets = [3, 0, 0], sizes = [1, 32, 1], strides = [1, 1, 1]} : vector<4x32x1xf32> to vector<1x32x1xf32>
    %cst = arith.constant dense<0.000000e+00> : vector<1x32xf32>
    %6 = vector.multi_reduction <add>, %0, %cst [2] : vector<1x32x8192xf32> to vector<1x32xf32>
    %7 = vector.shape_cast %6 : vector<1x32xf32> to vector<1x32x1xf32>
    %cst_5 = arith.constant dense<0.000000e+00> : vector<32x1xf32>
    %8 = vector.multi_reduction <add>, %7, %cst_5 [0] : vector<1x32x1xf32> to vector<32x1xf32>
    %9 = vector.shape_cast %8 : vector<32x1xf32> to vector<1x32x1xf32>
    %cst_6 = arith.constant 1.22070313E-4 : f32
    %10 = vector.broadcast %cst_6 : f32 to vector<1x32x1xf32>
    %11 = arith.mulf %9, %10 : vector<1x32x1xf32>
    %12 = vector.broadcast %11 : vector<1x32x1xf32> to vector<1x32x8192xf32>
    %13 = arith.subf %0, %12 : vector<1x32x8192xf32>
    %14 = arith.mulf %13, %13 : vector<1x32x8192xf32>
    %cst_7 = arith.constant dense<0.000000e+00> : vector<1x32xf32>
    %15 = vector.multi_reduction <add>, %14, %cst_7 [2] : vector<1x32x8192xf32> to vector<1x32xf32>
    %16 = vector.shape_cast %15 : vector<1x32xf32> to vector<1x32x1xf32>
    %cst_8 = arith.constant dense<0.000000e+00> : vector<32x1xf32>
    %17 = vector.multi_reduction <add>, %16, %cst_8 [0] : vector<1x32x1xf32> to vector<32x1xf32>
    %18 = vector.shape_cast %17 : vector<32x1xf32> to vector<1x32x1xf32>
    %cst_9 = arith.constant 1.22070313E-4 : f32
    %19 = vector.broadcast %cst_9 : f32 to vector<1x32x1xf32>
    %20 = arith.mulf %18, %19 : vector<1x32x1xf32>
    %cst_10 = arith.constant 9.99999974E-6 : f32
    %21 = vector.broadcast %cst_10 : f32 to vector<1x32x1xf32>
    %22 = arith.addf %20, %21 : vector<1x32x1xf32>
    %23 = math.rsqrt %22 : vector<1x32x1xf32>
    %24 = arith.mulf %2, %23 : vector<1x32x1xf32>
    %25 = arith.mulf %11, %24 : vector<1x32x1xf32>
    %26 = arith.subf %3, %25 : vector<1x32x1xf32>
    %27 = vector.broadcast %24 : vector<1x32x1xf32> to vector<1x32x8192xf32>
    %28 = arith.mulf %0, %27 : vector<1x32x8192xf32>
    %29 = vector.broadcast %26 : vector<1x32x1xf32> to vector<1x32x8192xf32>
    %30 = arith.addf %28, %29 : vector<1x32x8192xf32>
    %31 = math.tanh %30 : vector<1x32x8192xf32>
    %cst_11 = arith.constant dense<0.000000e+00> : vector<1x32xf32>
    %32 = vector.multi_reduction <add>, %31, %cst_11 [2] : vector<1x32x8192xf32> to vector<1x32xf32>
    %33 = vector.shape_cast %32 : vector<1x32xf32> to vector<1x32x1xf32>
    %cst_12 = arith.constant dense<0.000000e+00> : vector<32x1xf32>
    %34 = vector.multi_reduction <add>, %33, %cst_12 [0] : vector<1x32x1xf32> to vector<32x1xf32>
    %35 = vector.shape_cast %34 : vector<32x1xf32> to vector<1x32x1xf32>
    %cst_13 = arith.constant 1.22070313E-4 : f32
    %36 = vector.broadcast %cst_13 : f32 to vector<1x32x1xf32>
    %37 = arith.mulf %35, %36 : vector<1x32x1xf32>
    %38 = vector.broadcast %37 : vector<1x32x1xf32> to vector<1x32x8192xf32>
    %39 = arith.subf %31, %38 : vector<1x32x8192xf32>
    %40 = arith.mulf %39, %39 : vector<1x32x8192xf32>
    %cst_14 = arith.constant dense<0.000000e+00> : vector<1x32xf32>
    %41 = vector.multi_reduction <add>, %40, %cst_14 [2] : vector<1x32x8192xf32> to vector<1x32xf32>
    %42 = vector.shape_cast %41 : vector<1x32xf32> to vector<1x32x1xf32>
    %cst_15 = arith.constant dense<0.000000e+00> : vector<32x1xf32>
    %43 = vector.multi_reduction <add>, %42, %cst_15 [0] : vector<1x32x1xf32> to vector<32x1xf32>
    %44 = vector.shape_cast %43 : vector<32x1xf32> to vector<1x32x1xf32>
    %cst_16 = arith.constant 1.22070313E-4 : f32
    %45 = vector.broadcast %cst_16 : f32 to vector<1x32x1xf32>
    %46 = arith.mulf %44, %45 : vector<1x32x1xf32>
    %cst_17 = arith.constant 9.99999974E-6 : f32
    %47 = vector.broadcast %cst_17 : f32 to vector<1x32x1xf32>
    %48 = arith.addf %46, %47 : vector<1x32x1xf32>
    %49 = math.rsqrt %48 : vector<1x32x1xf32>
    %50 = arith.mulf %4, %49 : vector<1x32x1xf32>
    %51 = arith.mulf %37, %50 : vector<1x32x1xf32>
    %52 = arith.subf %5, %51 : vector<1x32x1xf32>
    %53 = vector.broadcast %50 : vector<1x32x1xf32> to vector<1x32x8192xf32>
    %54 = arith.mulf %31, %53 : vector<1x32x8192xf32>
    %55 = vector.broadcast %52 : vector<1x32x1xf32> to vector<1x32x8192xf32>
    %56 = arith.addf %54, %55 : vector<1x32x8192xf32>
    %57 = math.tanh %56 : vector<1x32x8192xf32>
    %c0_18 = arith.constant 0 : index
    %c0_19 = arith.constant 0 : index
    %c0_20 = arith.constant 0 : index
    %58 = vector.load %arg3[%c0_18, %c0_19, %c0_20] : memref<1x32x8192xf32, #tpu.memory_space<vmem>>, vector<1x32x8192xf32>
    tpu.vector_store %arg3[%c0_18, %c0_19, %c0_20], %57 {strides = array<i32>} : memref<1x32x8192xf32, #tpu.memory_space<vmem>>, vector<1x32x8192xf32>,
    return
  }
  func.func @transform_0(%arg0: i32) -> (i32, i32, i32) {
    %c0_i32 = arith.constant 0 : i32
    %c0_i32_0 = arith.constant 0 : i32
    %c0_i32_1 = arith.constant 0 : i32
    return %c0_i32, %arg0, %c0_i32_0 : i32, i32, i32
  }
  func.func @transform_1(%arg0: i32) -> (i32, i32, i32) {
    %c0_i32 = arith.constant 0 : i32
    %c0_i32_0 = arith.constant 0 : i32
    %c0_i32_1 = arith.constant 0 : i32
    return %c0_i32, %arg0, %c0_i32_0 : i32, i32, i32
  }
  func.func @transform_2(%arg0: i32) -> (i32, i32, i32) {
    %c0_i32 = arith.constant 0 : i32
    %c0_i32_0 = arith.constant 0 : i32
    %c0_i32_1 = arith.constant 0 : i32
    return %c0_i32, %arg0, %c0_i32_0 : i32, i32, i32
  }
}

</mosaic_0001>

<llo_original>
// kernel: tpu_custom_call.1
$region0: #{tpu_custom_call.1}
  #allocation0 [shape = 'u32[]', space=smem, size = 0x4, offset = 0x4, fixed_abs, tag = 'smem constant byte address 0x4 - core index']
  #allocation1 [shape = 'u32[144,128]{1,0:T(1,128)}', space=vmem, size = 0x12000, scoped, tag = 'internal scratch']
  %s0 = inlined_call_operand.hbm [shape: f32[1,128,8192], index: 0, kind: input, shape index: {}]
  %s1 = inlined_call_operand.vmem [shape: f32[4,128,1], index: 1, kind: input, shape index: {}]
  %s2 = inlined_call_operand.hbm [shape: f32[1,128,8192], index: 2, kind: output, shape index: {}]
  %s3 = sld [smem:[#allocation0]]
  $region83: #{tpu_custom_call.1} parent=0
    _
  %s5 = ssub.s32 1, %s3
  %s6 = scalar_select 0, %s5, %s3
  $region1: #{tpu_custom_call.1} parent=0
    #allocation2 [shape = 'u8[2097152]{0}', space=vmem, size = 0x200000, scoped, tag = 'input window, operand 0']
    #allocation3 [shape = 's32[2]{0}', space=sflag, size = 0x8, scoped, tag = 'scoped memory for tpu_custom_call.1']
    #allocation4 [shape = 's32[2]{0}', space=sflag, size = 0x8, scoped, tag = 'scoped memory for tpu_custom_call.1']
    #allocation5 [shape = 'u8[131072]{0}', space=vmem, size = 0x20000, scoped, tag = 'input window, operand 1']
    #allocation6 [shape = 'u8[2097152]{0}', space=vmem, size = 0x200000, scoped, tag = 'output window, operand 0']
    %7 = vsyncpa [#allocation3], 0
    %s8 = scalar_lea.sflag [#allocation3], 1
    %9 = vsyncpa %s8, 0
    %10 = vsyncpa [#allocation4], 0
    %s11 = scalar_lea.sflag [#allocation4], 1
    %12 = vsyncpa %s11, 0
    loop: start=0, step=1, limit=6
    $region2: #{tpu_custom_call.1} parent=1 // loop_pre_header
      _
    $region3: #{tpu_custom_call.1} parent=1 // loop_header
      %s14 = sphi 0, %s18
      %p15 = scmp.ge.s32.totalorder %s14, 6
      %s24 = sphi 0, %s26
      %s27 = sphi 0, %s24
      %s28 = sphi 0, %s27
      %s44 = sphi 0, %s28
      %s50 = sphi 0, %s52
      %s53 = sphi 0, %s50
      %s54 = sphi 0, %s53
      %s70 = sphi 0, %s54
      %s76 = sphi 0, %s78
      %s79 = sphi 0, %s76
      %s80 = sphi 0, %s79
      %s96 = sphi 0, %s80
    $region4: #{tpu_custom_call.1} parent=1 // loop_header_branch
      %17 = sbr.rel (%p15) target = $region8
    $region5: #{tpu_custom_call.1} parent=1 // loop_body
      %s19 = ssub.s32 %s14, 1
      %s20 = ssub.s32 %s14, 2
      %s21 = sadd.s32 %s14, 1
      %s22 = ssub.s32 %s14, %s21
      %p23 = scmp.eq.s32.totalorder %s22, 0
      %s25 = sadd.s32 %s24, 1
      %s26 = scalar_select %p23, %s24, %s25
      %p29 = pneg %p23
      %p30 = scmp.eq.s32.totalorder %s14, 3
      %p31 = por %p29, %p30
      %p32 = scmp.ne.s32.totalorder %s24, %s27
      %p33 = scmp.eq.s32.totalorder %s14, 0
      %p34 = por %p32, %p33
      %p35 = scmp.ne.s32.totalorder %s24, %s27
      %p36 = scmp.eq.s32.totalorder %s19, 3
      %p37 = por %p35, %p36
      %p38 = scmp.ne.s32.totalorder %s27, %s28
      %p39 = scmp.eq.s32.totalorder %s19, 0
      %p40 = por %p38, %p39
      %p41 = scmp.ne.s32.totalorder %s27, %s28
      %p42 = scmp.eq.s32.totalorder %s20, 3
      %p43 = por %p41, %p42
      %p45 = scmp.ne.s32.totalorder %s28, %s44
      %p46 = scmp.eq.s32.totalorder %s20, 0
      %p47 = por %p45, %p46
      %s48 = ssub.s32 %s14, %s21
      %p49 = scmp.eq.s32.totalorder %s48, 0
      %s51 = sadd.s32 %s50, 1
      %s52 = scalar_select %p49, %s50, %s51
      %p55 = pneg %p49
      %p56 = scmp.eq.s32.totalorder %s14, 3
      %p57 = por %p55, %p56
      %p58 = scmp.ne.s32.totalorder %s50, %s53
      %p59 = scmp.eq.s32.totalorder %s14, 0
      %p60 = por %p58, %p59
      %p61 = scmp.ne.s32.totalorder %s50, %s53
      %p62 = scmp.eq.s32.totalorder %s19, 3
      %p63 = por %p61, %p62
      %p64 = scmp.ne.s32.totalorder %s53, %s54
      %p65 = scmp.eq.s32.totalorder %s19, 0
      %p66 = por %p64, %p65
      %p67 = scmp.ne.s32.totalorder %s53, %s54
      %p68 = scmp.eq.s32.totalorder %s20, 3
      %p69 = por %p67, %p68
      %p71 = scmp.ne.s32.totalorder %s54, %s70
      %p72 = scmp.eq.s32.totalorder %s20, 0
      %p73 = por %p71, %p72
      %s74 = ssub.s32 %s14, %s21
      %p75 = scmp.eq.s32.totalorder %s74, 0
      %s77 = sadd.s32 %s76, 1
      %s78 = scalar_select %p75, %s76, %s77
      %p81 = pneg %p75
      %p82 = scmp.eq.s32.totalorder %s14, 3
      %p83 = por %p81, %p82
      %p84 = scmp.ne.s32.totalorder %s76, %s79
      %p85 = scmp.eq.s32.totalorder %s14, 0
      %p86 = por %p84, %p85
      %p87 = scmp.ne.s32.totalorder %s76, %s79
      %p88 = scmp.eq.s32.totalorder %s19, 3
      %p89 = por %p87, %p88
      %p90 = scmp.ne.s32.totalorder %s79, %s80
      %p91 = scmp.eq.s32.totalorder %s19, 0
      %p92 = por %p90, %p91
      %p93 = scmp.ne.s32.totalorder %s79, %s80
      %p94 = scmp.eq.s32.totalorder %s20, 3
      %p95 = por %p93, %p94
      %p97 = scmp.ne.s32.totalorder %s80, %s96
      %p98 = scmp.eq.s32.totalorder %s20, 0
      %p99 = por %p97, %p98
      %p100 = scmp.le.s32.totalorder 1, %s14
      %p101 = scmp.lt.s32.totalorder %s14, 5
      %p102 = pnand %p100, %p101
      %p103 = pneg %p102
      // Predicated region
      $region9: #{tpu_custom_call.1} parent=5 // pred_check
        _
      $region10: #{tpu_custom_call.1} parent=5 // pred_check_branch
        %105 = sbr.rel (%p102) target = $region12
      $region11: #{tpu_custom_call.1} parent=5 // pred_region
        %s106 = ssub.s32 %s14, 1
      $region12: #{tpu_custom_call.1} parent=5 // pred_fallthru
        _
      %p107 = scmp.lt.s32.totalorder %s14, 4
      // Predicated region
      $region13: #{tpu_custom_call.1} parent=5 // pred_check
        %p108 = pneg %p107
      $region14: #{tpu_custom_call.1} parent=5 // pred_check_branch
        %110 = sbr.rel (%p108) target = $region16
      $region15: #{tpu_custom_call.1} parent=5 // pred_region
        // Predicated region
        $region17: #{tpu_custom_call.1} parent=15 // pred_check
          %p111 = pneg %p34
        $region18: #{tpu_custom_call.1} parent=15 // pred_check_branch
          %113 = sbr.rel (%p111) target = $region20
        $region19: #{tpu_custom_call.1} parent=15 // pred_region
          %s114 = sand.u32 %s24, 1
          %s115 = scalar_lea.sflag [#allocation3], %s114
          %s116 = sand.u32 %s24, 1
          %s117 = smul.addr %s116, 2048
          %s118 = scalar_lea.vmem [#allocation2], %s117
          %s119 = smul.u32 4, %s14
          %s121 = ssub.s32 32768, 32768
          %122 = vsyncadd %s115, %s121
          %s123 = smul.addr %s119, 64
          %s124 = smul.addr %s123, 128
          %s125 = scalar_lea.hbm %s0, %s124
          %s126 = sshll.u32 %s118, 4
          %s127 = int_to_ptr.vmem [resolvable:$true] %s126
          %132 = dma.hbm_to_vmem [thread:$0]  %s125, 32768, %s127, %s115, 8192, 8192, 512
        $region20: #{tpu_custom_call.1} parent=15 // pred_fallthru
          _
        // Predicated region
        $region21: #{tpu_custom_call.1} parent=15 // pred_check
          %p133 = pneg %p60
        $region22: #{tpu_custom_call.1} parent=15 // pred_check_branch
          %135 = sbr.rel (%p133) target = $region24
        $region23: #{tpu_custom_call.1} parent=15 // pred_region
          %s136 = sand.u32 %s50, 1
          %s137 = sand.u32 %s50, 1
          %s138 = smul.addr %s137, 128
          %s139 = scalar_lea.vmem [#allocation5], %s138
          %s140 = smul.u32 4, %s14
          %s141 = smul.addr %s140, 8
          %s142 = scalar_lea.vmem %s1, %s141
          // Predicated region
          $region25: #{tpu_custom_call.1} parent=23 // pred_check
            _
          $region26: #{tpu_custom_call.1} parent=23 // pred_check_branch
            %144 = sbr.rel (0) target = $region28
          $region27: #{tpu_custom_call.1} parent=23 // pred_region
            // Predicated region
            $region29: #{tpu_custom_call.1} parent=27 // pred_check
              _
            $region30: #{tpu_custom_call.1} parent=27 // pred_check_branch
              %146 = sbr.rel (0) target = $region32
            $region31: #{tpu_custom_call.1} parent=27 // pred_region
              // Predicated region
              $region44: #{tpu_custom_call.1} parent=31 // pred_check
                _
              $region45: #{tpu_custom_call.1} parent=31 // pred_check_branch
                %192 = sbr.rel (0) target = $region47
              $region46: #{tpu_custom_call.1} parent=31 // pred_region
                loop: start=0, step=1, limit=1
                $region48: #{tpu_custom_call.1} parent=46 // loop_pre_header
                  _
                $region49: #{tpu_custom_call.1} parent=46 // loop_header
                  %s194 = sphi 0, %s198
                  %p195 = scmp.ge.s32.totalorder %s194, 1
                  %s199 = sphi %s142, %s142
                  %s200 = sphi %s139, %s139
                $region50: #{tpu_custom_call.1} parent=46 // loop_header_branch
                  %197 = sbr.rel (%p195) target = $region54
                $region51: #{tpu_custom_call.1} parent=46 // loop_body
                  %v201 = vld [vmem:[%s199] sm:$0xff]
                  %202 = vst [vmem:[%s200] sm:$0xff] %v201
                  %v203 = vld [vmem:[%s199 + $0x8] sm:$0xff]
                  %204 = vst [vmem:[%s200 + $0x8] sm:$0xff] %v203
                  %v205 = vld [vmem:[%s199 + $0x10] sm:$0xff]
                  %206 = vst [vmem:[%s200 + $0x10] sm:$0xff] %v205
                  %v207 = vld [vmem:[%s199 + $0x18] sm:$0xff]
                  %208 = vst [vmem:[%s200 + $0x18] sm:$0xff] %v207
                  %v209 = vld [vmem:[%s199 + $0x80] sm:$0xff]
                  %210 = vst [vmem:[%s200 + $0x20] sm:$0xff] %v209
                  %v211 = vld [vmem:[%s199 + $0x88] sm:$0xff]
                  %212 = vst [vmem:[%s200 + $0x28] sm:$0xff] %v211
                  %v213 = vld [vmem:[%s199 + $0x90] sm:$0xff]
                  %214 = vst [vmem:[%s200 + $0x30] sm:$0xff] %v213
                  %v215 = vld [vmem:[%s199 + $0x98] sm:$0xff]
                  %216 = vst [vmem:[%s200 + $0x38] sm:$0xff] %v215
                  %v217 = vld [vmem:[%s199 + $0x100] sm:$0xff]
                  %218 = vst [vmem:[%s200 + $0x40] sm:$0xff] %v217
                  %v219 = vld [vmem:[%s199 + $0x108] sm:$0xff]
                  %220 = vst [vmem:[%s200 + $0x48] sm:$0xff] %v219
                  %v221 = vld [vmem:[%s199 + $0x110] sm:$0xff]
                  %222 = vst [vmem:[%s200 + $0x50] sm:$0xff] %v221
                  %v223 = vld [vmem:[%s199 + $0x118] sm:$0xff]
                  %224 = vst [vmem:[%s200 + $0x58] sm:$0xff] %v223
                  %v225 = vld [vmem:[%s199 + $0x180] sm:$0xff]
                  %226 = vst [vmem:[%s200 + $0x60] sm:$0xff] %v225
                  %v227 = vld [vmem:[%s199 + $0x188] sm:$0xff]
                  %228 = vst [vmem:[%s200 + $0x68] sm:$0xff] %v227
                  %v229 = vld [vmem:[%s199 + $0x190] sm:$0xff]
                  %230 = vst [vmem:[%s200 + $0x70] sm:$0xff] %v229
                  %v231 = vld [vmem:[%s199 + $0x198] sm:$0xff]
                  %232 = vst [vmem:[%s200 + $0x78] sm:$0xff] %v231
                $region52: #{tpu_custom_call.1} parent=46 // loop_footer
                  %s198 = sadd.s32 1, %s194
                $region53: #{tpu_custom_call.1} parent=46 // loop_footer_branch
                  %193 = sbr.rel target = $region49
                $region54: #{tpu_custom_call.1} parent=46 // loop_exit
                  _
              $region47: #{tpu_custom_call.1} parent=31 // pred_fallthru
                _
              // Predicated region
              $region55: #{tpu_custom_call.1} parent=31 // pred_check
                _
              $region56: #{tpu_custom_call.1} parent=31 // pred_check_branch
                %234 = sbr.rel target = $region58
              $region57: #{tpu_custom_call.1} parent=31 // pred_region
                _
              $region58: #{tpu_custom_call.1} parent=31 // pred_fallthru
                _
            $region32: #{tpu_custom_call.1} parent=27 // pred_fallthru
              _
            // Predicated region
            $region33: #{tpu_custom_call.1} parent=27 // pred_check
              _
            $region34: #{tpu_custom_call.1} parent=27 // pred_check_branch
              %148 = sbr.rel target = $region36
            $region35: #{tpu_custom_call.1} parent=27 // pred_region
              %s150 = ssub.s32 256, 1
              loop: start=0, step=1, limit=1
              $region37: #{tpu_custom_call.1} parent=35 // loop_pre_header
                _
              $region38: #{tpu_custom_call.1} parent=35 // loop_header
                %s152 = sphi 0, %s156
                %p153 = scmp.ge.s32.totalorder %s152, 1
                %s157 = sphi %s142, %s142
                %s158 = sphi %s139, %s139
              $region39: #{tpu_custom_call.1} parent=35 // loop_header_branch
                %155 = sbr.rel (%p153) target = $region43
              $region40: #{tpu_custom_call.1} parent=35 // loop_body
                %v159 = vld [vmem:[%s157] sm:%s150]
                %160 = vst [vmem:[%s158] sm:%s150] %v159
                %v161 = vld [vmem:[%s157 + $0x8] sm:%s150]
                %162 = vst [vmem:[%s158 + $0x8] sm:%s150] %v161
                %v163 = vld [vmem:[%s157 + $0x10] sm:%s150]
                %164 = vst [vmem:[%s158 + $0x10] sm:%s150] %v163
                %v165 = vld [vmem:[%s157 + $0x18] sm:%s150]
                %166 = vst [vmem:[%s158 + $0x18] sm:%s150] %v165
                %v167 = vld [vmem:[%s157 + $0x80] sm:%s150]
                %168 = vst [vmem:[%s158 + $0x20] sm:%s150] %v167
                %v169 = vld [vmem:[%s157 + $0x88] sm:%s150]
                %170 = vst [vmem:[%s158 + $0x28] sm:%s150] %v169
                %v171 = vld [vmem:[%s157 + $0x90] sm:%s150]
                %172 = vst [vmem:[%s158 + $0x30] sm:%s150] %v171
                %v173 = vld [vmem:[%s157 + $0x98] sm:%s150]
                %174 = vst [vmem:[%s158 + $0x38] sm:%s150] %v173
                %v175 = vld [vmem:[%s157 + $0x100] sm:%s150]
                %176 = vst [vmem:[%s158 + $0x40] sm:%s150] %v175
                %v177 = vld [vmem:[%s157 + $0x108] sm:%s150]
                %178 = vst [vmem:[%s158 + $0x48] sm:%s150] %v177
                %v179 = vld [vmem:[%s157 + $0x110] sm:%s150]
                %180 = vst [vmem:[%s158 + $0x50] sm:%s150] %v179
                %v181 = vld [vmem:[%s157 + $0x118] sm:%s150]
                %182 = vst [vmem:[%s158 + $0x58] sm:%s150] %v181
                %v183 = vld [vmem:[%s157 + $0x180] sm:%s150]
                %184 = vst [vmem:[%s158 + $0x60] sm:%s150] %v183
                %v185 = vld [vmem:[%s157 + $0x188] sm:%s150]
                %186 = vst [vmem:[%s158 + $0x68] sm:%s150] %v185
                %v187 = vld [vmem:[%s157 + $0x190] sm:%s150]
                %188 = vst [vmem:[%s158 + $0x70] sm:%s150] %v187
                %v189 = vld [vmem:[%s157 + $0x198] sm:%s150]
                %190 = vst [vmem:[%s158 + $0x78] sm:%s150] %v189
              $region41: #{tpu_custom_call.1} parent=35 // loop_footer
                %s156 = sadd.s32 1, %s152
              $region42: #{tpu_custom_call.1} parent=35 // loop_footer_branch
                %151 = sbr.rel target = $region38
              $region43: #{tpu_custom_call.1} parent=35 // loop_exit
                _
            $region36: #{tpu_custom_call.1} parent=27 // pred_fallthru
              _
          $region28: #{tpu_custom_call.1} parent=23 // pred_fallthru
            _
          %235 = vnop
        $region24: #{tpu_custom_call.1} parent=15 // pred_fallthru
          _
      $region16: #{tpu_custom_call.1} parent=5 // pred_fallthru
        _
      %p236 = scmp.le.s32.totalorder 1, %s14
      %p237 = scmp.lt.s32.totalorder %s14, 5
      %p238 = pnand %p236, %p237
      %p239 = pneg %p238
      // Predicated region
      $region59: #{tpu_custom_call.1} parent=5 // pred_check
        _
      $region60: #{tpu_custom_call.1} parent=5 // pred_check_branch
        %241 = sbr.rel (%p238) target = $region62
      $region61: #{tpu_custom_call.1} parent=5 // pred_region
        %s242 = ssub.s32 %s14, 1
        %s243 = sand.u32 %s27, 1
        %s244 = scalar_lea.sflag [#allocation3], %s243
        %s245 = sand.u32 %s27, 1
        %s246 = smul.addr %s245, 2048
        %s247 = scalar_lea.vmem [#allocation2], %s246
        // Predicated region
        $region63: #{tpu_custom_call.1} parent=61 // pred_check
          %p248 = pneg %p40
        $region64: #{tpu_custom_call.1} parent=61 // pred_check_branch
          %250 = sbr.rel (%p248) target = $region66
        $region65: #{tpu_custom_call.1} parent=61 // pred_region
          %251 = dma.done %s244, 32768
        $region66: #{tpu_custom_call.1} parent=61 // pred_fallthru
          _
        %s252 = sand.u32 %s53, 1
        %s253 = sand.u32 %s53, 1
        %s254 = smul.addr %s253, 128
        %s255 = scalar_lea.vmem [#allocation5], %s254
        // Predicated region
        $region67: #{tpu_custom_call.1} parent=61 // pred_check
          %p256 = pneg %p66
        $region68: #{tpu_custom_call.1} parent=61 // pred_check_branch
          %258 = sbr.rel (%p256) target = $region70
        $region69: #{tpu_custom_call.1} parent=61 // pred_region
          _
        $region70: #{tpu_custom_call.1} parent=61 // pred_fallthru
          _
        %s259 = sand.u32 %s27, 1
        %s260 = scalar_lea.sflag [#allocation3], %s259
        %s261 = sand.u32 %s27, 1
        %s262 = smul.addr %s261, 2048
        %s263 = scalar_lea.vmem [#allocation2], %s262
        %p264 = pneg %p40
        %p265 = pneg %p37
        %s266 = sand.u32 %s53, 1
        %s267 = sand.u32 %s53, 1
        %s268 = smul.addr %s267, 128
        %s269 = scalar_lea.vmem [#allocation5], %s268
        %p270 = pneg %p66
        %p271 = pneg %p63
        %p272 = pneg %p92
        %p273 = pneg %p89
        %s274 = sand.u32 %s79, 1
        %s275 = scalar_lea.sflag [#allocation4], %s274
        %s276 = sand.u32 %s79, 1
        %s277 = smul.addr %s276, 2048
        %s278 = scalar_lea.vmem [#allocation6], %s277
        %s279 = smul.u32 4, %s19
        %s280 = smul.u32 4, %s19
        %s281 = smul.u32 4, %s19
        %v282 = vld [vmem:[%s247] sm:$0xff]
        %v283 = vld [vmem:[%s247 + $0x8] sm:$0xff]
        %v284 = vld [vmem:[%s247 + $0x10] sm:$0xff]
        %v285 = vld [vmem:[%s247 + $0x18] sm:$0xff]
        %v286 = vld [vmem:[%s247 + $0x20] sm:$0xff]
        %v287 = vld [vmem:[%s247 + $0x28] sm:$0xff]
        %v288 = vld [vmem:[%s247 + $0x30] sm:$0xff]
        %v289 = vld [vmem:[%s247 + $0x38] sm:$0xff]
        %v290 = vld [vmem:[%s247 + $0x40] sm:$0xff]
        %v291 = vld [vmem:[%s247 + $0x48] sm:$0xff]
        %v292 = vld [vmem:[%s247 + $0x50] sm:$0xff]
        %v293 = vld [vmem:[%s247 + $0x58] sm:$0xff]
        %v294 = vld [vmem:[%s247 + $0x60] sm:$0xff]
        %v295 = vld [vmem:[%s247 + $0x68] sm:$0xff]
        %v296 = vld [vmem:[%s247 + $0x70] sm:$0xff]
        %v297 = vld [vmem:[%s247 + $0x78] sm:$0xff]
        %v298 = vld [vmem:[%s247 + $0x80] sm:$0xff]
        %v299 = vld [vmem:[%s247 + $0x88] sm:$0xff]
        %v300 = vld [vmem:[%s247 + $0x90] sm:$0xff]
        %v301 = vld [vmem:[%s247 + $0x98] sm:$0xff]
        %v302 = vld [vmem:[%s247 + $0xa0] sm:$0xff]
        %v303 = vld [vmem:[%s247 + $0xa8] sm:$0xff]
        %v304 = vld [vmem:[%s247 + $0xb0] sm:$0xff]
        %v305 = vld [vmem:[%s247 + $0xb8] sm:$0xff]
        %v306 = vld [vmem:[%s247 + $0xc0] sm:$0xff]
        %v307 = vld [vmem:[%s247 + $0xc8] sm:$0xff]
        %v308 = vld [vmem:[%s247 + $0xd0] sm:$0xff]
        %v309 = vld [vmem:[%s247 + $0xd8] sm:$0xff]
        %v310 = vld [vmem:[%s247 + $0xe0] sm:$0xff]
        %v311 = vld [vmem:[%s247 + $0xe8] sm:$0xff]
        %v312 = vld [vmem:[%s247 + $0xf0] sm:$0xff]
        %v313 = vld [vmem:[%s247 + $0xf8] sm:$0xff]
        %v314 = vld [vmem:[%s247 + $0x100] sm:$0xff]
        %v315 = vld [vmem:[%s247 + $0x108] sm:$0xff]
        %v316 = vld [vmem:[%s247 + $0x110] sm:$0xff]
        %v317 = vld [vmem:[%s247 + $0x118] sm:$0xff]
        %v318 = vld [vmem:[%s247 + $0x120] sm:$0xff]
        %v319 = vld [vmem:[%s247 + $0x128] sm:$0xff]
        %v320 = vld [vmem:[%s247 + $0x130] sm:$0xff]
        %v321 = vld [vmem:[%s247 + $0x138] sm:$0xff]
        %v322 = vld [vmem:[%s247 + $0x140] sm:$0xff]
        %v323 = vld [vmem:[%s247 + $0x148] sm:$0xff]
        %v324 = vld [vmem:[%s247 + $0x150] sm:$0xff]
        %v325 = vld [vmem:[%s247 + $0x158] sm:$0xff]
        %v326 = vld [vmem:[%s247 + $0x160] sm:$0xff]
        %v327 = vld [vmem:[%s247 + $0x168] sm:$0xff]
        %v328 = vld [vmem:[%s247 + $0x170] sm:$0xff]
        %v329 = vld [vmem:[%s247 + $0x178] sm:$0xff]
        %v330 = vld [vmem:[%s247 + $0x180] sm:$0xff]
        %v331 = vld [vmem:[%s247 + $0x188] sm:$0xff]
        %v332 = vld [vmem:[%s247 + $0x190] sm:$0xff]
        %v333 = vld [vmem:[%s247 + $0x198] sm:$0xff]
        %v334 = vld [vmem:[%s247 + $0x1a0] sm:$0xff]
        %v335 = vld [vmem:[%s247 + $0x1a8] sm:$0xff]
        %v336 = vld [vmem:[%s247 + $0x1b0] sm:$0xff]
        %v337 = vld [vmem:[%s247 + $0x1b8] sm:$0xff]
        %v338 = vld [vmem:[%s247 + $0x1c0] sm:$0xff]
        %v339 = vld [vmem:[%s247 + $0x1c8] sm:$0xff]
        %v340 = vld [vmem:[%s247 + $0x1d0] sm:$0xff]
        %v341 = vld [vmem:[%s247 + $0x1d8] sm:$0xff]
        %v342 = vld [vmem:[%s247 + $0x1e0] sm:$0xff]
        %v343 = vld [vmem:[%s247 + $0x1e8] sm:$0xff]
        %v344 = vld [vmem:[%s247 + $0x1f0] sm:$0xff]
        %v345 = vld [vmem:[%s247 + $0x1f8] sm:$0xff]
        %v346 = vld [vmem:[%s247 + $0x200] sm:$0xff]
        %v347 = vld [vmem:[%s247 + $0x208] sm:$0xff]
        %v348 = vld [vmem:[%s247 + $0x210] sm:$0xff]
        %v349 = vld [vmem:[%s247 + $0x218] sm:$0xff]
        %v350 = vld [vmem:[%s247 + $0x220] sm:$0xff]
        %v351 = vld [vmem:[%s247 + $0x228] sm:$0xff]
        %v352 = vld [vmem:[%s247 + $0x230] sm:$0xff]
        %v353 = vld [vmem:[%s247 + $0x238] sm:$0xff]
        %v354 = vld [vmem:[%s247 + $0x240] sm:$0xff]
        %v355 = vld [vmem:[%s247 + $0x248] sm:$0xff]
        %v356 = vld [vmem:[%s247 + $0x250] sm:$0xff]
        %v357 = vld [vmem:[%s247 + $0x258] sm:$0xff]
        %v358 = vld [vmem:[%s247 + $0x260] sm:$0xff]
        %v359 = vld [vmem:[%s247 + $0x268] sm:$0xff]
        %v360 = vld [vmem:[%s247 + $0x270] sm:$0xff]
        %v361 = vld [vmem:[%s247 + $0x278] sm:$0xff]
        %v362 = vld [vmem:[%s247 + $0x280] sm:$0xff]
        %v363 = vld [vmem:[%s247 + $0x288] sm:$0xff]
        %v364 = vld [vmem:[%s247 + $0x290] sm:$0xff]
        %v365 = vld [vmem:[%s247 + $0x298] sm:$0xff]
        %v366 = vld [vmem:[%s247 + $0x2a0] sm:$0xff]
        %v367 = vld [vmem:[%s247 + $0x2a8] sm:$0xff]
        %v368 = vld [vmem:[%s247 + $0x2b0] sm:$0xff]
        %v369 = vld [vmem:[%s247 + $0x2b8] sm:$0xff]
        %v370 = vld [vmem:[%s247 + $0x2c0] sm:$0xff]
        %v371 = vld [vmem:[%s247 + $0x2c8] sm:$0xff]
        %v372 = vld [vmem:[%s247 + $0x2d0] sm:$0xff]
        %v373 = vld [vmem:[%s247 + $0x2d8] sm:$0xff]
        %v374 = vld [vmem:[%s247 + $0x2e0] sm:$0xff]
        %v375 = vld [vmem:[%s247 + $0x2e8] sm:$0xff]
        %v376 = vld [vmem:[%s247 + $0x2f0] sm:$0xff]
        %v377 = vld [vmem:[%s247 + $0x2f8] sm:$0xff]
        %v378 = vld [vmem:[%s247 + $0x300] sm:$0xff]
        %v379 = vld [vmem:[%s247 + $0x308] sm:$0xff]
        %v380 = vld [vmem:[%s247 + $0x310] sm:$0xff]
        %v381 = vld [vmem:[%s247 + $0x318] sm:$0xff]
        %v382 = vld [vmem:[%s247 + $0x320] sm:$0xff]
        %v383 = vld [vmem:[%s247 + $0x328] sm:$0xff]
        %v384 = vld [vmem:[%s247 + $0x330] sm:$0xff]
        %v385 = vld [vmem:[%s247 + $0x338] sm:$0xff]
        %v386 = vld [vmem:[%s247 + $0x340] sm:$0xff]
        %v387 = vld [vmem:[%s247 + $0x348] sm:$0xff]
        %v388 = vld [vmem:[%s247 + $0x350] sm:$0xff]
        %v389 = vld [vmem:[%s247 + $0x358] sm:$0xff]
        %v390 = vld [vmem:[%s247 + $0x360] sm:$0xff]
        %v391 = vld [vmem:[%s247 + $0x368] sm:$0xff]
        %v392 = vld [vmem:[%s247 + $0x370] sm:$0xff]
        %v393 = vld [vmem:[%s247 + $0x378] sm:$0xff]
        %v394 = vld [vmem:[%s247 + $0x380] sm:$0xff]
        %v395 = vld [vmem:[%s247 + $0x388] sm:$0xff]
        %v396 = vld [vmem:[%s247 + $0x390] sm:$0xff]
        %v397 = vld [vmem:[%s247 + $0x398] sm:$0xff]
        %v398 = vld [vmem:[%s247 + $0x3a0] sm:$0xff]
        %v399 = vld [vmem:[%s247 + $0x3a8] sm:$0xff]
        %v400 = vld [vmem:[%s247 + $0x3b0] sm:$0xff]
        %v401 = vld [vmem:[%s247 + $0x3b8] sm:$0xff]
        %v402 = vld [vmem:[%s247 + $0x3c0] sm:$0xff]
        %v403 = vld [vmem:[%s247 + $0x3c8] sm:$0xff]
        %v404 = vld [vmem:[%s247 + $0x3d0] sm:$0xff]
        %v405 = vld [vmem:[%s247 + $0x3d8] sm:$0xff]
        %v406 = vld [vmem:[%s247 + $0x3e0] sm:$0xff]
        %v407 = vld [vmem:[%s247 + $0x3e8] sm:$0xff]
        %v408 = vld [vmem:[%s247 + $0x3f0] sm:$0xff]
        %v409 = vld [vmem:[%s247 + $0x3f8] sm:$0xff]
        %v410 = vld [vmem:[%s247 + $0x400] sm:$0xff]
        %v411 = vld [vmem:[%s247 + $0x408] sm:$0xff]
        %v412 = vld [vmem:[%s247 + $0x410] sm:$0xff]
        %v413 = vld [vmem:[%s247 + $0x418] sm:$0xff]
        %v414 = vld [vmem:[%s247 + $0x420] sm:$0xff]
        %v415 = vld [vmem:[%s247 + $0x428] sm:$0xff]
        %v416 = vld [vmem:[%s247 + $0x430] sm:$0xff]
        %v417 = vld [vmem:[%s247 + $0x438] sm:$0xff]
        %v418 = vld [vmem:[%s247 + $0x440] sm:$0xff]
        %v419 = vld [vmem:[%s247 + $0x448] sm:$0xff]
        %v420 = vld [vmem:[%s247 + $0x450] sm:$0xff]
        %v421 = vld [vmem:[%s247 + $0x458] sm:$0xff]
        %v422 = vld [vmem:[%s247 + $0x460] sm:$0xff]
        %v423 = vld [vmem:[%s247 + $0x468] sm:$0xff]
        %v424 = vld [vmem:[%s247 + $0x470] sm:$0xff]
        %v425 = vld [vmem:[%s247 + $0x478] sm:$0xff]
        %v426 = vld [vmem:[%s247 + $0x480] sm:$0xff]
        %v427 = vld [vmem:[%s247 + $0x488] sm:$0xff]
        %v428 = vld [vmem:[%s247 + $0x490] sm:$0xff]
        %v429 = vld [vmem:[%s247 + $0x498] sm:$0xff]
        %v430 = vld [vmem:[%s247 + $0x4a0] sm:$0xff]
        %v431 = vld [vmem:[%s247 + $0x4a8] sm:$0xff]
        %v432 = vld [vmem:[%s247 + $0x4b0] sm:$0xff]
        %v433 = vld [vmem:[%s247 + $0x4b8] sm:$0xff]
        %v434 = vld [vmem:[%s247 + $0x4c0] sm:$0xff]
        %v435 = vld [vmem:[%s247 + $0x4c8] sm:$0xff]
        %v436 = vld [vmem:[%s247 + $0x4d0] sm:$0xff]
        %v437 = vld [vmem:[%s247 + $0x4d8] sm:$0xff]
        %v438 = vld [vmem:[%s247 + $0x4e0] sm:$0xff]
        %v439 = vld [vmem:[%s247 + $0x4e8] sm:$0xff]
        %v440 = vld [vmem:[%s247 + $0x4f0] sm:$0xff]
        %v441 = vld [vmem:[%s247 + $0x4f8] sm:$0xff]
        %v442 = vld [vmem:[%s247 + $0x500] sm:$0xff]
        %v443 = vld [vmem:[%s247 + $0x508] sm:$0xff]
        %v444 = vld [vmem:[%s247 + $0x510] sm:$0xff]
        %v445 = vld [vmem:[%s247 + $0x518] sm:$0xff]
        %v446 = vld [vmem:[%s247 + $0x520] sm:$0xff]
        %v447 = vld [vmem:[%s247 + $0x528] sm:$0xff]
        %v448 = vld [vmem:[%s247 + $0x530] sm:$0xff]
        %v449 = vld [vmem:[%s247 + $0x538] sm:$0xff]
        %v450 = vld [vmem:[%s247 + $0x540] sm:$0xff]
        %v451 = vld [vmem:[%s247 + $0x548] sm:$0xff]
        %v452 = vld [vmem:[%s247 + $0x550] sm:$0xff]
        %v453 = vld [vmem:[%s247 + $0x558] sm:$0xff]
        %v454 = vld [vmem:[%s247 + $0x560] sm:$0xff]
        %v455 = vld [vmem:[%s247 + $0x568] sm:$0xff]
        %v456 = vld [vmem:[%s247 + $0x570] sm:$0xff]
        %v457 = vld [vmem:[%s247 + $0x578] sm:$0xff]
        %v458 = vld [vmem:[%s247 + $0x580] sm:$0xff]
        %v459 = vld [vmem:[%s247 + $0x588] sm:$0xff]
        %v460 = vld [vmem:[%s247 + $0x590] sm:$0xff]
        %v461 = vld [vmem:[%s247 + $0x598] sm:$0xff]
        %v462 = vld [vmem:[%s247 + $0x5a0] sm:$0xff]
        %v463 = vld [vmem:[%s247 + $0x5a8] sm:$0xff]
        %v464 = vld [vmem:[%s247 + $0x5b0] sm:$0xff]
        %v465 = vld [vmem:[%s247 + $0x5b8] sm:$0xff]
        %v466 = vld [vmem:[%s247 + $0x5c0] sm:$0xff]
        %v467 = vld [vmem:[%s247 + $0x5c8] sm:$0xff]
        %v468 = vld [vmem:[%s247 + $0x5d0] sm:$0xff]
        %v469 = vld [vmem:[%s247 + $0x5d8] sm:$0xff]
        %v470 = vld [vmem:[%s247 + $0x5e0] sm:$0xff]
        %v471 = vld [vmem:[%s247 + $0x5e8] sm:$0xff]
        %v472 = vld [vmem:[%s247 + $0x5f0] sm:$0xff]
        %v473 = vld [vmem:[%s247 + $0x5f8] sm:$0xff]
        %v474 = vld [vmem:[%s247 + $0x600] sm:$0xff]
        %v475 = vld [vmem:[%s247 + $0x608] sm:$0xff]
        %v476 = vld [vmem:[%s247 + $0x610] sm:$0xff]
        %v477 = vld [vmem:[%s247 + $0x618] sm:$0xff]
        %v478 = vld [vmem:[%s247 + $0x620] sm:$0xff]
        %v479 = vld [vmem:[%s247 + $0x628] sm:$0xff]
        %v480 = vld [vmem:[%s247 + $0x630] sm:$0xff]
        %v481 = vld [vmem:[%s247 + $0x638] sm:$0xff]
        %v482 = vld [vmem:[%s247 + $0x640] sm:$0xff]
        %v483 = vld [vmem:[%s247 + $0x648] sm:$0xff]
        %v484 = vld [vmem:[%s247 + $0x650] sm:$0xff]
        %v485 = vld [vmem:[%s247 + $0x658] sm:$0xff]
        %v486 = vld [vmem:[%s247 + $0x660] sm:$0xff]
        %v487 = vld [vmem:[%s247 + $0x668] sm:$0xff]
        %v488 = vld [vmem:[%s247 + $0x670] sm:$0xff]
        %v489 = vld [vmem:[%s247 + $0x678] sm:$0xff]
        %v490 = vld [vmem:[%s247 + $0x680] sm:$0xff]
        %v491 = vld [vmem:[%s247 + $0x688] sm:$0xff]
        %v492 = vld [vmem:[%s247 + $0x690] sm:$0xff]
        %v493 = vld [vmem:[%s247 + $0x698] sm:$0xff]
        %v494 = vld [vmem:[%s247 + $0x6a0] sm:$0xff]
        %v495 = vld [vmem:[%s247 + $0x6a8] sm:$0xff]
        %v496 = vld [vmem:[%s247 + $0x6b0] sm:$0xff]
        %v497 = vld [vmem:[%s247 + $0x6b8] sm:$0xff]
        %v498 = vld [vmem:[%s247 + $0x6c0] sm:$0xff]
        %v499 = vld [vmem:[%s247 + $0x6c8] sm:$0xff]
        %v500 = vld [vmem:[%s247 + $0x6d0] sm:$0xff]
        %v501 = vld [vmem:[%s247 + $0x6d8] sm:$0xff]
        %v502 = vld [vmem:[%s247 + $0x6e0] sm:$0xff]
        %v503 = vld [vmem:[%s247 + $0x6e8] sm:$0xff]
        %v504 = vld [vmem:[%s247 + $0x6f0] sm:$0xff]
        %v505 = vld [vmem:[%s247 + $0x6f8] sm:$0xff]
        %v506 = vld [vmem:[%s247 + $0x700] sm:$0xff]
        %v507 = vld [vmem:[%s247 + $0x708] sm:$0xff]
        %v508 = vld [vmem:[%s247 + $0x710] sm:$0xff]
        %v509 = vld [vmem:[%s247 + $0x718] sm:$0xff]
        %v510 = vld [vmem:[%s247 + $0x720] sm:$0xff]
        %v511 = vld [vmem:[%s247 + $0x728] sm:$0xff]
        %v512 = vld [vmem:[%s247 + $0x730] sm:$0xff]
        %v513 = vld [vmem:[%s247 + $0x738] sm:$0xff]
        %v514 = vld [vmem:[%s247 + $0x740] sm:$0xff]
        %v515 = vld [vmem:[%s247 + $0x748] sm:$0xff]
        %v516 = vld [vmem:[%s247 + $0x750] sm:$0xff]
        %v517 = vld [vmem:[%s247 + $0x758] sm:$0xff]
        %v518 = vld [vmem:[%s247 + $0x760] sm:$0xff]
        %v519 = vld [vmem:[%s247 + $0x768] sm:$0xff]
        %v520 = vld [vmem:[%s247 + $0x770] sm:$0xff]
        %v521 = vld [vmem:[%s247 + $0x778] sm:$0xff]
        %v522 = vld [vmem:[%s247 + $0x780] sm:$0xff]
        %v523 = vld [vmem:[%s247 + $0x788] sm:$0xff]
        %v524 = vld [vmem:[%s247 + $0x790] sm:$0xff]
        %v525 = vld [vmem:[%s247 + $0x798] sm:$0xff]
        %v526 = vld [vmem:[%s247 + $0x7a0] sm:$0xff]
        %v527 = vld [vmem:[%s247 + $0x7a8] sm:$0xff]
        %v528 = vld [vmem:[%s247 + $0x7b0] sm:$0xff]
        %v529 = vld [vmem:[%s247 + $0x7b8] sm:$0xff]
        %v530 = vld [vmem:[%s247 + $0x7c0] sm:$0xff]
        %v531 = vld [vmem:[%s247 + $0x7c8] sm:$0xff]
        %v532 = vld [vmem:[%s247 + $0x7d0] sm:$0xff]
        %v533 = vld [vmem:[%s247 + $0x7d8] sm:$0xff]
        %v534 = vld [vmem:[%s247 + $0x7e0] sm:$0xff]
        %v535 = vld [vmem:[%s247 + $0x7e8] sm:$0xff]
        %v536 = vld [vmem:[%s247 + $0x7f0] sm:$0xff]
        %v537 = vld [vmem:[%s247 + $0x7f8] sm:$0xff]
        %v538 = vld [vmem:[%s255] sm:$0xff]
        %v539 = vld [vmem:[%s255 + $0x8] sm:$0xff]
        %v540 = vld [vmem:[%s255 + $0x10] sm:$0xff]
        %v541 = vld [vmem:[%s255 + $0x18] sm:$0xff]
        %v542 = vld [vmem:[%s255 + $0x20] sm:$0xff]
        %v543 = vld [vmem:[%s255 + $0x28] sm:$0xff]
        %v544 = vld [vmem:[%s255 + $0x30] sm:$0xff]
        %v545 = vld [vmem:[%s255 + $0x38] sm:$0xff]
        %v546 = vld [vmem:[%s255 + $0x40] sm:$0xff]
        %v547 = vld [vmem:[%s255 + $0x48] sm:$0xff]
        %v548 = vld [vmem:[%s255 + $0x50] sm:$0xff]
        %v549 = vld [vmem:[%s255 + $0x58] sm:$0xff]
        %v550 = vld [vmem:[%s255 + $0x60] sm:$0xff]
        %v551 = vld [vmem:[%s255 + $0x68] sm:$0xff]
        %v552 = vld [vmem:[%s255 + $0x70] sm:$0xff]
        %v553 = vld [vmem:[%s255 + $0x78] sm:$0xff]
        %v554 = vadd.f32 %v282, %v283
        %v555 = vadd.f32 %v554, %v284
        %v556 = vadd.f32 %v555, %v285
        %v557 = vadd.f32 %v556, %v286
        %v558 = vadd.f32 %v557, %v287
        %v559 = vadd.f32 %v558, %v288
        %v560 = vadd.f32 %v559, %v289
        %v561 = vadd.f32 %v560, %v290
        %v562 = vadd.f32 %v561, %v291
        %v563 = vadd.f32 %v562, %v292
        %v564 = vadd.f32 %v563, %v293
        %v565 = vadd.f32 %v564, %v294
        %v566 = vadd.f32 %v565, %v295
        %v567 = vadd.f32 %v566, %v296
        %v568 = vadd.f32 %v567, %v297
        %v569 = vadd.f32 %v568, %v298
        %v570 = vadd.f32 %v569, %v299
        %v571 = vadd.f32 %v570, %v300
        %v572 = vadd.f32 %v571, %v301
        %v573 = vadd.f32 %v572, %v302
        %v574 = vadd.f32 %v573, %v303
        %v575 = vadd.f32 %v574, %v304
        %v576 = vadd.f32 %v575, %v305
        %v577 = vadd.f32 %v576, %v306
        %v578 = vadd.f32 %v577, %v307
        %v579 = vadd.f32 %v578, %v308
        %v580 = vadd.f32 %v579, %v309
        %v581 = vadd.f32 %v580, %v310
        %v582 = vadd.f32 %v581, %v311
        %v583 = vadd.f32 %v582, %v312
        %v584 = vadd.f32 %v583, %v313
        %v585 = vadd.f32 %v584, %v314
        %v586 = vadd.f32 %v585, %v315
        %v587 = vadd.f32 %v586, %v316
        %v588 = vadd.f32 %v587, %v317
        %v589 = vadd.f32 %v588, %v318
        %v590 = vadd.f32 %v589, %v319
        %v591 = vadd.f32 %v590, %v320
        %v592 = vadd.f32 %v591, %v321
        %v593 = vadd.f32 %v592, %v322
        %v594 = vadd.f32 %v593, %v323
        %v595 = vadd.f32 %v594, %v324
        %v596 = vadd.f32 %v595, %v325
        %v597 = vadd.f32 %v596, %v326
        %v598 = vadd.f32 %v597, %v327
        %v599 = vadd.f32 %v598, %v328
        %v600 = vadd.f32 %v599, %v329
        %v601 = vadd.f32 %v600, %v330
        %v602 = vadd.f32 %v601, %v331
        %v603 = vadd.f32 %v602, %v332
        %v604 = vadd.f32 %v603, %v333
        %v605 = vadd.f32 %v604, %v334
        %v606 = vadd.f32 %v605, %v335
        %v607 = vadd.f32 %v606, %v336
        %v608 = vadd.f32 %v607, %v337
        %v609 = vadd.f32 %v608, %v338
        %v610 = vadd.f32 %v609, %v339
        %v611 = vadd.f32 %v610, %v340
        %v612 = vadd.f32 %v611, %v341
        %v613 = vadd.f32 %v612, %v342
        %v614 = vadd.f32 %v613, %v343
        %v615 = vadd.f32 %v614, %v344
        %v616 = vadd.f32 %v615, %v345
        %617 = vadd.xlane.f32.xlu0 %v616
        %v618 = vpop.xlane.xlu0 %617
        %v619 = vadd.f32 %v346, %v347
        %v620 = vadd.f32 %v619, %v348
        %v621 = vadd.f32 %v620, %v349
        %v622 = vadd.f32 %v621, %v350
        %v623 = vadd.f32 %v622, %v351
        %v624 = vadd.f32 %v623, %v352
        %v625 = vadd.f32 %v624, %v353
        %v626 = vadd.f32 %v625, %v354
        %v627 = vadd.f32 %v626, %v355
        %v628 = vadd.f32 %v627, %v356
        %v629 = vadd.f32 %v628, %v357
        %v630 = vadd.f32 %v629, %v358
        %v631 = vadd.f32 %v630, %v359
        %v632 = vadd.f32 %v631, %v360
        %v633 = vadd.f32 %v632, %v361
        %v634 = vadd.f32 %v633, %v362
        %v635 = vadd.f32 %v634, %v363
        %v636 = vadd.f32 %v635, %v364
        %v637 = vadd.f32 %v636, %v365
        %v638 = vadd.f32 %v637, %v366
        %v639 = vadd.f32 %v638, %v367
        %v640 = vadd.f32 %v639, %v368
        %v641 = vadd.f32 %v640, %v369
        %v642 = vadd.f32 %v641, %v370
        %v643 = vadd.f32 %v642, %v371
        %v644 = vadd.f32 %v643, %v372
        %v645 = vadd.f32 %v644, %v373
        %v646 = vadd.f32 %v645, %v374
        %v647 = vadd.f32 %v646, %v375
        %v648 = vadd.f32 %v647, %v376
        %v649 = vadd.f32 %v648, %v377
        %v650 = vadd.f32 %v649, %v378
        %v651 = vadd.f32 %v650, %v379
        %v652 = vadd.f32 %v651, %v380
        %v653 = vadd.f32 %v652, %v381
        %v654 = vadd.f32 %v653, %v382
        %v655 = vadd.f32 %v654, %v383
        %v656 = vadd.f32 %v655, %v384
        %v657 = vadd.f32 %v656, %v385
        %v658 = vadd.f32 %v657, %v386
        %v659 = vadd.f32 %v658, %v387
        %v660 = vadd.f32 %v659, %v388
        %v661 = vadd.f32 %v660, %v389
        %v662 = vadd.f32 %v661, %v390
        %v663 = vadd.f32 %v662, %v391
        %v664 = vadd.f32 %v663, %v392
        %v665 = vadd.f32 %v664, %v393
        %v666 = vadd.f32 %v665, %v394
        %v667 = vadd.f32 %v666, %v395
        %v668 = vadd.f32 %v667, %v396
        %v669 = vadd.f32 %v668, %v397
        %v670 = vadd.f32 %v669, %v398
        %v671 = vadd.f32 %v670, %v399
        %v672 = vadd.f32 %v671, %v400
        %v673 = vadd.f32 %v672, %v401
        %v674 = vadd.f32 %v673, %v402
        %v675 = vadd.f32 %v674, %v403
        %v676 = vadd.f32 %v675, %v404
        %v677 = vadd.f32 %v676, %v405
        %v678 = vadd.f32 %v677, %v406
        %v679 = vadd.f32 %v678, %v407
        %v680 = vadd.f32 %v679, %v408
        %v681 = vadd.f32 %v680, %v409
        %682 = vadd.xlane.f32.xlu0 %v681
        %v683 = vpop.xlane.xlu0 %682
        %v684 = vadd.f32 %v410, %v411
        %v685 = vadd.f32 %v684, %v412
        %v686 = vadd.f32 %v685, %v413
        %v687 = vadd.f32 %v686, %v414
        %v688 = vadd.f32 %v687, %v415
        %v689 = vadd.f32 %v688, %v416
        %v690 = vadd.f32 %v689, %v417
        %v691 = vadd.f32 %v690, %v418
        %v692 = vadd.f32 %v691, %v419
        %v693 = vadd.f32 %v692, %v420
        %v694 = vadd.f32 %v693, %v421
        %v695 = vadd.f32 %v694, %v422
        %v696 = vadd.f32 %v695, %v423
        %v697 = vadd.f32 %v696, %v424
        %v698 = vadd.f32 %v697, %v425
        %v699 = vadd.f32 %v698, %v426
        %v700 = vadd.f32 %v699, %v427
        %v701 = vadd.f32 %v700, %v428
        %v702 = vadd.f32 %v701, %v429
        %v703 = vadd.f32 %v702, %v430
        %v704 = vadd.f32 %v703, %v431
        %v705 = vadd.f32 %v704, %v432
        %v706 = vadd.f32 %v705, %v433
        %v707 = vadd.f32 %v706, %v434
        %v708 = vadd.f32 %v707, %v435
        %v709 = vadd.f32 %v708, %v436
        %v710 = vadd.f32 %v709, %v437
        %v711 = vadd.f32 %v710, %v438
        %v712 = vadd.f32 %v711, %v439
        %v713 = vadd.f32 %v712, %v440
        %v714 = vadd.f32 %v713, %v441
        %v715 = vadd.f32 %v714, %v442
        %v716 = vadd.f32 %v715, %v443
        %v717 = vadd.f32 %v716, %v444
        %v718 = vadd.f32 %v717, %v445
        %v719 = vadd.f32 %v718, %v446
        %v720 = vadd.f32 %v719, %v447
        %v721 = vadd.f32 %v720, %v448
        %v722 = vadd.f32 %v721, %v449
        %v723 = vadd.f32 %v722, %v450
        %v724 = vadd.f32 %v723, %v451
        %v725 = vadd.f32 %v724, %v452
        %v726 = vadd.f32 %v725, %v453
        %v727 = vadd.f32 %v726, %v454
        %v728 = vadd.f32 %v727, %v455
        %v729 = vadd.f32 %v728, %v456
        %v730 = vadd.f32 %v729, %v457
        %v731 = vadd.f32 %v730, %v458
        %v732 = vadd.f32 %v731, %v459
        %v733 = vadd.f32 %v732, %v460
        %v734 = vadd.f32 %v733, %v461
        %v735 = vadd.f32 %v734, %v462
        %v736 = vadd.f32 %v735, %v463
        %v737 = vadd.f32 %v736, %v464
        %v738 = vadd.f32 %v737, %v465
        %v739 = vadd.f32 %v738, %v466
        %v740 = vadd.f32 %v739, %v467
        %v741 = vadd.f32 %v740, %v468
        %v742 = vadd.f32 %v741, %v469
        %v743 = vadd.f32 %v742, %v470
        %v744 = vadd.f32 %v743, %v471
        %v745 = vadd.f32 %v744, %v472
        %v746 = vadd.f32 %v745, %v473
        %747 = vadd.xlane.f32.xlu0 %v746
        %v748 = vpop.xlane.xlu0 %747
        %v749 = vadd.f32 %v474, %v475
        %v750 = vadd.f32 %v749, %v476
        %v751 = vadd.f32 %v750, %v477
        %v752 = vadd.f32 %v751, %v478
        %v753 = vadd.f32 %v752, %v479
        %v754 = vadd.f32 %v753, %v480
        %v755 = vadd.f32 %v754, %v481
        %v756 = vadd.f32 %v755, %v482
        %v757 = vadd.f32 %v756, %v483
        %v758 = vadd.f32 %v757, %v484
        %v759 = vadd.f32 %v758, %v485
        %v760 = vadd.f32 %v759, %v486
        %v761 = vadd.f32 %v760, %v487
        %v762 = vadd.f32 %v761, %v488
        %v763 = vadd.f32 %v762, %v489
        %v764 = vadd.f32 %v763, %v490
        %v765 = vadd.f32 %v764, %v491
        %v766 = vadd.f32 %v765, %v492
        %v767 = vadd.f32 %v766, %v493
        %v768 = vadd.f32 %v767, %v494
        %v769 = vadd.f32 %v768, %v495
        %v770 = vadd.f32 %v769, %v496
        %v771 = vadd.f32 %v770, %v497
        %v772 = vadd.f32 %v771, %v498
        %v773 = vadd.f32 %v772, %v499
        %v774 = vadd.f32 %v773, %v500
        %v775 = vadd.f32 %v774, %v501
        %v776 = vadd.f32 %v775, %v502
        %v777 = vadd.f32 %v776, %v503
        %v778 = vadd.f32 %v777, %v504
        %v779 = vadd.f32 %v778, %v505
        %v780 = vadd.f32 %v779, %v506
        %v781 = vadd.f32 %v780, %v507
        %v782 = vadd.f32 %v781, %v508
        %v783 = vadd.f32 %v782, %v509
        %v784 = vadd.f32 %v783, %v510
        %v785 = vadd.f32 %v784, %v511
        %v786 = vadd.f32 %v785, %v512
        %v787 = vadd.f32 %v786, %v513
        %v788 = vadd.f32 %v787, %v514
        %v789 = vadd.f32 %v788, %v515
        %v790 = vadd.f32 %v789, %v516
        %v791 = vadd.f32 %v790, %v517
        %v792 = vadd.f32 %v791, %v518
        %v793 = vadd.f32 %v792, %v519
        %v794 = vadd.f32 %v793, %v520
        %v795 = vadd.f32 %v794, %v521
        %v796 = vadd.f32 %v795, %v522
        %v797 = vadd.f32 %v796, %v523
        %v798 = vadd.f32 %v797, %v524
        %v799 = vadd.f32 %v798, %v525
        %v800 = vadd.f32 %v799, %v526
        %v801 = vadd.f32 %v800, %v527
        %v802 = vadd.f32 %v801, %v528
        %v803 = vadd.f32 %v802, %v529
        %v804 = vadd.f32 %v803, %v530
        %v805 = vadd.f32 %v804, %v531
        %v806 = vadd.f32 %v805, %v532
        %v807 = vadd.f32 %v806, %v533
        %v808 = vadd.f32 %v807, %v534
        %v809 = vadd.f32 %v808, %v535
        %v810 = vadd.f32 %v809, %v536
        %v811 = vadd.f32 %v810, %v537
        %812 = vadd.xlane.f32.xlu0 %v811
        %v813 = vpop.xlane.xlu0 %812
        %v814 = vadd.f32 %v618, 0.0
        %v815 = vadd.f32 %v683, 0.0
        %v816 = vadd.f32 %v748, 0.0
        %v817 = vadd.f32 %v813, 0.0
        %v818 = vmul.f32 %v814, 0.00012207031
        %v819 = vmul.f32 %v815, 0.00012207031
        %v820 = vmul.f32 %v816, 0.00012207031
        %v821 = vmul.f32 %v817, 0.00012207031
        %v822 = vsub.f32 %v282, %v818
        %v823 = vsub.f32 %v283, %v818
        %v824 = vsub.f32 %v284, %v818
        %v825 = vsub.f32 %v285, %v818
        %v826 = vsub.f32 %v286, %v818
        %v827 = vsub.f32 %v287, %v818
        %v828 = vsub.f32 %v288, %v818
        %v829 = vsub.f32 %v289, %v818
        %v830 = vsub.f32 %v290, %v818
        %v831 = vsub.f32 %v291, %v818
        %v832 = vsub.f32 %v292, %v818
        %v833 = vsub.f32 %v293, %v818
        %v834 = vsub.f32 %v294, %v818
        %v835 = vsub.f32 %v295, %v818
        %v836 = vsub.f32 %v296, %v818
        %v837 = vsub.f32 %v297, %v818
        %v838 = vsub.f32 %v298, %v818
        %v839 = vsub.f32 %v299, %v818
        %v840 = vsub.f32 %v300, %v818
        %v841 = vsub.f32 %v301, %v818
        %v842 = vsub.f32 %v302, %v818
        %v843 = vsub.f32 %v303, %v818
        %v844 = vsub.f32 %v304, %v818
        %v845 = vsub.f32 %v305, %v818
        %v846 = vsub.f32 %v306, %v818
        %v847 = vsub.f32 %v307, %v818
        %v848 = vsub.f32 %v308, %v818
        %v849 = vsub.f32 %v309, %v818
        %v850 = vsub.f32 %v310, %v818
        %v851 = vsub.f32 %v311, %v818
        %v852 = vsub.f32 %v312, %v818
        %v853 = vsub.f32 %v313, %v818
        %v854 = vsub.f32 %v314, %v818
        %v855 = vsub.f32 %v315, %v818
        %v856 = vsub.f32 %v316, %v818
        %v857 = vsub.f32 %v317, %v818
        %v858 = vsub.f32 %v318, %v818
        %v859 = vsub.f32 %v319, %v818
        %v860 = vsub.f32 %v320, %v818
        %v861 = vsub.f32 %v321, %v818
        %v862 = vsub.f32 %v322, %v818
        %v863 = vsub.f32 %v323, %v818
        %v864 = vsub.f32 %v324, %v818
        %v865 = vsub.f32 %v325, %v818
        %v866 = vsub.f32 %v326, %v818
        %v867 = vsub.f32 %v327, %v818
        %v868 = vsub.f32 %v328, %v818
        %v869 = vsub.f32 %v329, %v818
        %v870 = vsub.f32 %v330, %v818
        %v871 = vsub.f32 %v331, %v818
        %v872 = vsub.f32 %v332, %v818
        %v873 = vsub.f32 %v333, %v818
        %v874 = vsub.f32 %v334, %v818
        %v875 = vsub.f32 %v335, %v818
        %v876 = vsub.f32 %v336, %v818
        %v877 = vsub.f32 %v337, %v818
        %v878 = vsub.f32 %v338, %v818
        %v879 = vsub.f32 %v339, %v818
        %v880 = vsub.f32 %v340, %v818
        %v881 = vsub.f32 %v341, %v818
        %v882 = vsub.f32 %v342, %v818
        %v883 = vsub.f32 %v343, %v818
        %v884 = vsub.f32 %v344, %v818
        %v885 = vsub.f32 %v345, %v818
        %v886 = vsub.f32 %v346, %v819
        %v887 = vsub.f32 %v347, %v819
        %v888 = vsub.f32 %v348, %v819
        %v889 = vsub.f32 %v349, %v819
        %v890 = vsub.f32 %v350, %v819
        %v891 = vsub.f32 %v351, %v819
        %v892 = vsub.f32 %v352, %v819
        %v893 = vsub.f32 %v353, %v819
        %v894 = vsub.f32 %v354, %v819
        %v895 = vsub.f32 %v355, %v819
        %v896 = vsub.f32 %v356, %v819
        %v897 = vsub.f32 %v357, %v819
        %v898 = vsub.f32 %v358, %v819
        %v899 = vsub.f32 %v359, %v819
        %v900 = vsub.f32 %v360, %v819
        %v901 = vsub.f32 %v361, %v819
        %v902 = vsub.f32 %v362, %v819
        %v903 = vsub.f32 %v363, %v819
        %v904 = vsub.f32 %v364, %v819
        %v905 = vsub.f32 %v365, %v819
        %v906 = vsub.f32 %v366, %v819
        %v907 = vsub.f32 %v367, %v819
        %v908 = vsub.f32 %v368, %v819
        %v909 = vsub.f32 %v369, %v819
        %v910 = vsub.f32 %v370, %v819
        %v911 = vsub.f32 %v371, %v819
        %v912 = vsub.f32 %v372, %v819
        %v913 = vsub.f32 %v373, %v819
        %v914 = vsub.f32 %v374, %v819
        %v915 = vsub.f32 %v375, %v819
        %v916 = vsub.f32 %v376, %v819
        %v917 = vsub.f32 %v377, %v819
        %v918 = vsub.f32 %v378, %v819
        %v919 = vsub.f32 %v379, %v819
        %v920 = vsub.f32 %v380, %v819
        %v921 = vsub.f32 %v381, %v819
        %v922 = vsub.f32 %v382, %v819
        %v923 = vsub.f32 %v383, %v819
        %v924 = vsub.f32 %v384, %v819
        %v925 = vsub.f32 %v385, %v819
        %v926 = vsub.f32 %v386, %v819
        %v927 = vsub.f32 %v387, %v819
        %v928 = vsub.f32 %v388, %v819
        %v929 = vsub.f32 %v389, %v819
        %v930 = vsub.f32 %v390, %v819
        %v931 = vsub.f32 %v391, %v819
        %v932 = vsub.f32 %v392, %v819
        %v933 = vsub.f32 %v393, %v819
        %v934 = vsub.f32 %v394, %v819
        %v935 = vsub.f32 %v395, %v819
        %v936 = vsub.f32 %v396, %v819
        %v937 = vsub.f32 %v397, %v819
        %v938 = vsub.f32 %v398, %v819
        %v939 = vsub.f32 %v399, %v819
        %v940 = vsub.f32 %v400, %v819
        %v941 = vsub.f32 %v401, %v819
        %v942 = vsub.f32 %v402, %v819
        %v943 = vsub.f32 %v403, %v819
        %v944 = vsub.f32 %v404, %v819
        %v945 = vsub.f32 %v405, %v819
        %v946 = vsub.f32 %v406, %v819
        %v947 = vsub.f32 %v407, %v819
        %v948 = vsub.f32 %v408, %v819
        %v949 = vsub.f32 %v409, %v819
        %v950 = vsub.f32 %v410, %v820
        %v951 = vsub.f32 %v411, %v820
        %v952 = vsub.f32 %v412, %v820
        %v953 = vsub.f32 %v413, %v820
        %v954 = vsub.f32 %v414, %v820
        %v955 = vsub.f32 %v415, %v820
        %v956 = vsub.f32 %v416, %v820
        %v957 = vsub.f32 %v417, %v820
        %v958 = vsub.f32 %v418, %v820
        %v959 = vsub.f32 %v419, %v820
        %v960 = vsub.f32 %v420, %v820
        %v961 = vsub.f32 %v421, %v820
        %v962 = vsub.f32 %v422, %v820
        %v963 = vsub.f32 %v423, %v820
        %v964 = vsub.f32 %v424, %v820
        %v965 = vsub.f32 %v425, %v820
        %v966 = vsub.f32 %v426, %v820
        %v967 = vsub.f32 %v427, %v820
        %v968 = vsub.f32 %v428, %v820
        %v969 = vsub.f32 %v429, %v820
        %v970 = vsub.f32 %v430, %v820
        %v971 = vsub.f32 %v431, %v820
        %v972 = vsub.f32 %v432, %v820
        %v973 = vsub.f32 %v433, %v820
        %v974 = vsub.f32 %v434, %v820
        %v975 = vsub.f32 %v435, %v820
        %v976 = vsub.f32 %v436, %v820
        %v977 = vsub.f32 %v437, %v820
        %v978 = vsub.f32 %v438, %v820
        %v979 = vsub.f32 %v439, %v820
        %v980 = vsub.f32 %v440, %v820
        %v981 = vsub.f32 %v441, %v820
        %v982 = vsub.f32 %v442, %v820
        %v983 = vsub.f32 %v443, %v820
        %v984 = vsub.f32 %v444, %v820
        %v985 = vsub.f32 %v445, %v820
        %v986 = vsub.f32 %v446, %v820
        %v987 = vsub.f32 %v447, %v820
        %v988 = vsub.f32 %v448, %v820
        %v989 = vsub.f32 %v449, %v820
        %v990 = vsub.f32 %v450, %v820
        %v991 = vsub.f32 %v451, %v820
        %v992 = vsub.f32 %v452, %v820
        %v993 = vsub.f32 %v453, %v820
        %v994 = vsub.f32 %v454, %v820
        %v995 = vsub.f32 %v455, %v820
        %v996 = vsub.f32 %v456, %v820
        %v997 = vsub.f32 %v457, %v820
        %v998 = vsub.f32 %v458, %v820
        %v999 = vsub.f32 %v459, %v820
        %v1000 = vsub.f32 %v460, %v820
        %v1001 = vsub.f32 %v461, %v820
        %v1002 = vsub.f32 %v462, %v820
        %v1003 = vsub.f32 %v463, %v820
        %v1004 = vsub.f32 %v464, %v820
        %v1005 = vsub.f32 %v465, %v820
        %v1006 = vsub.f32 %v466, %v820
        %v1007 = vsub.f32 %v467, %v820
        %v1008 = vsub.f32 %v468, %v820
        %v1009 = vsub.f32 %v469, %v820
        %v1010 = vsub.f32 %v470, %v820
        %v1011 = vsub.f32 %v471, %v820
        %v1012 = vsub.f32 %v472, %v820
        %v1013 = vsub.f32 %v473, %v820
        %v1014 = vsub.f32 %v474, %v821
        %v1015 = vsub.f32 %v475, %v821
        %v1016 = vsub.f32 %v476, %v821
        %v1017 = vsub.f32 %v477, %v821
        %v1018 = vsub.f32 %v478, %v821
        %v1019 = vsub.f32 %v479, %v821
        %v1020 = vsub.f32 %v480, %v821
        %v1021 = vsub.f32 %v481, %v821
        %v1022 = vsub.f32 %v482, %v821
        %v1023 = vsub.f32 %v483, %v821
        %v1024 = vsub.f32 %v484, %v821
        %v1025 = vsub.f32 %v485, %v821
        %v1026 = vsub.f32 %v486, %v821
        %v1027 = vsub.f32 %v487, %v821
        %v1028 = vsub.f32 %v488, %v821
        %v1029 = vsub.f32 %v489, %v821
        %v1030 = vsub.f32 %v490, %v821
        %v1031 = vsub.f32 %v491, %v821
        %v1032 = vsub.f32 %v492, %v821
        %v1033 = vsub.f32 %v493, %v821
        %v1034 = vsub.f32 %v494, %v821
        %v1035 = vsub.f32 %v495, %v821
        %v1036 = vsub.f32 %v496, %v821
        %v1037 = vsub.f32 %v497, %v821
        %v1038 = vsub.f32 %v498, %v821
        %v1039 = vsub.f32 %v499, %v821
        %v1040 = vsub.f32 %v500, %v821
        %v1041 = vsub.f32 %v501, %v821
        %v1042 = vsub.f32 %v502, %v821
        %v1043 = vsub.f32 %v503, %v821
        %v1044 = vsub.f32 %v504, %v821
        %v1045 = vsub.f32 %v505, %v821
        %v1046 = vsub.f32 %v506, %v821
        %v1047 = vsub.f32 %v507, %v821
        %v1048 = vsub.f32 %v508, %v821
        %v1049 = vsub.f32 %v509, %v821
        %v1050 = vsub.f32 %v510, %v821
        %v1051 = vsub.f32 %v511, %v821
        %v1052 = vsub.f32 %v512, %v821
        %v1053 = vsub.f32 %v513, %v821
        %v1054 = vsub.f32 %v514, %v821
        %v1055 = vsub.f32 %v515, %v821
        %v1056 = vsub.f32 %v516, %v821
        %v1057 = vsub.f32 %v517, %v821
        %v1058 = vsub.f32 %v518, %v821
        %v1059 = vsub.f32 %v519, %v821
        %v1060 = vsub.f32 %v520, %v821
        %v1061 = vsub.f32 %v521, %v821
        %v1062 = vsub.f32 %v522, %v821
        %v1063 = vsub.f32 %v523, %v821
        %v1064 = vsub.f32 %v524, %v821
        %v1065 = vsub.f32 %v525, %v821
        %v1066 = vsub.f32 %v526, %v821
        %v1067 = vsub.f32 %v527, %v821
        %v1068 = vsub.f32 %v528, %v821
        %v1069 = vsub.f32 %v529, %v821
        %v1070 = vsub.f32 %v530, %v821
        %v1071 = vsub.f32 %v531, %v821
        %v1072 = vsub.f32 %v532, %v821
        %v1073 = vsub.f32 %v533, %v821
        %v1074 = vsub.f32 %v534, %v821
        %v1075 = vsub.f32 %v535, %v821
        %v1076 = vsub.f32 %v536, %v821
        %v1077 = vsub.f32 %v537, %v821
        %v1078 = vmul.f32 %v822, %v822
        %v1079 = vmul.f32 %v823, %v823
        %v1080 = vmul.f32 %v824, %v824
        %v1081 = vmul.f32 %v825, %v825
        %v1082 = vmul.f32 %v826, %v826
        %v1083 = vmul.f32 %v827, %v827
        %v1084 = vmul.f32 %v828, %v828
        %v1085 = vmul.f32 %v829, %v829
        %v1086 = vmul.f32 %v830, %v830
        %v1087 = vmul.f32 %v831, %v831
        %v1088 = vmul.f32 %v832, %v832
        %v1089 = vmul.f32 %v833, %v833
        %v1090 = vmul.f32 %v834, %v834
        %v1091 = vmul.f32 %v835, %v835
        %v1092 = vmul.f32 %v836, %v836
        %v1093 = vmul.f32 %v837, %v837
        %v1094 = vmul.f32 %v838, %v838
        %v1095 = vmul.f32 %v839, %v839
        %v1096 = vmul.f32 %v840, %v840
        %v1097 = vmul.f32 %v841, %v841
        %v1098 = vmul.f32 %v842, %v842
        %v1099 = vmul.f32 %v843, %v843
        %v1100 = vmul.f32 %v844, %v844
        %v1101 = vmul.f32 %v845, %v845
        %v1102 = vmul.f32 %v846, %v846
        %v1103 = vmul.f32 %v847, %v847
        %v1104 = vmul.f32 %v848, %v848
        %v1105 = vmul.f32 %v849, %v849
        %v1106 = vmul.f32 %v850, %v850
        %v1107 = vmul.f32 %v851, %v851
        %v1108 = vmul.f32 %v852, %v852
        %v1109 = vmul.f32 %v853, %v853
        %v1110 = vmul.f32 %v854, %v854
        %v1111 = vmul.f32 %v855, %v855
        %v1112 = vmul.f32 %v856, %v856
        %v1113 = vmul.f32 %v857, %v857
        %v1114 = vmul.f32 %v858, %v858
        %v1115 = vmul.f32 %v859, %v859
        %v1116 = vmul.f32 %v860, %v860
        %v1117 = vmul.f32 %v861, %v861
        %v1118 = vmul.f32 %v862, %v862
        %v1119 = vmul.f32 %v863, %v863
        %v1120 = vmul.f32 %v864, %v864
        %v1121 = vmul.f32 %v865, %v865
        %v1122 = vmul.f32 %v866, %v866
        %v1123 = vmul.f32 %v867, %v867
        %v1124 = vmul.f32 %v868, %v868
        %v1125 = vmul.f32 %v869, %v869
        %v1126 = vmul.f32 %v870, %v870
        %v1127 = vmul.f32 %v871, %v871
        %v1128 = vmul.f32 %v872, %v872
        %v1129 = vmul.f32 %v873, %v873
        %v1130 = vmul.f32 %v874, %v874
        %v1131 = vmul.f32 %v875, %v875
        %v1132 = vmul.f32 %v876, %v876
        %v1133 = vmul.f32 %v877, %v877
        %v1134 = vmul.f32 %v878, %v878
        %v1135 = vmul.f32 %v879, %v879
        %v1136 = vmul.f32 %v880, %v880
        %v1137 = vmul.f32 %v881, %v881
        %v1138 = vmul.f32 %v882, %v882
        %v1139 = vmul.f32 %v883, %v883
        %v1140 = vmul.f32 %v884, %v884
        %v1141 = vmul.f32 %v885, %v885
        %v1142 = vmul.f32 %v886, %v886
        %v1143 = vmul.f32 %v887, %v887
        %v1144 = vmul.f32 %v888, %v888
        %v1145 = vmul.f32 %v889, %v889
        %v1146 = vmul.f32 %v890, %v890
        %v1147 = vmul.f32 %v891, %v891
        %v1148 = vmul.f32 %v892, %v892
        %v1149 = vmul.f32 %v893, %v893
        %v1150 = vmul.f32 %v894, %v894
        %v1151 = vmul.f32 %v895, %v895
        %v1152 = vmul.f32 %v896, %v896
        %v1153 = vmul.f32 %v897, %v897
        %v1154 = vmul.f32 %v898, %v898
        %v1155 = vmul.f32 %v899, %v899
        %v1156 = vmul.f32 %v900, %v900
        %v1157 = vmul.f32 %v901, %v901
        %v1158 = vmul.f32 %v902, %v902
        %v1159 = vmul.f32 %v903, %v903
        %v1160 = vmul.f32 %v904, %v904
        %v1161 = vmul.f32 %v905, %v905
        %v1162 = vmul.f32 %v906, %v906
        %v1163 = vmul.f32 %v907, %v907
        %v1164 = vmul.f32 %v908, %v908
        %v1165 = vmul.f32 %v909, %v909
        %v1166 = vmul.f32 %v910, %v910
        %v1167 = vmul.f32 %v911, %v911
        %v1168 = vmul.f32 %v912, %v912
        %v1169 = vmul.f32 %v913, %v913
        %v1170 = vmul.f32 %v914, %v914
        %v1171 = vmul.f32 %v915, %v915
        %v1172 = vmul.f32 %v916, %v916
        %v1173 = vmul.f32 %v917, %v917
        %v1174 = vmul.f32 %v918, %v918
        %v1175 = vmul.f32 %v919, %v919
        %v1176 = vmul.f32 %v920, %v920
        %v1177 = vmul.f32 %v921, %v921
        %v1178 = vmul.f32 %v922, %v922
        %v1179 = vmul.f32 %v923, %v923
        %v1180 = vmul.f32 %v924, %v924
        %v1181 = vmul.f32 %v925, %v925
        %v1182 = vmul.f32 %v926, %v926
        %v1183 = vmul.f32 %v927, %v927
        %v1184 = vmul.f32 %v928, %v928
        %v1185 = vmul.f32 %v929, %v929
        %v1186 = vmul.f32 %v930, %v930
        %v1187 = vmul.f32 %v931, %v931
        %v1188 = vmul.f32 %v932, %v932
        %v1189 = vmul.f32 %v933, %v933
        %v1190 = vmul.f32 %v934, %v934
        %v1191 = vmul.f32 %v935, %v935
        %v1192 = vmul.f32 %v936, %v936
        %v1193 = vmul.f32 %v937, %v937
        %v1194 = vmul.f32 %v938, %v938
        %v1195 = vmul.f32 %v939, %v939
        %v1196 = vmul.f32 %v940, %v940
        %v1197 = vmul.f32 %v941, %v941
        %v1198 = vmul.f32 %v942, %v942
        %v1199 = vmul.f32 %v943, %v943
        %v1200 = vmul.f32 %v944, %v944
        %v1201 = vmul.f32 %v945, %v945
        %v1202 = vmul.f32 %v946, %v946
        %v1203 = vmul.f32 %v947, %v947
        %v1204 = vmul.f32 %v948, %v948
        %v1205 = vmul.f32 %v949, %v949
        %v1206 = vmul.f32 %v950, %v950
        %v1207 = vmul.f32 %v951, %v951
        %v1208 = vmul.f32 %v952, %v952
        %v1209 = vmul.f32 %v953, %v953
        %v1210 = vmul.f32 %v954, %v954
        %v1211 = vmul.f32 %v955, %v955
        %v1212 = vmul.f32 %v956, %v956
        %v1213 = vmul.f32 %v957, %v957
        %v1214 = vmul.f32 %v958, %v958
        %v1215 = vmul.f32 %v959, %v959
        %v1216 = vmul.f32 %v960, %v960
        %v1217 = vmul.f32 %v961, %v961
        %v1218 = vmul.f32 %v962, %v962
        %v1219 = vmul.f32 %v963, %v963
        %v1220 = vmul.f32 %v964, %v964
        %v1221 = vmul.f32 %v965, %v965
        %v1222 = vmul.f32 %v966, %v966
        %v1223 = vmul.f32 %v967, %v967
        %v1224 = vmul.f32 %v968, %v968
        %v1225 = vmul.f32 %v969, %v969
        %v1226 = vmul.f32 %v970, %v970
        %v1227 = vmul.f32 %v971, %v971
        %v1228 = vmul.f32 %v972, %v972
        %v1229 = vmul.f32 %v973, %v973
        %v1230 = vmul.f32 %v974, %v974
        %v1231 = vmul.f32 %v975, %v975
        %v1232 = vmul.f32 %v976, %v976
        %v1233 = vmul.f32 %v977, %v977
        %v1234 = vmul.f32 %v978, %v978
        %v1235 = vmul.f32 %v979, %v979
        %v1236 = vmul.f32 %v980, %v980
        %v1237 = vmul.f32 %v981, %v981
        %v1238 = vmul.f32 %v982, %v982
        %v1239 = vmul.f32 %v983, %v983
        %v1240 = vmul.f32 %v984, %v984
        %v1241 = vmul.f32 %v985, %v985
        %v1242 = vmul.f32 %v986, %v986
        %v1243 = vmul.f32 %v987, %v987
        %v1244 = vmul.f32 %v988, %v988
        %v1245 = vmul.f32 %v989, %v989
        %v1246 = vmul.f32 %v990, %v990
        %v1247 = vmul.f32 %v991, %v991
        %v1248 = vmul.f32 %v992, %v992
        %v1249 = vmul.f32 %v993, %v993
        %v1250 = vmul.f32 %v994, %v994
        %v1251 = vmul.f32 %v995, %v995
        %v1252 = vmul.f32 %v996, %v996
        %v1253 = vmul.f32 %v997, %v997
        %v1254 = vmul.f32 %v998, %v998
        %v1255 = vmul.f32 %v999, %v999
        %v1256 = vmul.f32 %v1000, %v1000
        %v1257 = vmul.f32 %v1001, %v1001
        %v1258 = vmul.f32 %v1002, %v1002
        %v1259 = vmul.f32 %v1003, %v1003
        %v1260 = vmul.f32 %v1004, %v1004
        %v1261 = vmul.f32 %v1005, %v1005
        %v1262 = vmul.f32 %v1006, %v1006
        %v1263 = vmul.f32 %v1007, %v1007
        %v1264 = vmul.f32 %v1008, %v1008
        %v1265 = vmul.f32 %v1009, %v1009
        %v1266 = vmul.f32 %v1010, %v1010
        %v1267 = vmul.f32 %v1011, %v1011
        %v1268 = vmul.f32 %v1012, %v1012
        %v1269 = vmul.f32 %v1013, %v1013
        %v1270 = vmul.f32 %v1014, %v1014
        %v1271 = vmul.f32 %v1015, %v1015
        %v1272 = vmul.f32 %v1016, %v1016
        %v1273 = vmul.f32 %v1017, %v1017
        %v1274 = vmul.f32 %v1018, %v1018
        %v1275 = vmul.f32 %v1019, %v1019
        %v1276 = vmul.f32 %v1020, %v1020
        %v1277 = vmul.f32 %v1021, %v1021
        %v1278 = vmul.f32 %v1022, %v1022
        %v1279 = vmul.f32 %v1023, %v1023
        %v1280 = vmul.f32 %v1024, %v1024
        %v1281 = vmul.f32 %v1025, %v1025
        %v1282 = vmul.f32 %v1026, %v1026
        %v1283 = vmul.f32 %v1027, %v1027
        %v1284 = vmul.f32 %v1028, %v1028
        %v1285 = vmul.f32 %v1029, %v1029
        %v1286 = vmul.f32 %v1030, %v1030
        %v1287 = vmul.f32 %v1031, %v1031
        %v1288 = vmul.f32 %v1032, %v1032
        %v1289 = vmul.f32 %v1033, %v1033
        %v1290 = vmul.f32 %v1034, %v1034
        %v1291 = vmul.f32 %v1035, %v1035
        %v1292 = vmul.f32 %v1036, %v1036
        %v1293 = vmul.f32 %v1037, %v1037
        %v1294 = vmul.f32 %v1038, %v1038
        %v1295 = vmul.f32 %v1039, %v1039
        %v1296 = vmul.f32 %v1040, %v1040
        %v1297 = vmul.f32 %v1041, %v1041
        %v1298 = vmul.f32 %v1042, %v1042
        %v1299 = vmul.f32 %v1043, %v1043
        %v1300 = vmul.f32 %v1044, %v1044
        %v1301 = vmul.f32 %v1045, %v1045
        %v1302 = vmul.f32 %v1046, %v1046
        %v1303 = vmul.f32 %v1047, %v1047
        %v1304 = vmul.f32 %v1048, %v1048
        %v1305 = vmul.f32 %v1049, %v1049
        %v1306 = vmul.f32 %v1050, %v1050
        %v1307 = vmul.f32 %v1051, %v1051
        %v1308 = vmul.f32 %v1052, %v1052
        %v1309 = vmul.f32 %v1053, %v1053
        %v1310 = vmul.f32 %v1054, %v1054
        %v1311 = vmul.f32 %v1055, %v1055
        %v1312 = vmul.f32 %v1056, %v1056
        %v1313 = vmul.f32 %v1057, %v1057
        %v1314 = vmul.f32 %v1058, %v1058
        %v1315 = vmul.f32 %v1059, %v1059
        %v1316 = vmul.f32 %v1060, %v1060
        %v1317 = vmul.f32 %v1061, %v1061
        %v1318 = vmul.f32 %v1062, %v1062
        %v1319 = vmul.f32 %v1063, %v1063
        %v1320 = vmul.f32 %v1064, %v1064
        %v1321 = vmul.f32 %v1065, %v1065
        %v1322 = vmul.f32 %v1066, %v1066
        %v1323 = vmul.f32 %v1067, %v1067
        %v1324 = vmul.f32 %v1068, %v1068
        %v1325 = vmul.f32 %v1069, %v1069
        %v1326 = vmul.f32 %v1070, %v1070
        %v1327 = vmul.f32 %v1071, %v1071
        %v1328 = vmul.f32 %v1072, %v1072
        %v1329 = vmul.f32 %v1073, %v1073
        %v1330 = vmul.f32 %v1074, %v1074
        %v1331 = vmul.f32 %v1075, %v1075
        %v1332 = vmul.f32 %v1076, %v1076
        %v1333 = vmul.f32 %v1077, %v1077
        %v1334 = vadd.f32 %v1078, %v1079
        %v1335 = vadd.f32 %v1334, %v1080
        %v1336 = vadd.f32 %v1335, %v1081
        %v1337 = vadd.f32 %v1336, %v1082
        %v1338 = vadd.f32 %v1337, %v1083
        %v1339 = vadd.f32 %v1338, %v1084
        %v1340 = vadd.f32 %v1339, %v1085
        %v1341 = vadd.f32 %v1340, %v1086
        %v1342 = vadd.f32 %v1341, %v1087
        %v1343 = vadd.f32 %v1342, %v1088
        %v1344 = vadd.f32 %v1343, %v1089
        %v1345 = vadd.f32 %v1344, %v1090
        %v1346 = vadd.f32 %v1345, %v1091
        %v1347 = vadd.f32 %v1346, %v1092
        %v1348 = vadd.f32 %v1347, %v1093
        %v1349 = vadd.f32 %v1348, %v1094
        %v1350 = vadd.f32 %v1349, %v1095
        %v1351 = vadd.f32 %v1350, %v1096
        %v1352 = vadd.f32 %v1351, %v1097
        %v1353 = vadd.f32 %v1352, %v1098
        %v1354 = vadd.f32 %v1353, %v1099
        %v1355 = vadd.f32 %v1354, %v1100
        %v1356 = vadd.f32 %v1355, %v1101
        %v1357 = vadd.f32 %v1356, %v1102
        %v1358 = vadd.f32 %v1357, %v1103
        %v1359 = vadd.f32 %v1358, %v1104
        %v1360 = vadd.f32 %v1359, %v1105
        %v1361 = vadd.f32 %v1360, %v1106
        %v1362 = vadd.f32 %v1361, %v1107
        %v1363 = vadd.f32 %v1362, %v1108
        %v1364 = vadd.f32 %v1363, %v1109
        %v1365 = vadd.f32 %v1364, %v1110
        %v1366 = vadd.f32 %v1365, %v1111
        %v1367 = vadd.f32 %v1366, %v1112
        %v1368 = vadd.f32 %v1367, %v1113
        %v1369 = vadd.f32 %v1368, %v1114
        %v1370 = vadd.f32 %v1369, %v1115
        %v1371 = vadd.f32 %v1370, %v1116
        %v1372 = vadd.f32 %v1371, %v1117
        %v1373 = vadd.f32 %v1372, %v1118
        %v1374 = vadd.f32 %v1373, %v1119
        %v1375 = vadd.f32 %v1374, %v1120
        %v1376 = vadd.f32 %v1375, %v1121
        %v1377 = vadd.f32 %v1376, %v1122
        %v1378 = vadd.f32 %v1377, %v1123
        %v1379 = vadd.f32 %v1378, %v1124
        %v1380 = vadd.f32 %v1379, %v1125
        %v1381 = vadd.f32 %v1380, %v1126
        %v1382 = vadd.f32 %v1381, %v1127
        %v1383 = vadd.f32 %v1382, %v1128
        %v1384 = vadd.f32 %v1383, %v1129
        %v1385 = vadd.f32 %v1384, %v1130
        %v1386 = vadd.f32 %v1385, %v1131
        %v1387 = vadd.f32 %v1386, %v1132
        %v1388 = vadd.f32 %v1387, %v1133
        %v1389 = vadd.f32 %v1388, %v1134
        %v1390 = vadd.f32 %v1389, %v1135
        %v1391 = vadd.f32 %v1390, %v1136
        %v1392 = vadd.f32 %v1391, %v1137
        %v1393 = vadd.f32 %v1392, %v1138
        %v1394 = vadd.f32 %v1393, %v1139
        %v1395 = vadd.f32 %v1394, %v1140
        %v1396 = vadd.f32 %v1395, %v1141
        %1397 = vadd.xlane.f32.xlu0 %v1396
        %v1398 = vpop.xlane.xlu0 %1397
        %v1399 = vadd.f32 %v1142, %v1143
        %v1400 = vadd.f32 %v1399, %v1144
        %v1401 = vadd.f32 %v1400, %v1145
        %v1402 = vadd.f32 %v1401, %v1146
        %v1403 = vadd.f32 %v1402, %v1147
        %v1404 = vadd.f32 %v1403, %v1148
        %v1405 = vadd.f32 %v1404, %v1149
        %v1406 = vadd.f32 %v1405, %v1150
        %v1407 = vadd.f32 %v1406, %v1151
        %v1408 = vadd.f32 %v1407, %v1152
        %v1409 = vadd.f32 %v1408, %v1153
        %v1410 = vadd.f32 %v1409, %v1154
        %v1411 = vadd.f32 %v1410, %v1155
        %v1412 = vadd.f32 %v1411, %v1156
        %v1413 = vadd.f32 %v1412, %v1157
        %v1414 = vadd.f32 %v1413, %v1158
        %v1415 = vadd.f32 %v1414, %v1159
        %v1416 = vadd.f32 %v1415, %v1160
        %v1417 = vadd.f32 %v1416, %v1161
        %v1418 = vadd.f32 %v1417, %v1162
        %v1419 = vadd.f32 %v1418, %v1163
        %v1420 = vadd.f32 %v1419, %v1164
        %v1421 = vadd.f32 %v1420, %v1165
        %v1422 = vadd.f32 %v1421, %v1166
        %v1423 = vadd.f32 %v1422, %v1167
        %v1424 = vadd.f32 %v1423, %v1168
        %v1425 = vadd.f32 %v1424, %v1169
        %v1426 = vadd.f32 %v1425, %v1170
        %v1427 = vadd.f32 %v1426, %v1171
        %v1428 = vadd.f32 %v1427, %v1172
        %v1429 = vadd.f32 %v1428, %v1173
        %v1430 = vadd.f32 %v1429, %v1174
        %v1431 = vadd.f32 %v1430, %v1175
        %v1432 = vadd.f32 %v1431, %v1176
        %v1433 = vadd.f32 %v1432, %v1177
        %v1434 = vadd.f32 %v1433, %v1178
        %v1435 = vadd.f32 %v1434, %v1179
        %v1436 = vadd.f32 %v1435, %v1180
        %v1437 = vadd.f32 %v1436, %v1181
        %v1438 = vadd.f32 %v1437, %v1182
        %v1439 = vadd.f32 %v1438, %v1183
        %v1440 = vadd.f32 %v1439, %v1184
        %v1441 = vadd.f32 %v1440, %v1185
        %v1442 = vadd.f32 %v1441, %v1186
        %v1443 = vadd.f32 %v1442, %v1187
        %v1444 = vadd.f32 %v1443, %v1188
        %v1445 = vadd.f32 %v1444, %v1189
        %v1446 = vadd.f32 %v1445, %v1190
        %v1447 = vadd.f32 %v1446, %v1191
        %v1448 = vadd.f32 %v1447, %v1192
        %v1449 = vadd.f32 %v1448, %v1193
        %v1450 = vadd.f32 %v1449, %v1194
        %v1451 = vadd.f32 %v1450, %v1195
        %v1452 = vadd.f32 %v1451, %v1196
        %v1453 = vadd.f32 %v1452, %v1197
        %v1454 = vadd.f32 %v1453, %v1198
        %v1455 = vadd.f32 %v1454, %v1199
        %v1456 = vadd.f32 %v1455, %v1200
        %v1457 = vadd.f32 %v1456, %v1201
        %v1458 = vadd.f32 %v1457, %v1202
        %v1459 = vadd.f32 %v1458, %v1203
        %v1460 = vadd.f32 %v1459, %v1204
        %v1461 = vadd.f32 %v1460, %v1205
        %1462 = vadd.xlane.f32.xlu0 %v1461
        %v1463 = vpop.xlane.xlu0 %1462
        %v1464 = vadd.f32 %v1206, %v1207
        %v1465 = vadd.f32 %v1464, %v1208
        %v1466 = vadd.f32 %v1465, %v1209
        %v1467 = vadd.f32 %v1466, %v1210
        %v1468 = vadd.f32 %v1467, %v1211
        %v1469 = vadd.f32 %v1468, %v1212
        %v1470 = vadd.f32 %v1469, %v1213
        %v1471 = vadd.f32 %v1470, %v1214
        %v1472 = vadd.f32 %v1471, %v1215
        %v1473 = vadd.f32 %v1472, %v1216
        %v1474 = vadd.f32 %v1473, %v1217
        %v1475 = vadd.f32 %v1474, %v1218
        %v1476 = vadd.f32 %v1475, %v1219
        %v1477 = vadd.f32 %v1476, %v1220
        %v1478 = vadd.f32 %v1477, %v1221
        %v1479 = vadd.f32 %v1478, %v1222
        %v1480 = vadd.f32 %v1479, %v1223
        %v1481 = vadd.f32 %v1480, %v1224
        %v1482 = vadd.f32 %v1481, %v1225
        %v1483 = vadd.f32 %v1482, %v1226
        %v1484 = vadd.f32 %v1483, %v1227
        %v1485 = vadd.f32 %v1484, %v1228
        %v1486 = vadd.f32 %v1485, %v1229
        %v1487 = vadd.f32 %v1486, %v1230
        %v1488 = vadd.f32 %v1487, %v1231
        %v1489 = vadd.f32 %v1488, %v1232
        %v1490 = vadd.f32 %v1489, %v1233
        %v1491 = vadd.f32 %v1490, %v1234
        %v1492 = vadd.f32 %v1491, %v1235
        %v1493 = vadd.f32 %v1492, %v1236
        %v1494 = vadd.f32 %v1493, %v1237
        %v1495 = vadd.f32 %v1494, %v1238
        %v1496 = vadd.f32 %v1495, %v1239
        %v1497 = vadd.f32 %v1496, %v1240
        %v1498 = vadd.f32 %v1497, %v1241
        %v1499 = vadd.f32 %v1498, %v1242
        %v1500 = vadd.f32 %v1499, %v1243
        %v1501 = vadd.f32 %v1500, %v1244
        %v1502 = vadd.f32 %v1501, %v1245
        %v1503 = vadd.f32 %v1502, %v1246
        %v1504 = vadd.f32 %v1503, %v1247
        %v1505 = vadd.f32 %v1504, %v1248
        %v1506 = vadd.f32 %v1505, %v1249
        %v1507 = vadd.f32 %v1506, %v1250
        %v1508 = vadd.f32 %v1507, %v1251
        %v1509 = vadd.f32 %v1508, %v1252
        %v1510 = vadd.f32 %v1509, %v1253
        %v1511 = vadd.f32 %v1510, %v1254
        %v1512 = vadd.f32 %v1511, %v1255
        %v1513 = vadd.f32 %v1512, %v1256
        %v1514 = vadd.f32 %v1513, %v1257
        %v1515 = vadd.f32 %v1514, %v1258
        %v1516 = vadd.f32 %v1515, %v1259
        %v1517 = vadd.f32 %v1516, %v1260
        %v1518 = vadd.f32 %v1517, %v1261
        %v1519 = vadd.f32 %v1518, %v1262
        %v1520 = vadd.f32 %v1519, %v1263
        %v1521 = vadd.f32 %v1520, %v1264
        %v1522 = vadd.f32 %v1521, %v1265
        %v1523 = vadd.f32 %v1522, %v1266
        %v1524 = vadd.f32 %v1523, %v1267
        %v1525 = vadd.f32 %v1524, %v1268
        %v1526 = vadd.f32 %v1525, %v1269
        %1527 = vadd.xlane.f32.xlu0 %v1526
        %v1528 = vpop.xlane.xlu0 %1527
        %v1529 = vadd.f32 %v1270, %v1271
        %v1530 = vadd.f32 %v1529, %v1272
        %v1531 = vadd.f32 %v1530, %v1273
        %v1532 = vadd.f32 %v1531, %v1274
        %v1533 = vadd.f32 %v1532, %v1275
        %v1534 = vadd.f32 %v1533, %v1276
        %v1535 = vadd.f32 %v1534, %v1277
        %v1536 = vadd.f32 %v1535, %v1278
        %v1537 = vadd.f32 %v1536, %v1279
        %v1538 = vadd.f32 %v1537, %v1280
        %v1539 = vadd.f32 %v1538, %v1281
        %v1540 = vadd.f32 %v1539, %v1282
        %v1541 = vadd.f32 %v1540, %v1283
        %v1542 = vadd.f32 %v1541, %v1284
        %v1543 = vadd.f32 %v1542, %v1285
        %v1544 = vadd.f32 %v1543, %v1286
        %v1545 = vadd.f32 %v1544, %v1287
        %v1546 = vadd.f32 %v1545, %v1288
        %v1547 = vadd.f32 %v1546, %v1289
        %v1548 = vadd.f32 %v1547, %v1290
        %v1549 = vadd.f32 %v1548, %v1291
        %v1550 = vadd.f32 %v1549, %v1292
        %v1551 = vadd.f32 %v1550, %v1293
        %v1552 = vadd.f32 %v1551, %v1294
        %v1553 = vadd.f32 %v1552, %v1295
        %v1554 = vadd.f32 %v1553, %v1296
        %v1555 = vadd.f32 %v1554, %v1297
        %v1556 = vadd.f32 %v1555, %v1298
        %v1557 = vadd.f32 %v1556, %v1299
        %v1558 = vadd.f32 %v1557, %v1300
        %v1559 = vadd.f32 %v1558, %v1301
        %v1560 = vadd.f32 %v1559, %v1302
        %v1561 = vadd.f32 %v1560, %v1303
        %v1562 = vadd.f32 %v1561, %v1304
        %v1563 = vadd.f32 %v1562, %v1305
        %v1564 = vadd.f32 %v1563, %v1306
        %v1565 = vadd.f32 %v1564, %v1307
        %v1566 = vadd.f32 %v1565, %v1308
        %v1567 = vadd.f32 %v1566, %v1309
        %v1568 = vadd.f32 %v1567, %v1310
        %v1569 = vadd.f32 %v1568, %v1311
        %v1570 = vadd.f32 %v1569, %v1312
        %v1571 = vadd.f32 %v1570, %v1313
        %v1572 = vadd.f32 %v1571, %v1314
        %v1573 = vadd.f32 %v1572, %v1315
        %v1574 = vadd.f32 %v1573, %v1316
        %v1575 = vadd.f32 %v1574, %v1317
        %v1576 = vadd.f32 %v1575, %v1318
        %v1577 = vadd.f32 %v1576, %v1319
        %v1578 = vadd.f32 %v1577, %v1320
        %v1579 = vadd.f32 %v1578, %v1321
        %v1580 = vadd.f32 %v1579, %v1322
        %v1581 = vadd.f32 %v1580, %v1323
        %v1582 = vadd.f32 %v1581, %v1324
        %v1583 = vadd.f32 %v1582, %v1325
        %v1584 = vadd.f32 %v1583, %v1326
        %v1585 = vadd.f32 %v1584, %v1327
        %v1586 = vadd.f32 %v1585, %v1328
        %v1587 = vadd.f32 %v1586, %v1329
        %v1588 = vadd.f32 %v1587, %v1330
        %v1589 = vadd.f32 %v1588, %v1331
        %v1590 = vadd.f32 %v1589, %v1332
        %v1591 = vadd.f32 %v1590, %v1333
        %1592 = vadd.xlane.f32.xlu0 %v1591
        %v1593 = vpop.xlane.xlu0 %1592
        %v1594 = vadd.f32 %v1398, 0.0
        %v1595 = vadd.f32 %v1463, 0.0
        %v1596 = vadd.f32 %v1528, 0.0
        %v1597 = vadd.f32 %v1593, 0.0
        %v1598 = vmul.f32 %v1594, 0.00012207031
        %v1599 = vmul.f32 %v1595, 0.00012207031
        %v1600 = vmul.f32 %v1596, 0.00012207031
        %v1601 = vmul.f32 %v1597, 0.00012207031
        %v1602 = vadd.f32 %v1598, 1e-05
        %v1603 = vadd.f32 %v1599, 1e-05
        %v1604 = vadd.f32 %v1600, 1e-05
        %v1605 = vadd.f32 %v1601, 1e-05
        %v1606 = vrsqrt.pop %v1602
        %v1607 = vrsqrt.pop %v1603
        %v1608 = vrsqrt.pop %v1604
        %v1609 = vrsqrt.pop %v1605
        %v1610 = vmul.f32 %v538, %v1606
        %v1611 = vmul.f32 %v539, %v1607
        %v1612 = vmul.f32 %v540, %v1608
        %v1613 = vmul.f32 %v541, %v1609
        %v1614 = vmul.f32 %v818, %v1610
        %v1615 = vmul.f32 %v819, %v1611
        %v1616 = vmul.f32 %v820, %v1612
        %v1617 = vmul.f32 %v821, %v1613
        %v1618 = vsub.f32 %v542, %v1614
        %v1619 = vsub.f32 %v543, %v1615
        %v1620 = vsub.f32 %v544, %v1616
        %v1621 = vsub.f32 %v545, %v1617
        %1623 = vset.pattern.permute.xlu0 0
        %1624 = vperm.xlu0 %1623, %v1610
        %v1625 = vpop.permute.xlu0 %1624
        %1628 = vset.pattern.permute.xlu0 0
        %1629 = vperm.xlu0 %1628, %v1611
        %v1630 = vpop.permute.xlu0 %1629
        %1633 = vset.pattern.permute.xlu0 0
        %1634 = vperm.xlu0 %1633, %v1612
        %v1635 = vpop.permute.xlu0 %1634
        %1638 = vset.pattern.permute.xlu0 0
        %1639 = vperm.xlu0 %1638, %v1613
        %v1640 = vpop.permute.xlu0 %1639
        %v1642 = vmul.f32 %v282, %v1625
        %v1643 = vmul.f32 %v283, %v1625
        %v1644 = vmul.f32 %v284, %v1625
        %v1645 = vmul.f32 %v285, %v1625
        %v1646 = vmul.f32 %v286, %v1625
        %v1647 = vmul.f32 %v287, %v1625
        %v1648 = vmul.f32 %v288, %v1625
        %v1649 = vmul.f32 %v289, %v1625
        %v1650 = vmul.f32 %v290, %v1625
        %v1651 = vmul.f32 %v291, %v1625
        %v1652 = vmul.f32 %v292, %v1625
        %v1653 = vmul.f32 %v293, %v1625
        %v1654 = vmul.f32 %v294, %v1625
        %v1655 = vmul.f32 %v295, %v1625
        %v1656 = vmul.f32 %v296, %v1625
        %v1657 = vmul.f32 %v297, %v1625
        %v1658 = vmul.f32 %v298, %v1625
        %v1659 = vmul.f32 %v299, %v1625
        %v1660 = vmul.f32 %v300, %v1625
        %v1661 = vmul.f32 %v301, %v1625
        %v1662 = vmul.f32 %v302, %v1625
        %v1663 = vmul.f32 %v303, %v1625
        %v1664 = vmul.f32 %v304, %v1625
        %v1665 = vmul.f32 %v305, %v1625
        %v1666 = vmul.f32 %v306, %v1625
        %v1667 = vmul.f32 %v307, %v1625
        %v1668 = vmul.f32 %v308, %v1625
        %v1669 = vmul.f32 %v309, %v1625
        %v1670 = vmul.f32 %v310, %v1625
        %v1671 = vmul.f32 %v311, %v1625
        %v1672 = vmul.f32 %v312, %v1625
        %v1673 = vmul.f32 %v313, %v1625
        %v1674 = vmul.f32 %v314, %v1625
        %v1675 = vmul.f32 %v315, %v1625
        %v1676 = vmul.f32 %v316, %v1625
        %v1677 = vmul.f32 %v317, %v1625
        %v1678 = vmul.f32 %v318, %v1625
        %v1679 = vmul.f32 %v319, %v1625
        %v1680 = vmul.f32 %v320, %v1625
        %v1681 = vmul.f32 %v321, %v1625
        %v1682 = vmul.f32 %v322, %v1625
        %v1683 = vmul.f32 %v323, %v1625
        %v1684 = vmul.f32 %v324, %v1625
        %v1685 = vmul.f32 %v325, %v1625
        %v1686 = vmul.f32 %v326, %v1625
        %v1687 = vmul.f32 %v327, %v1625
        %v1688 = vmul.f32 %v328, %v1625
        %v1689 = vmul.f32 %v329, %v1625
        %v1690 = vmul.f32 %v330, %v1625
        %v1691 = vmul.f32 %v331, %v1625
        %v1692 = vmul.f32 %v332, %v1625
        %v1693 = vmul.f32 %v333, %v1625
        %v1694 = vmul.f32 %v334, %v1625
        %v1695 = vmul.f32 %v335, %v1625
        %v1696 = vmul.f32 %v336, %v1625
        %v1697 = vmul.f32 %v337, %v1625
        %v1698 = vmul.f32 %v338, %v1625
        %v1699 = vmul.f32 %v339, %v1625
        %v1700 = vmul.f32 %v340, %v1625
        %v1701 = vmul.f32 %v341, %v1625
        %v1702 = vmul.f32 %v342, %v1625
        %v1703 = vmul.f32 %v343, %v1625
        %v1704 = vmul.f32 %v344, %v1625
        %v1705 = vmul.f32 %v345, %v1625
        %v1706 = vmul.f32 %v346, %v1630
        %v1707 = vmul.f32 %v347, %v1630
        %v1708 = vmul.f32 %v348, %v1630
        %v1709 = vmul.f32 %v349, %v1630
        %v1710 = vmul.f32 %v350, %v1630
        %v1711 = vmul.f32 %v351, %v1630
        %v1712 = vmul.f32 %v352, %v1630
        %v1713 = vmul.f32 %v353, %v1630
        %v1714 = vmul.f32 %v354, %v1630
        %v1715 = vmul.f32 %v355, %v1630
        %v1716 = vmul.f32 %v356, %v1630
        %v1717 = vmul.f32 %v357, %v1630
        %v1718 = vmul.f32 %v358, %v1630
        %v1719 = vmul.f32 %v359, %v1630
        %v1720 = vmul.f32 %v360, %v1630
        %v1721 = vmul.f32 %v361, %v1630
        %v1722 = vmul.f32 %v362, %v1630
        %v1723 = vmul.f32 %v363, %v1630
        %v1724 = vmul.f32 %v364, %v1630
        %v1725 = vmul.f32 %v365, %v1630
        %v1726 = vmul.f32 %v366, %v1630
        %v1727 = vmul.f32 %v367, %v1630
        %v1728 = vmul.f32 %v368, %v1630
        %v1729 = vmul.f32 %v369, %v1630
        %v1730 = vmul.f32 %v370, %v1630
        %v1731 = vmul.f32 %v371, %v1630
        %v1732 = vmul.f32 %v372, %v1630
        %v1733 = vmul.f32 %v373, %v1630
        %v1734 = vmul.f32 %v374, %v1630
        %v1735 = vmul.f32 %v375, %v1630
        %v1736 = vmul.f32 %v376, %v1630
        %v1737 = vmul.f32 %v377, %v1630
        %v1738 = vmul.f32 %v378, %v1630
        %v1739 = vmul.f32 %v379, %v1630
        %v1740 = vmul.f32 %v380, %v1630
        %v1741 = vmul.f32 %v381, %v1630
        %v1742 = vmul.f32 %v382, %v1630
        %v1743 = vmul.f32 %v383, %v1630
        %v1744 = vmul.f32 %v384, %v1630
        %v1745 = vmul.f32 %v385, %v1630
        %v1746 = vmul.f32 %v386, %v1630
        %v1747 = vmul.f32 %v387, %v1630
        %v1748 = vmul.f32 %v388, %v1630
        %v1749 = vmul.f32 %v389, %v1630
        %v1750 = vmul.f32 %v390, %v1630
        %v1751 = vmul.f32 %v391, %v1630
        %v1752 = vmul.f32 %v392, %v1630
        %v1753 = vmul.f32 %v393, %v1630
        %v1754 = vmul.f32 %v394, %v1630
        %v1755 = vmul.f32 %v395, %v1630
        %v1756 = vmul.f32 %v396, %v1630
        %v1757 = vmul.f32 %v397, %v1630
        %v1758 = vmul.f32 %v398, %v1630
        %v1759 = vmul.f32 %v399, %v1630
        %v1760 = vmul.f32 %v400, %v1630
        %v1761 = vmul.f32 %v401, %v1630
        %v1762 = vmul.f32 %v402, %v1630
        %v1763 = vmul.f32 %v403, %v1630
        %v1764 = vmul.f32 %v404, %v1630
        %v1765 = vmul.f32 %v405, %v1630
        %v1766 = vmul.f32 %v406, %v1630
        %v1767 = vmul.f32 %v407, %v1630
        %v1768 = vmul.f32 %v408, %v1630
        %v1769 = vmul.f32 %v409, %v1630
        %v1770 = vmul.f32 %v410, %v1635
        %v1771 = vmul.f32 %v411, %v1635
        %v1772 = vmul.f32 %v412, %v1635
        %v1773 = vmul.f32 %v413, %v1635
        %v1774 = vmul.f32 %v414, %v1635
        %v1775 = vmul.f32 %v415, %v1635
        %v1776 = vmul.f32 %v416, %v1635
        %v1777 = vmul.f32 %v417, %v1635
        %v1778 = vmul.f32 %v418, %v1635
        %v1779 = vmul.f32 %v419, %v1635
        %v1780 = vmul.f32 %v420, %v1635
        %v1781 = vmul.f32 %v421, %v1635
        %v1782 = vmul.f32 %v422, %v1635
        %v1783 = vmul.f32 %v423, %v1635
        %v1784 = vmul.f32 %v424, %v1635
        %v1785 = vmul.f32 %v425, %v1635
        %v1786 = vmul.f32 %v426, %v1635
        %v1787 = vmul.f32 %v427, %v1635
        %v1788 = vmul.f32 %v428, %v1635
        %v1789 = vmul.f32 %v429, %v1635
        %v1790 = vmul.f32 %v430, %v1635
        %v1791 = vmul.f32 %v431, %v1635
        %v1792 = vmul.f32 %v432, %v1635
        %v1793 = vmul.f32 %v433, %v1635
        %v1794 = vmul.f32 %v434, %v1635
        %v1795 = vmul.f32 %v435, %v1635
        %v1796 = vmul.f32 %v436, %v1635
        %v1797 = vmul.f32 %v437, %v1635
        %v1798 = vmul.f32 %v438, %v1635
        %v1799 = vmul.f32 %v439, %v1635
        %v1800 = vmul.f32 %v440, %v1635
        %v1801 = vmul.f32 %v441, %v1635
        %v1802 = vmul.f32 %v442, %v1635
        %v1803 = vmul.f32 %v443, %v1635
        %v1804 = vmul.f32 %v444, %v1635
        %v1805 = vmul.f32 %v445, %v1635
        %v1806 = vmul.f32 %v446, %v1635
        %v1807 = vmul.f32 %v447, %v1635
        %v1808 = vmul.f32 %v448, %v1635
        %v1809 = vmul.f32 %v449, %v1635
        %v1810 = vmul.f32 %v450, %v1635
        %v1811 = vmul.f32 %v451, %v1635
        %v1812 = vmul.f32 %v452, %v1635
        %v1813 = vmul.f32 %v453, %v1635
        %v1814 = vmul.f32 %v454, %v1635
        %v1815 = vmul.f32 %v455, %v1635
        %v1816 = vmul.f32 %v456, %v1635
        %v1817 = vmul.f32 %v457, %v1635
        %v1818 = vmul.f32 %v458, %v1635
        %v1819 = vmul.f32 %v459, %v1635
        %v1820 = vmul.f32 %v460, %v1635
        %v1821 = vmul.f32 %v461, %v1635
        %v1822 = vmul.f32 %v462, %v1635
        %v1823 = vmul.f32 %v463, %v1635
        %v1824 = vmul.f32 %v464, %v1635
        %v1825 = vmul.f32 %v465, %v1635
        %v1826 = vmul.f32 %v466, %v1635
        %v1827 = vmul.f32 %v467, %v1635
        %v1828 = vmul.f32 %v468, %v1635
        %v1829 = vmul.f32 %v469, %v1635
        %v1830 = vmul.f32 %v470, %v1635
        %v1831 = vmul.f32 %v471, %v1635
        %v1832 = vmul.f32 %v472, %v1635
        %v1833 = vmul.f32 %v473, %v1635
        %v1834 = vmul.f32 %v474, %v1640
        %v1835 = vmul.f32 %v475, %v1640
        %v1836 = vmul.f32 %v476, %v1640
        %v1837 = vmul.f32 %v477, %v1640
        %v1838 = vmul.f32 %v478, %v1640
        %v1839 = vmul.f32 %v479, %v1640
        %v1840 = vmul.f32 %v480, %v1640
        %v1841 = vmul.f32 %v481, %v1640
        %v1842 = vmul.f32 %v482, %v1640
        %v1843 = vmul.f32 %v483, %v1640
        %v1844 = vmul.f32 %v484, %v1640
        %v1845 = vmul.f32 %v485, %v1640
        %v1846 = vmul.f32 %v486, %v1640
        %v1847 = vmul.f32 %v487, %v1640
        %v1848 = vmul.f32 %v488, %v1640
        %v1849 = vmul.f32 %v489, %v1640
        %v1850 = vmul.f32 %v490, %v1640
        %v1851 = vmul.f32 %v491, %v1640
        %v1852 = vmul.f32 %v492, %v1640
        %v1853 = vmul.f32 %v493, %v1640
        %v1854 = vmul.f32 %v494, %v1640
        %v1855 = vmul.f32 %v495, %v1640
        %v1856 = vmul.f32 %v496, %v1640
        %v1857 = vmul.f32 %v497, %v1640
        %v1858 = vmul.f32 %v498, %v1640
        %v1859 = vmul.f32 %v499, %v1640
        %v1860 = vmul.f32 %v500, %v1640
        %v1861 = vmul.f32 %v501, %v1640
        %v1862 = vmul.f32 %v502, %v1640
        %v1863 = vmul.f32 %v503, %v1640
        %v1864 = vmul.f32 %v504, %v1640
        %v1865 = vmul.f32 %v505, %v1640
        %v1866 = vmul.f32 %v506, %v1640
        %v1867 = vmul.f32 %v507, %v1640
        %v1868 = vmul.f32 %v508, %v1640
        %v1869 = vmul.f32 %v509, %v1640
        %v1870 = vmul.f32 %v510, %v1640
        %v1871 = vmul.f32 %v511, %v1640
        %v1872 = vmul.f32 %v512, %v1640
        %v1873 = vmul.f32 %v513, %v1640
        %v1874 = vmul.f32 %v514, %v1640
        %v1875 = vmul.f32 %v515, %v1640
        %v1876 = vmul.f32 %v516, %v1640
        %v1877 = vmul.f32 %v517, %v1640
        %v1878 = vmul.f32 %v518, %v1640
        %v1879 = vmul.f32 %v519, %v1640
        %v1880 = vmul.f32 %v520, %v1640
        %v1881 = vmul.f32 %v521, %v1640
        %v1882 = vmul.f32 %v522, %v1640
        %v1883 = vmul.f32 %v523, %v1640
        %v1884 = vmul.f32 %v524, %v1640
        %v1885 = vmul.f32 %v525, %v1640
        %v1886 = vmul.f32 %v526, %v1640
        %v1887 = vmul.f32 %v527, %v1640
        %v1888 = vmul.f32 %v528, %v1640
        %v1889 = vmul.f32 %v529, %v1640
        %v1890 = vmul.f32 %v530, %v1640
        %v1891 = vmul.f32 %v531, %v1640
        %v1892 = vmul.f32 %v532, %v1640
        %v1893 = vmul.f32 %v533, %v1640
        %v1894 = vmul.f32 %v534, %v1640
        %v1895 = vmul.f32 %v535, %v1640
        %v1896 = vmul.f32 %v536, %v1640
        %v1897 = vmul.f32 %v537, %v1640
        %1899 = vset.pattern.permute.xlu0 0
        %1900 = vperm.xlu0 %1899, %v1618
        %v1901 = vpop.permute.xlu0 %1900
        %1904 = vset.pattern.permute.xlu0 0
        %1905 = vperm.xlu0 %1904, %v1619
        %v1906 = vpop.permute.xlu0 %1905
        %1909 = vset.pattern.permute.xlu0 0
        %1910 = vperm.xlu0 %1909, %v1620
        %v1911 = vpop.permute.xlu0 %1910
        %1914 = vset.pattern.permute.xlu0 0
        %1915 = vperm.xlu0 %1914, %v1621
        %v1916 = vpop.permute.xlu0 %1915
        %v1918 = vadd.f32 %v1642, %v1901
        %v1919 = vadd.f32 %v1643, %v1901
        %v1920 = vadd.f32 %v1644, %v1901
        %v1921 = vadd.f32 %v1645, %v1901
        %v1922 = vadd.f32 %v1646, %v1901
        %v1923 = vadd.f32 %v1647, %v1901
        %v1924 = vadd.f32 %v1648, %v1901
        %v1925 = vadd.f32 %v1649, %v1901
        %v1926 = vadd.f32 %v1650, %v1901
        %v1927 = vadd.f32 %v1651, %v1901
        %v1928 = vadd.f32 %v1652, %v1901
        %v1929 = vadd.f32 %v1653, %v1901
        %v1930 = vadd.f32 %v1654, %v1901
        %v1931 = vadd.f32 %v1655, %v1901
        %v1932 = vadd.f32 %v1656, %v1901
        %v1933 = vadd.f32 %v1657, %v1901
        %v1934 = vadd.f32 %v1658, %v1901
        %v1935 = vadd.f32 %v1659, %v1901
        %v1936 = vadd.f32 %v1660, %v1901
        %v1937 = vadd.f32 %v1661, %v1901
        %v1938 = vadd.f32 %v1662, %v1901
        %v1939 = vadd.f32 %v1663, %v1901
        %v1940 = vadd.f32 %v1664, %v1901
        %v1941 = vadd.f32 %v1665, %v1901
        %v1942 = vadd.f32 %v1666, %v1901
        %v1943 = vadd.f32 %v1667, %v1901
        %v1944 = vadd.f32 %v1668, %v1901
        %v1945 = vadd.f32 %v1669, %v1901
        %v1946 = vadd.f32 %v1670, %v1901
        %v1947 = vadd.f32 %v1671, %v1901
        %v1948 = vadd.f32 %v1672, %v1901
        %v1949 = vadd.f32 %v1673, %v1901
        %v1950 = vadd.f32 %v1674, %v1901
        %v1951 = vadd.f32 %v1675, %v1901
        %v1952 = vadd.f32 %v1676, %v1901
        %v1953 = vadd.f32 %v1677, %v1901
        %v1954 = vadd.f32 %v1678, %v1901
        %v1955 = vadd.f32 %v1679, %v1901
        %v1956 = vadd.f32 %v1680, %v1901
        %v1957 = vadd.f32 %v1681, %v1901
        %v1958 = vadd.f32 %v1682, %v1901
        %v1959 = vadd.f32 %v1683, %v1901
        %v1960 = vadd.f32 %v1684, %v1901
        %v1961 = vadd.f32 %v1685, %v1901
        %v1962 = vadd.f32 %v1686, %v1901
        %v1963 = vadd.f32 %v1687, %v1901
        %v1964 = vadd.f32 %v1688, %v1901
        %v1965 = vadd.f32 %v1689, %v1901
        %v1966 = vadd.f32 %v1690, %v1901
        %v1967 = vadd.f32 %v1691, %v1901
        %v1968 = vadd.f32 %v1692, %v1901
        %v1969 = vadd.f32 %v1693, %v1901
        %v1970 = vadd.f32 %v1694, %v1901
        %v1971 = vadd.f32 %v1695, %v1901
        %v1972 = vadd.f32 %v1696, %v1901
        %v1973 = vadd.f32 %v1697, %v1901
        %v1974 = vadd.f32 %v1698, %v1901
        %v1975 = vadd.f32 %v1699, %v1901
        %v1976 = vadd.f32 %v1700, %v1901
        %v1977 = vadd.f32 %v1701, %v1901
        %v1978 = vadd.f32 %v1702, %v1901
        %v1979 = vadd.f32 %v1703, %v1901
        %v1980 = vadd.f32 %v1704, %v1901
        %v1981 = vadd.f32 %v1705, %v1901
        %v1982 = vadd.f32 %v1706, %v1906
        %v1983 = vadd.f32 %v1707, %v1906
        %v1984 = vadd.f32 %v1708, %v1906
        %v1985 = vadd.f32 %v1709, %v1906
        %v1986 = vadd.f32 %v1710, %v1906
        %v1987 = vadd.f32 %v1711, %v1906
        %v1988 = vadd.f32 %v1712, %v1906
        %v1989 = vadd.f32 %v1713, %v1906
        %v1990 = vadd.f32 %v1714, %v1906
        %v1991 = vadd.f32 %v1715, %v1906
        %v1992 = vadd.f32 %v1716, %v1906
        %v1993 = vadd.f32 %v1717, %v1906
        %v1994 = vadd.f32 %v1718, %v1906
        %v1995 = vadd.f32 %v1719, %v1906
        %v1996 = vadd.f32 %v1720, %v1906
        %v1997 = vadd.f32 %v1721, %v1906
        %v1998 = vadd.f32 %v1722, %v1906
        %v1999 = vadd.f32 %v1723, %v1906
        %v2000 = vadd.f32 %v1724, %v1906
        %v2001 = vadd.f32 %v1725, %v1906
        %v2002 = vadd.f32 %v1726, %v1906
        %v2003 = vadd.f32 %v1727, %v1906
        %v2004 = vadd.f32 %v1728, %v1906
        %v2005 = vadd.f32 %v1729, %v1906
        %v2006 = vadd.f32 %v1730, %v1906
        %v2007 = vadd.f32 %v1731, %v1906
        %v2008 = vadd.f32 %v1732, %v1906
        %v2009 = vadd.f32 %v1733, %v1906
        %v2010 = vadd.f32 %v1734, %v1906
        %v2011 = vadd.f32 %v1735, %v1906
        %v2012 = vadd.f32 %v1736, %v1906
        %v2013 = vadd.f32 %v1737, %v1906
        %v2014 = vadd.f32 %v1738, %v1906
        %v2015 = vadd.f32 %v1739, %v1906
        %v2016 = vadd.f32 %v1740, %v1906
        %v2017 = vadd.f32 %v1741, %v1906
        %v2018 = vadd.f32 %v1742, %v1906
        %v2019 = vadd.f32 %v1743, %v1906
        %v2020 = vadd.f32 %v1744, %v1906
        %v2021 = vadd.f32 %v1745, %v1906
        %v2022 = vadd.f32 %v1746, %v1906
        %v2023 = vadd.f32 %v1747, %v1906
        %v2024 = vadd.f32 %v1748, %v1906
        %v2025 = vadd.f32 %v1749, %v1906
        %v2026 = vadd.f32 %v1750, %v1906
        %v2027 = vadd.f32 %v1751, %v1906
        %v2028 = vadd.f32 %v1752, %v1906
        %v2029 = vadd.f32 %v1753, %v1906
        %v2030 = vadd.f32 %v1754, %v1906
        %v2031 = vadd.f32 %v1755, %v1906
        %v2032 = vadd.f32 %v1756, %v1906
        %v2033 = vadd.f32 %v1757, %v1906
        %v2034 = vadd.f32 %v1758, %v1906
        %v2035 = vadd.f32 %v1759, %v1906
        %v2036 = vadd.f32 %v1760, %v1906
        %v2037 = vadd.f32 %v1761, %v1906
        %v2038 = vadd.f32 %v1762, %v1906
        %v2039 = vadd.f32 %v1763, %v1906
        %v2040 = vadd.f32 %v1764, %v1906
        %v2041 = vadd.f32 %v1765, %v1906
        %v2042 = vadd.f32 %v1766, %v1906
        %v2043 = vadd.f32 %v1767, %v1906
        %v2044 = vadd.f32 %v1768, %v1906
        %v2045 = vadd.f32 %v1769, %v1906
        %v2046 = vadd.f32 %v1770, %v1911
        %v2047 = vadd.f32 %v1771, %v1911
        %v2048 = vadd.f32 %v1772, %v1911
        %v2049 = vadd.f32 %v1773, %v1911
        %v2050 = vadd.f32 %v1774, %v1911
        %v2051 = vadd.f32 %v1775, %v1911
        %v2052 = vadd.f32 %v1776, %v1911
        %v2053 = vadd.f32 %v1777, %v1911
        %v2054 = vadd.f32 %v1778, %v1911
        %v2055 = vadd.f32 %v1779, %v1911
        %v2056 = vadd.f32 %v1780, %v1911
        %v2057 = vadd.f32 %v1781, %v1911
        %v2058 = vadd.f32 %v1782, %v1911
        %v2059 = vadd.f32 %v1783, %v1911
        %v2060 = vadd.f32 %v1784, %v1911
        %v2061 = vadd.f32 %v1785, %v1911
        %v2062 = vadd.f32 %v1786, %v1911
        %v2063 = vadd.f32 %v1787, %v1911
        %v2064 = vadd.f32 %v1788, %v1911
        %v2065 = vadd.f32 %v1789, %v1911
        %v2066 = vadd.f32 %v1790, %v1911
        %v2067 = vadd.f32 %v1791, %v1911
        %v2068 = vadd.f32 %v1792, %v1911
        %v2069 = vadd.f32 %v1793, %v1911
        %v2070 = vadd.f32 %v1794, %v1911
        %v2071 = vadd.f32 %v1795, %v1911
        %v2072 = vadd.f32 %v1796, %v1911
        %v2073 = vadd.f32 %v1797, %v1911
        %v2074 = vadd.f32 %v1798, %v1911
        %v2075 = vadd.f32 %v1799, %v1911
        %v2076 = vadd.f32 %v1800, %v1911
        %v2077 = vadd.f32 %v1801, %v1911
        %v2078 = vadd.f32 %v1802, %v1911
        %v2079 = vadd.f32 %v1803, %v1911
        %v2080 = vadd.f32 %v1804, %v1911
        %v2081 = vadd.f32 %v1805, %v1911
        %v2082 = vadd.f32 %v1806, %v1911
        %v2083 = vadd.f32 %v1807, %v1911
        %v2084 = vadd.f32 %v1808, %v1911
        %v2085 = vadd.f32 %v1809, %v1911
        %v2086 = vadd.f32 %v1810, %v1911
        %v2087 = vadd.f32 %v1811, %v1911
        %v2088 = vadd.f32 %v1812, %v1911
        %v2089 = vadd.f32 %v1813, %v1911
        %v2090 = vadd.f32 %v1814, %v1911
        %v2091 = vadd.f32 %v1815, %v1911
        %v2092 = vadd.f32 %v1816, %v1911
        %v2093 = vadd.f32 %v1817, %v1911
        %v2094 = vadd.f32 %v1818, %v1911
        %v2095 = vadd.f32 %v1819, %v1911
        %v2096 = vadd.f32 %v1820, %v1911
        %v2097 = vadd.f32 %v1821, %v1911
        %v2098 = vadd.f32 %v1822, %v1911
        %v2099 = vadd.f32 %v1823, %v1911
        %v2100 = vadd.f32 %v1824, %v1911
        %v2101 = vadd.f32 %v1825, %v1911
        %v2102 = vadd.f32 %v1826, %v1911
        %v2103 = vadd.f32 %v1827, %v1911
        %v2104 = vadd.f32 %v1828, %v1911
        %v2105 = vadd.f32 %v1829, %v1911
        %v2106 = vadd.f32 %v1830, %v1911
        %v2107 = vadd.f32 %v1831, %v1911
        %v2108 = vadd.f32 %v1832, %v1911
        %v2109 = vadd.f32 %v1833, %v1911
        %v2110 = vadd.f32 %v1834, %v1916
        %v2111 = vadd.f32 %v1835, %v1916
        %v2112 = vadd.f32 %v1836, %v1916
        %v2113 = vadd.f32 %v1837, %v1916
        %v2114 = vadd.f32 %v1838, %v1916
        %v2115 = vadd.f32 %v1839, %v1916
        %v2116 = vadd.f32 %v1840, %v1916
        %v2117 = vadd.f32 %v1841, %v1916
        %v2118 = vadd.f32 %v1842, %v1916
        %v2119 = vadd.f32 %v1843, %v1916
        %v2120 = vadd.f32 %v1844, %v1916
        %v2121 = vadd.f32 %v1845, %v1916
        %v2122 = vadd.f32 %v1846, %v1916
        %v2123 = vadd.f32 %v1847, %v1916
        %v2124 = vadd.f32 %v1848, %v1916
        %v2125 = vadd.f32 %v1849, %v1916
        %v2126 = vadd.f32 %v1850, %v1916
        %v2127 = vadd.f32 %v1851, %v1916
        %v2128 = vadd.f32 %v1852, %v1916
        %v2129 = vadd.f32 %v1853, %v1916
        %v2130 = vadd.f32 %v1854, %v1916
        %v2131 = vadd.f32 %v1855, %v1916
        %v2132 = vadd.f32 %v1856, %v1916
        %v2133 = vadd.f32 %v1857, %v1916
        %v2134 = vadd.f32 %v1858, %v1916
        %v2135 = vadd.f32 %v1859, %v1916
        %v2136 = vadd.f32 %v1860, %v1916
        %v2137 = vadd.f32 %v1861, %v1916
        %v2138 = vadd.f32 %v1862, %v1916
        %v2139 = vadd.f32 %v1863, %v1916
        %v2140 = vadd.f32 %v1864, %v1916
        %v2141 = vadd.f32 %v1865, %v1916
        %v2142 = vadd.f32 %v1866, %v1916
        %v2143 = vadd.f32 %v1867, %v1916
        %v2144 = vadd.f32 %v1868, %v1916
        %v2145 = vadd.f32 %v1869, %v1916
        %v2146 = vadd.f32 %v1870, %v1916
        %v2147 = vadd.f32 %v1871, %v1916
        %v2148 = vadd.f32 %v1872, %v1916
        %v2149 = vadd.f32 %v1873, %v1916
        %v2150 = vadd.f32 %v1874, %v1916
        %v2151 = vadd.f32 %v1875, %v1916
        %v2152 = vadd.f32 %v1876, %v1916
        %v2153 = vadd.f32 %v1877, %v1916
        %v2154 = vadd.f32 %v1878, %v1916
        %v2155 = vadd.f32 %v1879, %v1916
        %v2156 = vadd.f32 %v1880, %v1916
        %v2157 = vadd.f32 %v1881, %v1916
        %v2158 = vadd.f32 %v1882, %v1916
        %v2159 = vadd.f32 %v1883, %v1916
        %v2160 = vadd.f32 %v1884, %v1916
        %v2161 = vadd.f32 %v1885, %v1916
        %v2162 = vadd.f32 %v1886, %v1916
        %v2163 = vadd.f32 %v1887, %v1916
        %v2164 = vadd.f32 %v1888, %v1916
        %v2165 = vadd.f32 %v1889, %v1916
        %v2166 = vadd.f32 %v1890, %v1916
        %v2167 = vadd.f32 %v1891, %v1916
        %v2168 = vadd.f32 %v1892, %v1916
        %v2169 = vadd.f32 %v1893, %v1916
        %v2170 = vadd.f32 %v1894, %v1916
        %v2171 = vadd.f32 %v1895, %v1916
        %v2172 = vadd.f32 %v1896, %v1916
        %v2173 = vadd.f32 %v1897, %v1916
        %v2174 = vtanh.pop %v1918
        %v2175 = vtanh.pop %v1919
        %v2176 = vtanh.pop %v1920
        %v2177 = vtanh.pop %v1921
        %v2178 = vtanh.pop %v1922
        %v2179 = vtanh.pop %v1923
        %v2180 = vtanh.pop %v1924
        %v2181 = vtanh.pop %v1925
        %v2182 = vtanh.pop %v1926
        %v2183 = vtanh.pop %v1927
        %v2184 = vtanh.pop %v1928
        %v2185 = vtanh.pop %v1929
        %v2186 = vtanh.pop %v1930
        %v2187 = vtanh.pop %v1931
        %v2188 = vtanh.pop %v1932
        %v2189 = vtanh.pop %v1933
        %v2190 = vtanh.pop %v1934
        %v2191 = vtanh.pop %v1935
        %v2192 = vtanh.pop %v1936
        %v2193 = vtanh.pop %v1937
        %v2194 = vtanh.pop %v1938
        %v2195 = vtanh.pop %v1939
        %v2196 = vtanh.pop %v1940
        %v2197 = vtanh.pop %v1941
        %v2198 = vtanh.pop %v1942
        %v2199 = vtanh.pop %v1943
        %v2200 = vtanh.pop %v1944
        %v2201 = vtanh.pop %v1945
        %v2202 = vtanh.pop %v1946
        %v2203 = vtanh.pop %v1947
        %v2204 = vtanh.pop %v1948
        %v2205 = vtanh.pop %v1949
        %v2206 = vtanh.pop %v1950
        %v2207 = vtanh.pop %v1951
        %v2208 = vtanh.pop %v1952
        %v2209 = vtanh.pop %v1953
        %v2210 = vtanh.pop %v1954
        %v2211 = vtanh.pop %v1955
        %v2212 = vtanh.pop %v1956
        %v2213 = vtanh.pop %v1957
        %v2214 = vtanh.pop %v1958
        %v2215 = vtanh.pop %v1959
        %v2216 = vtanh.pop %v1960
        %v2217 = vtanh.pop %v1961
        %v2218 = vtanh.pop %v1962
        %v2219 = vtanh.pop %v1963
        %v2220 = vtanh.pop %v1964
        %v2221 = vtanh.pop %v1965
        %v2222 = vtanh.pop %v1966
        %v2223 = vtanh.pop %v1967
        %v2224 = vtanh.pop %v1968
        %v2225 = vtanh.pop %v1969
        %v2226 = vtanh.pop %v1970
        %v2227 = vtanh.pop %v1971
        %v2228 = vtanh.pop %v1972
        %v2229 = vtanh.pop %v1973
        %v2230 = vtanh.pop %v1974
        %v2231 = vtanh.pop %v1975
        %v2232 = vtanh.pop %v1976
        %v2233 = vtanh.pop %v1977
        %v2234 = vtanh.pop %v1978
        %v2235 = vtanh.pop %v1979
        %v2236 = vtanh.pop %v1980
        %v2237 = vtanh.pop %v1981
        %v2238 = vtanh.pop %v1982
        %v2239 = vtanh.pop %v1983
        %v2240 = vtanh.pop %v1984
        %v2241 = vtanh.pop %v1985
        %v2242 = vtanh.pop %v1986
        %v2243 = vtanh.pop %v1987
        %v2244 = vtanh.pop %v1988
        %v2245 = vtanh.pop %v1989
        %v2246 = vtanh.pop %v1990
        %v2247 = vtanh.pop %v1991
        %v2248 = vtanh.pop %v1992
        %v2249 = vtanh.pop %v1993
        %v2250 = vtanh.pop %v1994
        %v2251 = vtanh.pop %v1995
        %v2252 = vtanh.pop %v1996
        %v2253 = vtanh.pop %v1997
        %v2254 = vtanh.pop %v1998
        %v2255 = vtanh.pop %v1999
        %v2256 = vtanh.pop %v2000
        %v2257 = vtanh.pop %v2001
        %v2258 = vtanh.pop %v2002
        %v2259 = vtanh.pop %v2003
        %v2260 = vtanh.pop %v2004
        %v2261 = vtanh.pop %v2005
        %v2262 = vtanh.pop %v2006
        %v2263 = vtanh.pop %v2007
        %v2264 = vtanh.pop %v2008
        %v2265 = vtanh.pop %v2009
        %v2266 = vtanh.pop %v2010
        %v2267 = vtanh.pop %v2011
        %v2268 = vtanh.pop %v2012
        %v2269 = vtanh.pop %v2013
        %v2270 = vtanh.pop %v2014
        %v2271 = vtanh.pop %v2015
        %v2272 = vtanh.pop %v2016
        %v2273 = vtanh.pop %v2017
        %v2274 = vtanh.pop %v2018
        %v2275 = vtanh.pop %v2019
        %v2276 = vtanh.pop %v2020
        %v2277 = vtanh.pop %v2021
        %v2278 = vtanh.pop %v2022
        %v2279 = vtanh.pop %v2023
        %v2280 = vtanh.pop %v2024
        %v2281 = vtanh.pop %v2025
        %v2282 = vtanh.pop %v2026
        %v2283 = vtanh.pop %v2027
        %v2284 = vtanh.pop %v2028
        %v2285 = vtanh.pop %v2029
        %v2286 = vtanh.pop %v2030
        %v2287 = vtanh.pop %v2031
        %v2288 = vtanh.pop %v2032
        %v2289 = vtanh.pop %v2033
        %v2290 = vtanh.pop %v2034
        %v2291 = vtanh.pop %v2035
        %v2292 = vtanh.pop %v2036
        %v2293 = vtanh.pop %v2037
        %v2294 = vtanh.pop %v2038
        %v2295 = vtanh.pop %v2039
        %v2296 = vtanh.pop %v2040
        %v2297 = vtanh.pop %v2041
        %v2298 = vtanh.pop %v2042
        %v2299 = vtanh.pop %v2043
        %v2300 = vtanh.pop %v2044
        %v2301 = vtanh.pop %v2045
        %v2302 = vtanh.pop %v2046
        %v2303 = vtanh.pop %v2047
        %v2304 = vtanh.pop %v2048
        %v2305 = vtanh.pop %v2049
        %v2306 = vtanh.pop %v2050
        %v2307 = vtanh.pop %v2051
        %v2308 = vtanh.pop %v2052
        %v2309 = vtanh.pop %v2053
        %v2310 = vtanh.pop %v2054
        %v2311 = vtanh.pop %v2055
        %v2312 = vtanh.pop %v2056
        %v2313 = vtanh.pop %v2057
        %v2314 = vtanh.pop %v2058
        %v2315 = vtanh.pop %v2059
        %v2316 = vtanh.pop %v2060
        %v2317 = vtanh.pop %v2061
        %v2318 = vtanh.pop %v2062
        %v2319 = vtanh.pop %v2063
        %v2320 = vtanh.pop %v2064
        %v2321 = vtanh.pop %v2065
        %v2322 = vtanh.pop %v2066
        %v2323 = vtanh.pop %v2067
        %v2324 = vtanh.pop %v2068
        %v2325 = vtanh.pop %v2069
        %v2326 = vtanh.pop %v2070
        %v2327 = vtanh.pop %v2071
        %v2328 = vtanh.pop %v2072
        %v2329 = vtanh.pop %v2073
        %v2330 = vtanh.pop %v2074
        %v2331 = vtanh.pop %v2075
        %v2332 = vtanh.pop %v2076
        %v2333 = vtanh.pop %v2077
        %v2334 = vtanh.pop %v2078
        %v2335 = vtanh.pop %v2079
        %v2336 = vtanh.pop %v2080
        %v2337 = vtanh.pop %v2081
        %v2338 = vtanh.pop %v2082
        %v2339 = vtanh.pop %v2083
        %v2340 = vtanh.pop %v2084
        %v2341 = vtanh.pop %v2085
        %v2342 = vtanh.pop %v2086
        %v2343 = vtanh.pop %v2087
        %v2344 = vtanh.pop %v2088
        %v2345 = vtanh.pop %v2089
        %v2346 = vtanh.pop %v2090
        %v2347 = vtanh.pop %v2091
        %v2348 = vtanh.pop %v2092
        %v2349 = vtanh.pop %v2093
        %v2350 = vtanh.pop %v2094
        %v2351 = vtanh.pop %v2095
        %v2352 = vtanh.pop %v2096
        %v2353 = vtanh.pop %v2097
        %v2354 = vtanh.pop %v2098
        %v2355 = vtanh.pop %v2099
        %v2356 = vtanh.pop %v2100
        %v2357 = vtanh.pop %v2101
        %v2358 = vtanh.pop %v2102
        %v2359 = vtanh.pop %v2103
        %v2360 = vtanh.pop %v2104
        %v2361 = vtanh.pop %v2105
        %v2362 = vtanh.pop %v2106
        %v2363 = vtanh.pop %v2107
        %v2364 = vtanh.pop %v2108
        %v2365 = vtanh.pop %v2109
        %v2366 = vtanh.pop %v2110
        %v2367 = vtanh.pop %v2111
        %v2368 = vtanh.pop %v2112
        %v2369 = vtanh.pop %v2113
        %v2370 = vtanh.pop %v2114
        %v2371 = vtanh.pop %v2115
        %v2372 = vtanh.pop %v2116
        %v2373 = vtanh.pop %v2117
        %v2374 = vtanh.pop %v2118
        %v2375 = vtanh.pop %v2119
        %v2376 = vtanh.pop %v2120
        %v2377 = vtanh.pop %v2121
        %v2378 = vtanh.pop %v2122
        %v2379 = vtanh.pop %v2123
        %v2380 = vtanh.pop %v2124
        %v2381 = vtanh.pop %v2125
        %v2382 = vtanh.pop %v2126
        %v2383 = vtanh.pop %v2127
        %v2384 = vtanh.pop %v2128
        %v2385 = vtanh.pop %v2129
        %v2386 = vtanh.pop %v2130
        %v2387 = vtanh.pop %v2131
        %v2388 = vtanh.pop %v2132
        %v2389 = vtanh.pop %v2133
        %v2390 = vtanh.pop %v2134
        %v2391 = vtanh.pop %v2135
        %v2392 = vtanh.pop %v2136
        %v2393 = vtanh.pop %v2137
        %v2394 = vtanh.pop %v2138
        %v2395 = vtanh.pop %v2139
        %v2396 = vtanh.pop %v2140
        %v2397 = vtanh.pop %v2141
        %v2398 = vtanh.pop %v2142
        %v2399 = vtanh.pop %v2143
        %v2400 = vtanh.pop %v2144
        %v2401 = vtanh.pop %v2145
        %v2402 = vtanh.pop %v2146
        %v2403 = vtanh.pop %v2147
        %v2404 = vtanh.pop %v2148
        %v2405 = vtanh.pop %v2149
        %v2406 = vtanh.pop %v2150
        %v2407 = vtanh.pop %v2151
        %v2408 = vtanh.pop %v2152
        %v2409 = vtanh.pop %v2153
        %v2410 = vtanh.pop %v2154
        %v2411 = vtanh.pop %v2155
        %v2412 = vtanh.pop %v2156
        %v2413 = vtanh.pop %v2157
        %v2414 = vtanh.pop %v2158
        %v2415 = vtanh.pop %v2159
        %v2416 = vtanh.pop %v2160
        %v2417 = vtanh.pop %v2161
        %v2418 = vtanh.pop %v2162
        %v2419 = vtanh.pop %v2163
        %v2420 = vtanh.pop %v2164
        %v2421 = vtanh.pop %v2165
        %v2422 = vtanh.pop %v2166
        %v2423 = vtanh.pop %v2167
        %v2424 = vtanh.pop %v2168
        %v2425 = vtanh.pop %v2169
        %v2426 = vtanh.pop %v2170
        %v2427 = vtanh.pop %v2171
        %v2428 = vtanh.pop %v2172
        %v2429 = vtanh.pop %v2173
        %v2430 = vadd.f32 %v2174, %v2175
        %v2431 = vadd.f32 %v2430, %v2176
        %v2432 = vadd.f32 %v2431, %v2177
        %v2433 = vadd.f32 %v2432, %v2178
        %v2434 = vadd.f32 %v2433, %v2179
        %v2435 = vadd.f32 %v2434, %v2180
        %v2436 = vadd.f32 %v2435, %v2181
        %v2437 = vadd.f32 %v2436, %v2182
        %v2438 = vadd.f32 %v2437, %v2183
        %v2439 = vadd.f32 %v2438, %v2184
        %v2440 = vadd.f32 %v2439, %v2185
        %v2441 = vadd.f32 %v2440, %v2186
        %v2442 = vadd.f32 %v2441, %v2187
        %v2443 = vadd.f32 %v2442, %v2188
        %v2444 = vadd.f32 %v2443, %v2189
        %v2445 = vadd.f32 %v2444, %v2190
        %v2446 = vadd.f32 %v2445, %v2191
        %v2447 = vadd.f32 %v2446, %v2192
        %v2448 = vadd.f32 %v2447, %v2193
        %v2449 = vadd.f32 %v2448, %v2194
        %v2450 = vadd.f32 %v2449, %v2195
        %v2451 = vadd.f32 %v2450, %v2196
        %v2452 = vadd.f32 %v2451, %v2197
        %v2453 = vadd.f32 %v2452, %v2198
        %v2454 = vadd.f32 %v2453, %v2199
        %v2455 = vadd.f32 %v2454, %v2200
        %v2456 = vadd.f32 %v2455, %v2201
        %v2457 = vadd.f32 %v2456, %v2202
        %v2458 = vadd.f32 %v2457, %v2203
        %v2459 = vadd.f32 %v2458, %v2204
        %v2460 = vadd.f32 %v2459, %v2205
        %v2461 = vadd.f32 %v2460, %v2206
        %v2462 = vadd.f32 %v2461, %v2207
        %v2463 = vadd.f32 %v2462, %v2208
        %v2464 = vadd.f32 %v2463, %v2209
        %v2465 = vadd.f32 %v2464, %v2210
        %v2466 = vadd.f32 %v2465, %v2211
        %v2467 = vadd.f32 %v2466, %v2212
        %v2468 = vadd.f32 %v2467, %v2213
        %v2469 = vadd.f32 %v2468, %v2214
        %v2470 = vadd.f32 %v2469, %v2215
        %v2471 = vadd.f32 %v2470, %v2216
        %v2472 = vadd.f32 %v2471, %v2217
        %v2473 = vadd.f32 %v2472, %v2218
        %v2474 = vadd.f32 %v2473, %v2219
        %v2475 = vadd.f32 %v2474, %v2220
        %v2476 = vadd.f32 %v2475, %v2221
        %v2477 = vadd.f32 %v2476, %v2222
        %v2478 = vadd.f32 %v2477, %v2223
        %v2479 = vadd.f32 %v2478, %v2224
        %v2480 = vadd.f32 %v2479, %v2225
        %v2481 = vadd.f32 %v2480, %v2226
        %v2482 = vadd.f32 %v2481, %v2227
        %v2483 = vadd.f32 %v2482, %v2228
        %v2484 = vadd.f32 %v2483, %v2229
        %v2485 = vadd.f32 %v2484, %v2230
        %v2486 = vadd.f32 %v2485, %v2231
        %v2487 = vadd.f32 %v2486, %v2232
        %v2488 = vadd.f32 %v2487, %v2233
        %v2489 = vadd.f32 %v2488, %v2234
        %v2490 = vadd.f32 %v2489, %v2235
        %v2491 = vadd.f32 %v2490, %v2236
        %v2492 = vadd.f32 %v2491, %v2237
        %2493 = vadd.xlane.f32.xlu0 %v2492
        %v2494 = vpop.xlane.xlu0 %2493
        %v2495 = vadd.f32 %v2238, %v2239
        %v2496 = vadd.f32 %v2495, %v2240
        %v2497 = vadd.f32 %v2496, %v2241
        %v2498 = vadd.f32 %v2497, %v2242
        %v2499 = vadd.f32 %v2498, %v2243
        %v2500 = vadd.f32 %v2499, %v2244
        %v2501 = vadd.f32 %v2500, %v2245
        %v2502 = vadd.f32 %v2501, %v2246
        %v2503 = vadd.f32 %v2502, %v2247
        %v2504 = vadd.f32 %v2503, %v2248
        %v2505 = vadd.f32 %v2504, %v2249
        %v2506 = vadd.f32 %v2505, %v2250
        %v2507 = vadd.f32 %v2506, %v2251
        %v2508 = vadd.f32 %v2507, %v2252
        %v2509 = vadd.f32 %v2508, %v2253
        %v2510 = vadd.f32 %v2509, %v2254
        %v2511 = vadd.f32 %v2510, %v2255
        %v2512 = vadd.f32 %v2511, %v2256
        %v2513 = vadd.f32 %v2512, %v2257
        %v2514 = vadd.f32 %v2513, %v2258
        %v2515 = vadd.f32 %v2514, %v2259
        %v2516 = vadd.f32 %v2515, %v2260
        %v2517 = vadd.f32 %v2516, %v2261
        %v2518 = vadd.f32 %v2517, %v2262
        %v2519 = vadd.f32 %v2518, %v2263
        %v2520 = vadd.f32 %v2519, %v2264
        %v2521 = vadd.f32 %v2520, %v2265
        %v2522 = vadd.f32 %v2521, %v2266
        %v2523 = vadd.f32 %v2522, %v2267
        %v2524 = vadd.f32 %v2523, %v2268
        %v2525 = vadd.f32 %v2524, %v2269
        %v2526 = vadd.f32 %v2525, %v2270
        %v2527 = vadd.f32 %v2526, %v2271
        %v2528 = vadd.f32 %v2527, %v2272
        %v2529 = vadd.f32 %v2528, %v2273
        %v2530 = vadd.f32 %v2529, %v2274
        %v2531 = vadd.f32 %v2530, %v2275
        %v2532 = vadd.f32 %v2531, %v2276
        %v2533 = vadd.f32 %v2532, %v2277
        %v2534 = vadd.f32 %v2533, %v2278
        %v2535 = vadd.f32 %v2534, %v2279
        %v2536 = vadd.f32 %v2535, %v2280
        %v2537 = vadd.f32 %v2536, %v2281
        %v2538 = vadd.f32 %v2537, %v2282
        %v2539 = vadd.f32 %v2538, %v2283
        %v2540 = vadd.f32 %v2539, %v2284
        %v2541 = vadd.f32 %v2540, %v2285
        %v2542 = vadd.f32 %v2541, %v2286
        %v2543 = vadd.f32 %v2542, %v2287
        %v2544 = vadd.f32 %v2543, %v2288
        %v2545 = vadd.f32 %v2544, %v2289
        %v2546 = vadd.f32 %v2545, %v2290
        %v2547 = vadd.f32 %v2546, %v2291
        %v2548 = vadd.f32 %v2547, %v2292
        %v2549 = vadd.f32 %v2548, %v2293
        %v2550 = vadd.f32 %v2549, %v2294
        %v2551 = vadd.f32 %v2550, %v2295
        %v2552 = vadd.f32 %v2551, %v2296
        %v2553 = vadd.f32 %v2552, %v2297
        %v2554 = vadd.f32 %v2553, %v2298
        %v2555 = vadd.f32 %v2554, %v2299
        %v2556 = vadd.f32 %v2555, %v2300
        %v2557 = vadd.f32 %v2556, %v2301
        %2558 = vadd.xlane.f32.xlu0 %v2557
        %v2559 = vpop.xlane.xlu0 %2558
        %v2560 = vadd.f32 %v2302, %v2303
        %v2561 = vadd.f32 %v2560, %v2304
        %v2562 = vadd.f32 %v2561, %v2305
        %v2563 = vadd.f32 %v2562, %v2306
        %v2564 = vadd.f32 %v2563, %v2307
        %v2565 = vadd.f32 %v2564, %v2308
        %v2566 = vadd.f32 %v2565, %v2309
        %v2567 = vadd.f32 %v2566, %v2310
        %v2568 = vadd.f32 %v2567, %v2311
        %v2569 = vadd.f32 %v2568, %v2312
        %v2570 = vadd.f32 %v2569, %v2313
        %v2571 = vadd.f32 %v2570, %v2314
        %v2572 = vadd.f32 %v2571, %v2315
        %v2573 = vadd.f32 %v2572, %v2316
        %v2574 = vadd.f32 %v2573, %v2317
        %v2575 = vadd.f32 %v2574, %v2318
        %v2576 = vadd.f32 %v2575, %v2319
        %v2577 = vadd.f32 %v2576, %v2320
        %v2578 = vadd.f32 %v2577, %v2321
        %v2579 = vadd.f32 %v2578, %v2322
        %v2580 = vadd.f32 %v2579, %v2323
        %v2581 = vadd.f32 %v2580, %v2324
        %v2582 = vadd.f32 %v2581, %v2325
        %v2583 = vadd.f32 %v2582, %v2326
        %v2584 = vadd.f32 %v2583, %v2327
        %v2585 = vadd.f32 %v2584, %v2328
        %v2586 = vadd.f32 %v2585, %v2329
        %v2587 = vadd.f32 %v2586, %v2330
        %v2588 = vadd.f32 %v2587, %v2331
        %v2589 = vadd.f32 %v2588, %v2332
        %v2590 = vadd.f32 %v2589, %v2333
        %v2591 = vadd.f32 %v2590, %v2334
        %v2592 = vadd.f32 %v2591, %v2335
        %v2593 = vadd.f32 %v2592, %v2336
        %v2594 = vadd.f32 %v2593, %v2337
        %v2595 = vadd.f32 %v2594, %v2338
        %v2596 = vadd.f32 %v2595, %v2339
        %v2597 = vadd.f32 %v2596, %v2340
        %v2598 = vadd.f32 %v2597, %v2341
        %v2599 = vadd.f32 %v2598, %v2342
        %v2600 = vadd.f32 %v2599, %v2343
        %v2601 = vadd.f32 %v2600, %v2344
        %v2602 = vadd.f32 %v2601, %v2345
        %v2603 = vadd.f32 %v2602, %v2346
        %v2604 = vadd.f32 %v2603, %v2347
        %v2605 = vadd.f32 %v2604, %v2348
        %v2606 = vadd.f32 %v2605, %v2349
        %v2607 = vadd.f32 %v2606, %v2350
        %v2608 = vadd.f32 %v2607, %v2351
        %v2609 = vadd.f32 %v2608, %v2352
        %v2610 = vadd.f32 %v2609, %v2353
        %v2611 = vadd.f32 %v2610, %v2354
        %v2612 = vadd.f32 %v2611, %v2355
        %v2613 = vadd.f32 %v2612, %v2356
        %v2614 = vadd.f32 %v2613, %v2357
        %v2615 = vadd.f32 %v2614, %v2358
        %v2616 = vadd.f32 %v2615, %v2359
        %v2617 = vadd.f32 %v2616, %v2360
        %v2618 = vadd.f32 %v2617, %v2361
        %v2619 = vadd.f32 %v2618, %v2362
        %v2620 = vadd.f32 %v2619, %v2363
        %v2621 = vadd.f32 %v2620, %v2364
        %v2622 = vadd.f32 %v2621, %v2365
        %2623 = vadd.xlane.f32.xlu0 %v2622
        %v2624 = vpop.xlane.xlu0 %2623
        %v2625 = vadd.f32 %v2366, %v2367
        %v2626 = vadd.f32 %v2625, %v2368
        %v2627 = vadd.f32 %v2626, %v2369
        %v2628 = vadd.f32 %v2627, %v2370
        %v2629 = vadd.f32 %v2628, %v2371
        %v2630 = vadd.f32 %v2629, %v2372
        %v2631 = vadd.f32 %v2630, %v2373
        %v2632 = vadd.f32 %v2631, %v2374
        %v2633 = vadd.f32 %v2632, %v2375
        %v2634 = vadd.f32 %v2633, %v2376
        %v2635 = vadd.f32 %v2634, %v2377
        %v2636 = vadd.f32 %v2635, %v2378
        %v2637 = vadd.f32 %v2636, %v2379
        %v2638 = vadd.f32 %v2637, %v2380
        %v2639 = vadd.f32 %v2638, %v2381
        %v2640 = vadd.f32 %v2639, %v2382
        %v2641 = vadd.f32 %v2640, %v2383
        %v2642 = vadd.f32 %v2641, %v2384
        %v2643 = vadd.f32 %v2642, %v2385
        %v2644 = vadd.f32 %v2643, %v2386
        %v2645 = vadd.f32 %v2644, %v2387
        %v2646 = vadd.f32 %v2645, %v2388
        %v2647 = vadd.f32 %v2646, %v2389
        %v2648 = vadd.f32 %v2647, %v2390
        %v2649 = vadd.f32 %v2648, %v2391
        %v2650 = vadd.f32 %v2649, %v2392
        %v2651 = vadd.f32 %v2650, %v2393
        %v2652 = vadd.f32 %v2651, %v2394
        %v2653 = vadd.f32 %v2652, %v2395
        %v2654 = vadd.f32 %v2653, %v2396
        %v2655 = vadd.f32 %v2654, %v2397
        %v2656 = vadd.f32 %v2655, %v2398
        %v2657 = vadd.f32 %v2656, %v2399
        %v2658 = vadd.f32 %v2657, %v2400
        %v2659 = vadd.f32 %v2658, %v2401
        %v2660 = vadd.f32 %v2659, %v2402
        %v2661 = vadd.f32 %v2660, %v2403
        %v2662 = vadd.f32 %v2661, %v2404
        %v2663 = vadd.f32 %v2662, %v2405
        %v2664 = vadd.f32 %v2663, %v2406
        %v2665 = vadd.f32 %v2664, %v2407
        %v2666 = vadd.f32 %v2665, %v2408
        %v2667 = vadd.f32 %v2666, %v2409
        %v2668 = vadd.f32 %v2667, %v2410
        %v2669 = vadd.f32 %v2668, %v2411
        %v2670 = vadd.f32 %v2669, %v2412
        %v2671 = vadd.f32 %v2670, %v2413
        %v2672 = vadd.f32 %v2671, %v2414
        %v2673 = vadd.f32 %v2672, %v2415
        %v2674 = vadd.f32 %v2673, %v2416
        %v2675 = vadd.f32 %v2674, %v2417
        %v2676 = vadd.f32 %v2675, %v2418
        %v2677 = vadd.f32 %v2676, %v2419
        %v2678 = vadd.f32 %v2677, %v2420
        %v2679 = vadd.f32 %v2678, %v2421
        %v2680 = vadd.f32 %v2679, %v2422
        %v2681 = vadd.f32 %v2680, %v2423
        %v2682 = vadd.f32 %v2681, %v2424
        %v2683 = vadd.f32 %v2682, %v2425
        %v2684 = vadd.f32 %v2683, %v2426
        %v2685 = vadd.f32 %v2684, %v2427
        %v2686 = vadd.f32 %v2685, %v2428
        %v2687 = vadd.f32 %v2686, %v2429
        %2688 = vadd.xlane.f32.xlu0 %v2687
        %v2689 = vpop.xlane.xlu0 %2688
        %v2690 = vadd.f32 %v2494, 0.0
        %v2691 = vadd.f32 %v2559, 0.0
        %v2692 = vadd.f32 %v2624, 0.0
        %v2693 = vadd.f32 %v2689, 0.0
        %v2694 = vmul.f32 %v2690, 0.00012207031
        %v2695 = vmul.f32 %v2691, 0.00012207031
        %v2696 = vmul.f32 %v2692, 0.00012207031
        %v2697 = vmul.f32 %v2693, 0.00012207031
        %v2698 = vsub.f32 %v2174, %v2694
        %v2699 = vsub.f32 %v2175, %v2694
        %v2700 = vsub.f32 %v2176, %v2694
        %v2701 = vsub.f32 %v2177, %v2694
        %v2702 = vsub.f32 %v2178, %v2694
        %v2703 = vsub.f32 %v2179, %v2694
        %v2704 = vsub.f32 %v2180, %v2694
        %v2705 = vsub.f32 %v2181, %v2694
        %v2706 = vsub.f32 %v2182, %v2694
        %v2707 = vsub.f32 %v2183, %v2694
        %v2708 = vsub.f32 %v2184, %v2694
        %v2709 = vsub.f32 %v2185, %v2694
        %v2710 = vsub.f32 %v2186, %v2694
        %v2711 = vsub.f32 %v2187, %v2694
        %v2712 = vsub.f32 %v2188, %v2694
        %v2713 = vsub.f32 %v2189, %v2694
        %v2714 = vsub.f32 %v2190, %v2694
        %v2715 = vsub.f32 %v2191, %v2694
        %v2716 = vsub.f32 %v2192, %v2694
        %v2717 = vsub.f32 %v2193, %v2694
        %v2718 = vsub.f32 %v2194, %v2694
        %v2719 = vsub.f32 %v2195, %v2694
        %v2720 = vsub.f32 %v2196, %v2694
        %v2721 = vsub.f32 %v2197, %v2694
        %v2722 = vsub.f32 %v2198, %v2694
        %v2723 = vsub.f32 %v2199, %v2694
        %v2724 = vsub.f32 %v2200, %v2694
        %v2725 = vsub.f32 %v2201, %v2694
        %v2726 = vsub.f32 %v2202, %v2694
        %v2727 = vsub.f32 %v2203, %v2694
        %v2728 = vsub.f32 %v2204, %v2694
        %v2729 = vsub.f32 %v2205, %v2694
        %v2730 = vsub.f32 %v2206, %v2694
        %v2731 = vsub.f32 %v2207, %v2694
        %v2732 = vsub.f32 %v2208, %v2694
        %v2733 = vsub.f32 %v2209, %v2694
        %v2734 = vsub.f32 %v2210, %v2694
        %v2735 = vsub.f32 %v2211, %v2694
        %v2736 = vsub.f32 %v2212, %v2694
        %v2737 = vsub.f32 %v2213, %v2694
        %v2738 = vsub.f32 %v2214, %v2694
        %v2739 = vsub.f32 %v2215, %v2694
        %v2740 = vsub.f32 %v2216, %v2694
        %v2741 = vsub.f32 %v2217, %v2694
        %v2742 = vsub.f32 %v2218, %v2694
        %v2743 = vsub.f32 %v2219, %v2694
        %v2744 = vsub.f32 %v2220, %v2694
        %v2745 = vsub.f32 %v2221, %v2694
        %v2746 = vsub.f32 %v2222, %v2694
        %v2747 = vsub.f32 %v2223, %v2694
        %v2748 = vsub.f32 %v2224, %v2694
        %v2749 = vsub.f32 %v2225, %v2694
        %v2750 = vsub.f32 %v2226, %v2694
        %v2751 = vsub.f32 %v2227, %v2694
        %v2752 = vsub.f32 %v2228, %v2694
        %v2753 = vsub.f32 %v2229, %v2694
        %v2754 = vsub.f32 %v2230, %v2694
        %v2755 = vsub.f32 %v2231, %v2694
        %v2756 = vsub.f32 %v2232, %v2694
        %v2757 = vsub.f32 %v2233, %v2694
        %v2758 = vsub.f32 %v2234, %v2694
        %v2759 = vsub.f32 %v2235, %v2694
        %v2760 = vsub.f32 %v2236, %v2694
        %v2761 = vsub.f32 %v2237, %v2694
        %v2762 = vsub.f32 %v2238, %v2695
        %v2763 = vsub.f32 %v2239, %v2695
        %v2764 = vsub.f32 %v2240, %v2695
        %v2765 = vsub.f32 %v2241, %v2695
        %v2766 = vsub.f32 %v2242, %v2695
        %v2767 = vsub.f32 %v2243, %v2695
        %v2768 = vsub.f32 %v2244, %v2695
        %v2769 = vsub.f32 %v2245, %v2695
        %v2770 = vsub.f32 %v2246, %v2695
        %v2771 = vsub.f32 %v2247, %v2695
        %v2772 = vsub.f32 %v2248, %v2695
        %v2773 = vsub.f32 %v2249, %v2695
        %v2774 = vsub.f32 %v2250, %v2695
        %v2775 = vsub.f32 %v2251, %v2695
        %v2776 = vsub.f32 %v2252, %v2695
        %v2777 = vsub.f32 %v2253, %v2695
        %v2778 = vsub.f32 %v2254, %v2695
        %v2779 = vsub.f32 %v2255, %v2695
        %v2780 = vsub.f32 %v2256, %v2695
        %v2781 = vsub.f32 %v2257, %v2695
        %v2782 = vsub.f32 %v2258, %v2695
        %v2783 = vsub.f32 %v2259, %v2695
        %v2784 = vsub.f32 %v2260, %v2695
        %v2785 = vsub.f32 %v2261, %v2695
        %v2786 = vsub.f32 %v2262, %v2695
        %v2787 = vsub.f32 %v2263, %v2695
        %v2788 = vsub.f32 %v2264, %v2695
        %v2789 = vsub.f32 %v2265, %v2695
        %v2790 = vsub.f32 %v2266, %v2695
        %v2791 = vsub.f32 %v2267, %v2695
        %v2792 = vsub.f32 %v2268, %v2695
        %v2793 = vsub.f32 %v2269, %v2695
        %v2794 = vsub.f32 %v2270, %v2695
        %v2795 = vsub.f32 %v2271, %v2695
        %v2796 = vsub.f32 %v2272, %v2695
        %v2797 = vsub.f32 %v2273, %v2695
        %v2798 = vsub.f32 %v2274, %v2695
        %v2799 = vsub.f32 %v2275, %v2695
        %v2800 = vsub.f32 %v2276, %v2695
        %v2801 = vsub.f32 %v2277, %v2695
        %v2802 = vsub.f32 %v2278, %v2695
        %v2803 = vsub.f32 %v2279, %v2695
        %v2804 = vsub.f32 %v2280, %v2695
        %v2805 = vsub.f32 %v2281, %v2695
        %v2806 = vsub.f32 %v2282, %v2695
        %v2807 = vsub.f32 %v2283, %v2695
        %v2808 = vsub.f32 %v2284, %v2695
        %v2809 = vsub.f32 %v2285, %v2695
        %v2810 = vsub.f32 %v2286, %v2695
        %v2811 = vsub.f32 %v2287, %v2695
        %v2812 = vsub.f32 %v2288, %v2695
        %v2813 = vsub.f32 %v2289, %v2695
        %v2814 = vsub.f32 %v2290, %v2695
        %v2815 = vsub.f32 %v2291, %v2695
        %v2816 = vsub.f32 %v2292, %v2695
        %v2817 = vsub.f32 %v2293, %v2695
        %v2818 = vsub.f32 %v2294, %v2695
        %v2819 = vsub.f32 %v2295, %v2695
        %v2820 = vsub.f32 %v2296, %v2695
        %v2821 = vsub.f32 %v2297, %v2695
        %v2822 = vsub.f32 %v2298, %v2695
        %v2823 = vsub.f32 %v2299, %v2695
        %v2824 = vsub.f32 %v2300, %v2695
        %v2825 = vsub.f32 %v2301, %v2695
        %v2826 = vsub.f32 %v2302, %v2696
        %v2827 = vsub.f32 %v2303, %v2696
        %v2828 = vsub.f32 %v2304, %v2696
        %v2829 = vsub.f32 %v2305, %v2696
        %v2830 = vsub.f32 %v2306, %v2696
        %v2831 = vsub.f32 %v2307, %v2696
        %v2832 = vsub.f32 %v2308, %v2696
        %v2833 = vsub.f32 %v2309, %v2696
        %v2834 = vsub.f32 %v2310, %v2696
        %v2835 = vsub.f32 %v2311, %v2696
        %v2836 = vsub.f32 %v2312, %v2696
        %v2837 = vsub.f32 %v2313, %v2696
        %v2838 = vsub.f32 %v2314, %v2696
        %v2839 = vsub.f32 %v2315, %v2696
        %v2840 = vsub.f32 %v2316, %v2696
        %v2841 = vsub.f32 %v2317, %v2696
        %v2842 = vsub.f32 %v2318, %v2696
        %v2843 = vsub.f32 %v2319, %v2696
        %v2844 = vsub.f32 %v2320, %v2696
        %v2845 = vsub.f32 %v2321, %v2696
        %v2846 = vsub.f32 %v2322, %v2696
        %v2847 = vsub.f32 %v2323, %v2696
        %v2848 = vsub.f32 %v2324, %v2696
        %v2849 = vsub.f32 %v2325, %v2696
        %v2850 = vsub.f32 %v2326, %v2696
        %v2851 = vsub.f32 %v2327, %v2696
        %v2852 = vsub.f32 %v2328, %v2696
        %v2853 = vsub.f32 %v2329, %v2696
        %v2854 = vsub.f32 %v2330, %v2696
        %v2855 = vsub.f32 %v2331, %v2696
        %v2856 = vsub.f32 %v2332, %v2696
        %v2857 = vsub.f32 %v2333, %v2696
        %v2858 = vsub.f32 %v2334, %v2696
        %v2859 = vsub.f32 %v2335, %v2696
        %v2860 = vsub.f32 %v2336, %v2696
        %v2861 = vsub.f32 %v2337, %v2696
        %v2862 = vsub.f32 %v2338, %v2696
        %v2863 = vsub.f32 %v2339, %v2696
        %v2864 = vsub.f32 %v2340, %v2696
        %v2865 = vsub.f32 %v2341, %v2696
        %v2866 = vsub.f32 %v2342, %v2696
        %v2867 = vsub.f32 %v2343, %v2696
        %v2868 = vsub.f32 %v2344, %v2696
        %v2869 = vsub.f32 %v2345, %v2696
        %v2870 = vsub.f32 %v2346, %v2696
        %v2871 = vsub.f32 %v2347, %v2696
        %v2872 = vsub.f32 %v2348, %v2696
        %v2873 = vsub.f32 %v2349, %v2696
        %v2874 = vsub.f32 %v2350, %v2696
        %v2875 = vsub.f32 %v2351, %v2696
        %v2876 = vsub.f32 %v2352, %v2696
        %v2877 = vsub.f32 %v2353, %v2696
        %v2878 = vsub.f32 %v2354, %v2696
        %v2879 = vsub.f32 %v2355, %v2696
        %v2880 = vsub.f32 %v2356, %v2696
        %v2881 = vsub.f32 %v2357, %v2696
        %v2882 = vsub.f32 %v2358, %v2696
        %v2883 = vsub.f32 %v2359, %v2696
        %v2884 = vsub.f32 %v2360, %v2696
        %v2885 = vsub.f32 %v2361, %v2696
        %v2886 = vsub.f32 %v2362, %v2696
        %v2887 = vsub.f32 %v2363, %v2696
        %v2888 = vsub.f32 %v2364, %v2696
        %v2889 = vsub.f32 %v2365, %v2696
        %v2890 = vsub.f32 %v2366, %v2697
        %v2891 = vsub.f32 %v2367, %v2697
        %v2892 = vsub.f32 %v2368, %v2697
        %v2893 = vsub.f32 %v2369, %v2697
        %v2894 = vsub.f32 %v2370, %v2697
        %v2895 = vsub.f32 %v2371, %v2697
        %v2896 = vsub.f32 %v2372, %v2697
        %v2897 = vsub.f32 %v2373, %v2697
        %v2898 = vsub.f32 %v2374, %v2697
        %v2899 = vsub.f32 %v2375, %v2697
        %v2900 = vsub.f32 %v2376, %v2697
        %v2901 = vsub.f32 %v2377, %v2697
        %v2902 = vsub.f32 %v2378, %v2697
        %v2903 = vsub.f32 %v2379, %v2697
        %v2904 = vsub.f32 %v2380, %v2697
        %v2905 = vsub.f32 %v2381, %v2697
        %v2906 = vsub.f32 %v2382, %v2697
        %v2907 = vsub.f32 %v2383, %v2697
        %v2908 = vsub.f32 %v2384, %v2697
        %v2909 = vsub.f32 %v2385, %v2697
        %v2910 = vsub.f32 %v2386, %v2697
        %v2911 = vsub.f32 %v2387, %v2697
        %v2912 = vsub.f32 %v2388, %v2697
        %v2913 = vsub.f32 %v2389, %v2697
        %v2914 = vsub.f32 %v2390, %v2697
        %v2915 = vsub.f32 %v2391, %v2697
        %v2916 = vsub.f32 %v2392, %v2697
        %v2917 = vsub.f32 %v2393, %v2697
        %v2918 = vsub.f32 %v2394, %v2697
        %v2919 = vsub.f32 %v2395, %v2697
        %v2920 = vsub.f32 %v2396, %v2697
        %v2921 = vsub.f32 %v2397, %v2697
        %v2922 = vsub.f32 %v2398, %v2697
        %v2923 = vsub.f32 %v2399, %v2697
        %v2924 = vsub.f32 %v2400, %v2697
        %v2925 = vsub.f32 %v2401, %v2697
        %v2926 = vsub.f32 %v2402, %v2697
        %v2927 = vsub.f32 %v2403, %v2697
        %v2928 = vsub.f32 %v2404, %v2697
        %v2929 = vsub.f32 %v2405, %v2697
        %v2930 = vsub.f32 %v2406, %v2697
        %v2931 = vsub.f32 %v2407, %v2697
        %v2932 = vsub.f32 %v2408, %v2697
        %v2933 = vsub.f32 %v2409, %v2697
        %v2934 = vsub.f32 %v2410, %v2697
        %v2935 = vsub.f32 %v2411, %v2697
        %v2936 = vsub.f32 %v2412, %v2697
        %v2937 = vsub.f32 %v2413, %v2697
        %v2938 = vsub.f32 %v2414, %v2697
        %v2939 = vsub.f32 %v2415, %v2697
        %v2940 = vsub.f32 %v2416, %v2697
        %v2941 = vsub.f32 %v2417, %v2697
        %v2942 = vsub.f32 %v2418, %v2697
        %v2943 = vsub.f32 %v2419, %v2697
        %v2944 = vsub.f32 %v2420, %v2697
        %v2945 = vsub.f32 %v2421, %v2697
        %v2946 = vsub.f32 %v2422, %v2697
        %v2947 = vsub.f32 %v2423, %v2697
        %v2948 = vsub.f32 %v2424, %v2697
        %v2949 = vsub.f32 %v2425, %v2697
        %v2950 = vsub.f32 %v2426, %v2697
        %v2951 = vsub.f32 %v2427, %v2697
        %v2952 = vsub.f32 %v2428, %v2697
        %v2953 = vsub.f32 %v2429, %v2697
        %v2954 = vmul.f32 %v2698, %v2698
        %v2955 = vmul.f32 %v2699, %v2699
        %v2956 = vmul.f32 %v2700, %v2700
        %v2957 = vmul.f32 %v2701, %v2701
        %v2958 = vmul.f32 %v2702, %v2702
        %v2959 = vmul.f32 %v2703, %v2703
        %v2960 = vmul.f32 %v2704, %v2704
        %v2961 = vmul.f32 %v2705, %v2705
        %v2962 = vmul.f32 %v2706, %v2706
        %v2963 = vmul.f32 %v2707, %v2707
        %v2964 = vmul.f32 %v2708, %v2708
        %v2965 = vmul.f32 %v2709, %v2709
        %v2966 = vmul.f32 %v2710, %v2710
        %v2967 = vmul.f32 %v2711, %v2711
        %v2968 = vmul.f32 %v2712, %v2712
        %v2969 = vmul.f32 %v2713, %v2713
        %v2970 = vmul.f32 %v2714, %v2714
        %v2971 = vmul.f32 %v2715, %v2715
        %v2972 = vmul.f32 %v2716, %v2716
        %v2973 = vmul.f32 %v2717, %v2717
        %v2974 = vmul.f32 %v2718, %v2718
        %v2975 = vmul.f32 %v2719, %v2719
        %v2976 = vmul.f32 %v2720, %v2720
        %v2977 = vmul.f32 %v2721, %v2721
        %v2978 = vmul.f32 %v2722, %v2722
        %v2979 = vmul.f32 %v2723, %v2723
        %v2980 = vmul.f32 %v2724, %v2724
        %v2981 = vmul.f32 %v2725, %v2725
        %v2982 = vmul.f32 %v2726, %v2726
        %v2983 = vmul.f32 %v2727, %v2727
        %v2984 = vmul.f32 %v2728, %v2728
        %v2985 = vmul.f32 %v2729, %v2729
        %v2986 = vmul.f32 %v2730, %v2730
        %v2987 = vmul.f32 %v2731, %v2731
        %v2988 = vmul.f32 %v2732, %v2732
        %v2989 = vmul.f32 %v2733, %v2733
        %v2990 = vmul.f32 %v2734, %v2734
        %v2991 = vmul.f32 %v2735, %v2735
        %v2992 = vmul.f32 %v2736, %v2736
        %v2993 = vmul.f32 %v2737, %v2737
        %v2994 = vmul.f32 %v2738, %v2738
        %v2995 = vmul.f32 %v2739, %v2739
        %v2996 = vmul.f32 %v2740, %v2740
        %v2997 = vmul.f32 %v2741, %v2741
        %v2998 = vmul.f32 %v2742, %v2742
        %v2999 = vmul.f32 %v2743, %v2743
        %v3000 = vmul.f32 %v2744, %v2744
        %v3001 = vmul.f32 %v2745, %v2745
        %v3002 = vmul.f32 %v2746, %v2746
        %v3003 = vmul.f32 %v2747, %v2747
        %v3004 = vmul.f32 %v2748, %v2748
        %v3005 = vmul.f32 %v2749, %v2749
        %v3006 = vmul.f32 %v2750, %v2750
        %v3007 = vmul.f32 %v2751, %v2751
        %v3008 = vmul.f32 %v2752, %v2752
        %v3009 = vmul.f32 %v2753, %v2753
        %v3010 = vmul.f32 %v2754, %v2754
        %v3011 = vmul.f32 %v2755, %v2755
        %v3012 = vmul.f32 %v2756, %v2756
        %v3013 = vmul.f32 %v2757, %v2757
        %v3014 = vmul.f32 %v2758, %v2758
        %v3015 = vmul.f32 %v2759, %v2759
        %v3016 = vmul.f32 %v2760, %v2760
        %v3017 = vmul.f32 %v2761, %v2761
        %v3018 = vmul.f32 %v2762, %v2762
        %v3019 = vmul.f32 %v2763, %v2763
        %v3020 = vmul.f32 %v2764, %v2764
        %v3021 = vmul.f32 %v2765, %v2765
        %v3022 = vmul.f32 %v2766, %v2766
        %v3023 = vmul.f32 %v2767, %v2767
        %v3024 = vmul.f32 %v2768, %v2768
        %v3025 = vmul.f32 %v2769, %v2769
        %v3026 = vmul.f32 %v2770, %v2770
        %v3027 = vmul.f32 %v2771, %v2771
        %v3028 = vmul.f32 %v2772, %v2772
        %v3029 = vmul.f32 %v2773, %v2773
        %v3030 = vmul.f32 %v2774, %v2774
        %v3031 = vmul.f32 %v2775, %v2775
        %v3032 = vmul.f32 %v2776, %v2776
        %v3033 = vmul.f32 %v2777, %v2777
        %v3034 = vmul.f32 %v2778, %v2778
        %v3035 = vmul.f32 %v2779, %v2779
        %v3036 = vmul.f32 %v2780, %v2780
        %v3037 = vmul.f32 %v2781, %v2781
        %v3038 = vmul.f32 %v2782, %v2782
        %v3039 = vmul.f32 %v2783, %v2783
        %v3040 = vmul.f32 %v2784, %v2784
        %v3041 = vmul.f32 %v2785, %v2785
        %v3042 = vmul.f32 %v2786, %v2786
        %v3043 = vmul.f32 %v2787, %v2787
        %v3044 = vmul.f32 %v2788, %v2788
        %v3045 = vmul.f32 %v2789, %v2789
        %v3046 = vmul.f32 %v2790, %v2790
        %v3047 = vmul.f32 %v2791, %v2791
        %v3048 = vmul.f32 %v2792, %v2792
        %v3049 = vmul.f32 %v2793, %v2793
        %v3050 = vmul.f32 %v2794, %v2794
        %v3051 = vmul.f32 %v2795, %v2795
        %v3052 = vmul.f32 %v2796, %v2796
        %v3053 = vmul.f32 %v2797, %v2797
        %v3054 = vmul.f32 %v2798, %v2798
        %v3055 = vmul.f32 %v2799, %v2799
        %v3056 = vmul.f32 %v2800, %v2800
        %v3057 = vmul.f32 %v2801, %v2801
        %v3058 = vmul.f32 %v2802, %v2802
        %v3059 = vmul.f32 %v2803, %v2803
        %v3060 = vmul.f32 %v2804, %v2804
        %v3061 = vmul.f32 %v2805, %v2805
        %v3062 = vmul.f32 %v2806, %v2806
        %v3063 = vmul.f32 %v2807, %v2807
        %v3064 = vmul.f32 %v2808, %v2808
        %v3065 = vmul.f32 %v2809, %v2809
        %v3066 = vmul.f32 %v2810, %v2810
        %v3067 = vmul.f32 %v2811, %v2811
        %v3068 = vmul.f32 %v2812, %v2812
        %v3069 = vmul.f32 %v2813, %v2813
        %v3070 = vmul.f32 %v2814, %v2814
        %v3071 = vmul.f32 %v2815, %v2815
        %v3072 = vmul.f32 %v2816, %v2816
        %v3073 = vmul.f32 %v2817, %v2817
        %v3074 = vmul.f32 %v2818, %v2818
        %v3075 = vmul.f32 %v2819, %v2819
        %v3076 = vmul.f32 %v2820, %v2820
        %v3077 = vmul.f32 %v2821, %v2821
        %v3078 = vmul.f32 %v2822, %v2822
        %v3079 = vmul.f32 %v2823, %v2823
        %v3080 = vmul.f32 %v2824, %v2824
        %v3081 = vmul.f32 %v2825, %v2825
        %v3082 = vmul.f32 %v2826, %v2826
        %v3083 = vmul.f32 %v2827, %v2827
        %v3084 = vmul.f32 %v2828, %v2828
        %v3085 = vmul.f32 %v2829, %v2829
        %v3086 = vmul.f32 %v2830, %v2830
        %v3087 = vmul.f32 %v2831, %v2831
        %v3088 = vmul.f32 %v2832, %v2832
        %v3089 = vmul.f32 %v2833, %v2833
        %v3090 = vmul.f32 %v2834, %v2834
        %v3091 = vmul.f32 %v2835, %v2835
        %v3092 = vmul.f32 %v2836, %v2836
        %v3093 = vmul.f32 %v2837, %v2837
        %v3094 = vmul.f32 %v2838, %v2838
        %v3095 = vmul.f32 %v2839, %v2839
        %v3096 = vmul.f32 %v2840, %v2840
        %v3097 = vmul.f32 %v2841, %v2841
        %v3098 = vmul.f32 %v2842, %v2842
        %v3099 = vmul.f32 %v2843, %v2843
        %v3100 = vmul.f32 %v2844, %v2844
        %v3101 = vmul.f32 %v2845, %v2845
        %v3102 = vmul.f32 %v2846, %v2846
        %v3103 = vmul.f32 %v2847, %v2847
        %v3104 = vmul.f32 %v2848, %v2848
        %v3105 = vmul.f32 %v2849, %v2849
        %v3106 = vmul.f32 %v2850, %v2850
        %v3107 = vmul.f32 %v2851, %v2851
        %v3108 = vmul.f32 %v2852, %v2852
        %v3109 = vmul.f32 %v2853, %v2853
        %v3110 = vmul.f32 %v2854, %v2854
        %v3111 = vmul.f32 %v2855, %v2855
        %v3112 = vmul.f32 %v2856, %v2856
        %v3113 = vmul.f32 %v2857, %v2857
        %v3114 = vmul.f32 %v2858, %v2858
        %v3115 = vmul.f32 %v2859, %v2859
        %v3116 = vmul.f32 %v2860, %v2860
        %v3117 = vmul.f32 %v2861, %v2861
        %v3118 = vmul.f32 %v2862, %v2862
        %v3119 = vmul.f32 %v2863, %v2863
        %v3120 = vmul.f32 %v2864, %v2864
        %v3121 = vmul.f32 %v2865, %v2865
        %v3122 = vmul.f32 %v2866, %v2866
        %v3123 = vmul.f32 %v2867, %v2867
        %v3124 = vmul.f32 %v2868, %v2868
        %v3125 = vmul.f32 %v2869, %v2869
        %v3126 = vmul.f32 %v2870, %v2870
        %v3127 = vmul.f32 %v2871, %v2871
        %v3128 = vmul.f32 %v2872, %v2872
        %v3129 = vmul.f32 %v2873, %v2873
        %v3130 = vmul.f32 %v2874, %v2874
        %v3131 = vmul.f32 %v2875, %v2875
        %v3132 = vmul.f32 %v2876, %v2876
        %v3133 = vmul.f32 %v2877, %v2877
        %v3134 = vmul.f32 %v2878, %v2878
        %v3135 = vmul.f32 %v2879, %v2879
        %v3136 = vmul.f32 %v2880, %v2880
        %v3137 = vmul.f32 %v2881, %v2881
        %v3138 = vmul.f32 %v2882, %v2882
        %v3139 = vmul.f32 %v2883, %v2883
        %v3140 = vmul.f32 %v2884, %v2884
        %v3141 = vmul.f32 %v2885, %v2885
        %v3142 = vmul.f32 %v2886, %v2886
        %v3143 = vmul.f32 %v2887, %v2887
        %v3144 = vmul.f32 %v2888, %v2888
        %v3145 = vmul.f32 %v2889, %v2889
        %v3146 = vmul.f32 %v2890, %v2890
        %v3147 = vmul.f32 %v2891, %v2891
        %v3148 = vmul.f32 %v2892, %v2892
        %v3149 = vmul.f32 %v2893, %v2893
        %v3150 = vmul.f32 %v2894, %v2894
        %v3151 = vmul.f32 %v2895, %v2895
        %v3152 = vmul.f32 %v2896, %v2896
        %v3153 = vmul.f32 %v2897, %v2897
        %v3154 = vmul.f32 %v2898, %v2898
        %v3155 = vmul.f32 %v2899, %v2899
        %v3156 = vmul.f32 %v2900, %v2900
        %v3157 = vmul.f32 %v2901, %v2901
        %v3158 = vmul.f32 %v2902, %v2902
        %v3159 = vmul.f32 %v2903, %v2903
        %v3160 = vmul.f32 %v2904, %v2904
        %v3161 = vmul.f32 %v2905, %v2905
        %v3162 = vmul.f32 %v2906, %v2906
        %v3163 = vmul.f32 %v2907, %v2907
        %v3164 = vmul.f32 %v2908, %v2908
        %v3165 = vmul.f32 %v2909, %v2909
        %v3166 = vmul.f32 %v2910, %v2910
        %v3167 = vmul.f32 %v2911, %v2911
        %v3168 = vmul.f32 %v2912, %v2912
        %v3169 = vmul.f32 %v2913, %v2913
        %v3170 = vmul.f32 %v2914, %v2914
        %v3171 = vmul.f32 %v2915, %v2915
        %v3172 = vmul.f32 %v2916, %v2916
        %v3173 = vmul.f32 %v2917, %v2917
        %v3174 = vmul.f32 %v2918, %v2918
        %v3175 = vmul.f32 %v2919, %v2919
        %v3176 = vmul.f32 %v2920, %v2920
        %v3177 = vmul.f32 %v2921, %v2921
        %v3178 = vmul.f32 %v2922, %v2922
        %v3179 = vmul.f32 %v2923, %v2923
        %v3180 = vmul.f32 %v2924, %v2924
        %v3181 = vmul.f32 %v2925, %v2925
        %v3182 = vmul.f32 %v2926, %v2926
        %v3183 = vmul.f32 %v2927, %v2927
        %v3184 = vmul.f32 %v2928, %v2928
        %v3185 = vmul.f32 %v2929, %v2929
        %v3186 = vmul.f32 %v2930, %v2930
        %v3187 = vmul.f32 %v2931, %v2931
        %v3188 = vmul.f32 %v2932, %v2932
        %v3189 = vmul.f32 %v2933, %v2933
        %v3190 = vmul.f32 %v2934, %v2934
        %v3191 = vmul.f32 %v2935, %v2935
        %v3192 = vmul.f32 %v2936, %v2936
        %v3193 = vmul.f32 %v2937, %v2937
        %v3194 = vmul.f32 %v2938, %v2938
        %v3195 = vmul.f32 %v2939, %v2939
        %v3196 = vmul.f32 %v2940, %v2940
        %v3197 = vmul.f32 %v2941, %v2941
        %v3198 = vmul.f32 %v2942, %v2942
        %v3199 = vmul.f32 %v2943, %v2943
        %v3200 = vmul.f32 %v2944, %v2944
        %v3201 = vmul.f32 %v2945, %v2945
        %v3202 = vmul.f32 %v2946, %v2946
        %v3203 = vmul.f32 %v2947, %v2947
        %v3204 = vmul.f32 %v2948, %v2948
        %v3205 = vmul.f32 %v2949, %v2949
        %v3206 = vmul.f32 %v2950, %v2950
        %v3207 = vmul.f32 %v2951, %v2951
        %v3208 = vmul.f32 %v2952, %v2952
        %v3209 = vmul.f32 %v2953, %v2953
        %v3210 = vadd.f32 %v2954, %v2955
        %v3211 = vadd.f32 %v3210, %v2956
        %v3212 = vadd.f32 %v3211, %v2957
        %v3213 = vadd.f32 %v3212, %v2958
        %v3214 = vadd.f32 %v3213, %v2959
        %v3215 = vadd.f32 %v3214, %v2960
        %v3216 = vadd.f32 %v3215, %v2961
        %v3217 = vadd.f32 %v3216, %v2962
        %v3218 = vadd.f32 %v3217, %v2963
        %v3219 = vadd.f32 %v3218, %v2964
        %v3220 = vadd.f32 %v3219, %v2965
        %v3221 = vadd.f32 %v3220, %v2966
        %v3222 = vadd.f32 %v3221, %v2967
        %v3223 = vadd.f32 %v3222, %v2968
        %v3224 = vadd.f32 %v3223, %v2969
        %v3225 = vadd.f32 %v3224, %v2970
        %v3226 = vadd.f32 %v3225, %v2971
        %v3227 = vadd.f32 %v3226, %v2972
        %v3228 = vadd.f32 %v3227, %v2973
        %v3229 = vadd.f32 %v3228, %v2974
        %v3230 = vadd.f32 %v3229, %v2975
        %v3231 = vadd.f32 %v3230, %v2976
        %v3232 = vadd.f32 %v3231, %v2977
        %v3233 = vadd.f32 %v3232, %v2978
        %v3234 = vadd.f32 %v3233, %v2979
        %v3235 = vadd.f32 %v3234, %v2980
        %v3236 = vadd.f32 %v3235, %v2981
        %v3237 = vadd.f32 %v3236, %v2982
        %v3238 = vadd.f32 %v3237, %v2983
        %v3239 = vadd.f32 %v3238, %v2984
        %v3240 = vadd.f32 %v3239, %v2985
        %v3241 = vadd.f32 %v3240, %v2986
        %v3242 = vadd.f32 %v3241, %v2987
        %v3243 = vadd.f32 %v3242, %v2988
        %v3244 = vadd.f32 %v3243, %v2989
        %v3245 = vadd.f32 %v3244, %v2990
        %v3246 = vadd.f32 %v3245, %v2991
        %v3247 = vadd.f32 %v3246, %v2992
        %v3248 = vadd.f32 %v3247, %v2993
        %v3249 = vadd.f32 %v3248, %v2994
        %v3250 = vadd.f32 %v3249, %v2995
        %v3251 = vadd.f32 %v3250, %v2996
        %v3252 = vadd.f32 %v3251, %v2997
        %v3253 = vadd.f32 %v3252, %v2998
        %v3254 = vadd.f32 %v3253, %v2999
        %v3255 = vadd.f32 %v3254, %v3000
        %v3256 = vadd.f32 %v3255, %v3001
        %v3257 = vadd.f32 %v3256, %v3002
        %v3258 = vadd.f32 %v3257, %v3003
        %v3259 = vadd.f32 %v3258, %v3004
        %v3260 = vadd.f32 %v3259, %v3005
        %v3261 = vadd.f32 %v3260, %v3006
        %v3262 = vadd.f32 %v3261, %v3007
        %v3263 = vadd.f32 %v3262, %v3008
        %v3264 = vadd.f32 %v3263, %v3009
        %v3265 = vadd.f32 %v3264, %v3010
        %v3266 = vadd.f32 %v3265, %v3011
        %v3267 = vadd.f32 %v3266, %v3012
        %v3268 = vadd.f32 %v3267, %v3013
        %v3269 = vadd.f32 %v3268, %v3014
        %v3270 = vadd.f32 %v3269, %v3015
        %v3271 = vadd.f32 %v3270, %v3016
        %v3272 = vadd.f32 %v3271, %v3017
        %3273 = vadd.xlane.f32.xlu0 %v3272
        %v3274 = vpop.xlane.xlu0 %3273
        %v3275 = vadd.f32 %v3018, %v3019
        %v3276 = vadd.f32 %v3275, %v3020
        %v3277 = vadd.f32 %v3276, %v3021
        %v3278 = vadd.f32 %v3277, %v3022
        %v3279 = vadd.f32 %v3278, %v3023
        %v3280 = vadd.f32 %v3279, %v3024
        %v3281 = vadd.f32 %v3280, %v3025
        %v3282 = vadd.f32 %v3281, %v3026
        %v3283 = vadd.f32 %v3282, %v3027
        %v3284 = vadd.f32 %v3283, %v3028
        %v3285 = vadd.f32 %v3284, %v3029
        %v3286 = vadd.f32 %v3285, %v3030
        %v3287 = vadd.f32 %v3286, %v3031
        %v3288 = vadd.f32 %v3287, %v3032
        %v3289 = vadd.f32 %v3288, %v3033
        %v3290 = vadd.f32 %v3289, %v3034
        %v3291 = vadd.f32 %v3290, %v3035
        %v3292 = vadd.f32 %v3291, %v3036
        %v3293 = vadd.f32 %v3292, %v3037
        %v3294 = vadd.f32 %v3293, %v3038
        %v3295 = vadd.f32 %v3294, %v3039
        %v3296 = vadd.f32 %v3295, %v3040
        %v3297 = vadd.f32 %v3296, %v3041
        %v3298 = vadd.f32 %v3297, %v3042
        %v3299 = vadd.f32 %v3298, %v3043
        %v3300 = vadd.f32 %v3299, %v3044
        %v3301 = vadd.f32 %v3300, %v3045
        %v3302 = vadd.f32 %v3301, %v3046
        %v3303 = vadd.f32 %v3302, %v3047
        %v3304 = vadd.f32 %v3303, %v3048
        %v3305 = vadd.f32 %v3304, %v3049
        %v3306 = vadd.f32 %v3305, %v3050
        %v3307 = vadd.f32 %v3306, %v3051
        %v3308 = vadd.f32 %v3307, %v3052
        %v3309 = vadd.f32 %v3308, %v3053
        %v3310 = vadd.f32 %v3309, %v3054
        %v3311 = vadd.f32 %v3310, %v3055
        %v3312 = vadd.f32 %v3311, %v3056
        %v3313 = vadd.f32 %v3312, %v3057
        %v3314 = vadd.f32 %v3313, %v3058
        %v3315 = vadd.f32 %v3314, %v3059
        %v3316 = vadd.f32 %v3315, %v3060
        %v3317 = vadd.f32 %v3316, %v3061
        %v3318 = vadd.f32 %v3317, %v3062
        %v3319 = vadd.f32 %v3318, %v3063
        %v3320 = vadd.f32 %v3319, %v3064
        %v3321 = vadd.f32 %v3320, %v3065
        %v3322 = vadd.f32 %v3321, %v3066
        %v3323 = vadd.f32 %v3322, %v3067
        %v3324 = vadd.f32 %v3323, %v3068
        %v3325 = vadd.f32 %v3324, %v3069
        %v3326 = vadd.f32 %v3325, %v3070
        %v3327 = vadd.f32 %v3326, %v3071
        %v3328 = vadd.f32 %v3327, %v3072
        %v3329 = vadd.f32 %v3328, %v3073
        %v3330 = vadd.f32 %v3329, %v3074
        %v3331 = vadd.f32 %v3330, %v3075
        %v3332 = vadd.f32 %v3331, %v3076
        %v3333 = vadd.f32 %v3332, %v3077
        %v3334 = vadd.f32 %v3333, %v3078
        %v3335 = vadd.f32 %v3334, %v3079
        %v3336 = vadd.f32 %v3335, %v3080
        %v3337 = vadd.f32 %v3336, %v3081
        %3338 = vadd.xlane.f32.xlu0 %v3337
        %v3339 = vpop.xlane.xlu0 %3338
        %v3340 = vadd.f32 %v3082, %v3083
        %v3341 = vadd.f32 %v3340, %v3084
        %v3342 = vadd.f32 %v3341, %v3085
        %v3343 = vadd.f32 %v3342, %v3086
        %v3344 = vadd.f32 %v3343, %v3087
        %v3345 = vadd.f32 %v3344, %v3088
        %v3346 = vadd.f32 %v3345, %v3089
        %v3347 = vadd.f32 %v3346, %v3090
        %v3348 = vadd.f32 %v3347, %v3091
        %v3349 = vadd.f32 %v3348, %v3092
        %v3350 = vadd.f32 %v3349, %v3093
        %v3351 = vadd.f32 %v3350, %v3094
        %v3352 = vadd.f32 %v3351, %v3095
        %v3353 = vadd.f32 %v3352, %v3096
        %v3354 = vadd.f32 %v3353, %v3097
        %v3355 = vadd.f32 %v3354, %v3098
        %v3356 = vadd.f32 %v3355, %v3099
        %v3357 = vadd.f32 %v3356, %v3100
        %v3358 = vadd.f32 %v3357, %v3101
        %v3359 = vadd.f32 %v3358, %v3102
        %v3360 = vadd.f32 %v3359, %v3103
        %v3361 = vadd.f32 %v3360, %v3104
        %v3362 = vadd.f32 %v3361, %v3105
        %v3363 = vadd.f32 %v3362, %v3106
        %v3364 = vadd.f32 %v3363, %v3107
        %v3365 = vadd.f32 %v3364, %v3108
        %v3366 = vadd.f32 %v3365, %v3109
        %v3367 = vadd.f32 %v3366, %v3110
        %v3368 = vadd.f32 %v3367, %v3111
        %v3369 = vadd.f32 %v3368, %v3112
        %v3370 = vadd.f32 %v3369, %v3113
        %v3371 = vadd.f32 %v3370, %v3114
        %v3372 = vadd.f32 %v3371, %v3115
        %v3373 = vadd.f32 %v3372, %v3116
        %v3374 = vadd.f32 %v3373, %v3117
        %v3375 = vadd.f32 %v3374, %v3118
        %v3376 = vadd.f32 %v3375, %v3119
        %v3377 = vadd.f32 %v3376, %v3120
        %v3378 = vadd.f32 %v3377, %v3121
        %v3379 = vadd.f32 %v3378, %v3122
        %v3380 = vadd.f32 %v3379, %v3123
        %v3381 = vadd.f32 %v3380, %v3124
        %v3382 = vadd.f32 %v3381, %v3125
        %v3383 = vadd.f32 %v3382, %v3126
        %v3384 = vadd.f32 %v3383, %v3127
        %v3385 = vadd.f32 %v3384, %v3128
        %v3386 = vadd.f32 %v3385, %v3129
        %v3387 = vadd.f32 %v3386, %v3130
        %v3388 = vadd.f32 %v3387, %v3131
        %v3389 = vadd.f32 %v3388, %v3132
        %v3390 = vadd.f32 %v3389, %v3133
        %v3391 = vadd.f32 %v3390, %v3134
        %v3392 = vadd.f32 %v3391, %v3135
        %v3393 = vadd.f32 %v3392, %v3136
        %v3394 = vadd.f32 %v3393, %v3137
        %v3395 = vadd.f32 %v3394, %v3138
        %v3396 = vadd.f32 %v3395, %v3139
        %v3397 = vadd.f32 %v3396, %v3140
        %v3398 = vadd.f32 %v3397, %v3141
        %v3399 = vadd.f32 %v3398, %v3142
        %v3400 = vadd.f32 %v3399, %v3143
        %v3401 = vadd.f32 %v3400, %v3144
        %v3402 = vadd.f32 %v3401, %v3145
        %3403 = vadd.xlane.f32.xlu0 %v3402
        %v3404 = vpop.xlane.xlu0 %3403
        %v3405 = vadd.f32 %v3146, %v3147
        %v3406 = vadd.f32 %v3405, %v3148
        %v3407 = vadd.f32 %v3406, %v3149
        %v3408 = vadd.f32 %v3407, %v3150
        %v3409 = vadd.f32 %v3408, %v3151
        %v3410 = vadd.f32 %v3409, %v3152
        %v3411 = vadd.f32 %v3410, %v3153
        %v3412 = vadd.f32 %v3411, %v3154
        %v3413 = vadd.f32 %v3412, %v3155
        %v3414 = vadd.f32 %v3413, %v3156
        %v3415 = vadd.f32 %v3414, %v3157
        %v3416 = vadd.f32 %v3415, %v3158
        %v3417 = vadd.f32 %v3416, %v3159
        %v3418 = vadd.f32 %v3417, %v3160
        %v3419 = vadd.f32 %v3418, %v3161
        %v3420 = vadd.f32 %v3419, %v3162
        %v3421 = vadd.f32 %v3420, %v3163
        %v3422 = vadd.f32 %v3421, %v3164
        %v3423 = vadd.f32 %v3422, %v3165
        %v3424 = vadd.f32 %v3423, %v3166
        %v3425 = vadd.f32 %v3424, %v3167
        %v3426 = vadd.f32 %v3425, %v3168
        %v3427 = vadd.f32 %v3426, %v3169
        %v3428 = vadd.f32 %v3427, %v3170
        %v3429 = vadd.f32 %v3428, %v3171
        %v3430 = vadd.f32 %v3429, %v3172
        %v3431 = vadd.f32 %v3430, %v3173
        %v3432 = vadd.f32 %v3431, %v3174
        %v3433 = vadd.f32 %v3432, %v3175
        %v3434 = vadd.f32 %v3433, %v3176
        %v3435 = vadd.f32 %v3434, %v3177
        %v3436 = vadd.f32 %v3435, %v3178
        %v3437 = vadd.f32 %v3436, %v3179
        %v3438 = vadd.f32 %v3437, %v3180
        %v3439 = vadd.f32 %v3438, %v3181
        %v3440 = vadd.f32 %v3439, %v3182
        %v3441 = vadd.f32 %v3440, %v3183
        %v3442 = vadd.f32 %v3441, %v3184
        %v3443 = vadd.f32 %v3442, %v3185
        %v3444 = vadd.f32 %v3443, %v3186
        %v3445 = vadd.f32 %v3444, %v3187
        %v3446 = vadd.f32 %v3445, %v3188
        %v3447 = vadd.f32 %v3446, %v3189
        %v3448 = vadd.f32 %v3447, %v3190
        %v3449 = vadd.f32 %v3448, %v3191
        %v3450 = vadd.f32 %v3449, %v3192
        %v3451 = vadd.f32 %v3450, %v3193
        %v3452 = vadd.f32 %v3451, %v3194
        %v3453 = vadd.f32 %v3452, %v3195
        %v3454 = vadd.f32 %v3453, %v3196
        %v3455 = vadd.f32 %v3454, %v3197
        %v3456 = vadd.f32 %v3455, %v3198
        %v3457 = vadd.f32 %v3456, %v3199
        %v3458 = vadd.f32 %v3457, %v3200
        %v3459 = vadd.f32 %v3458, %v3201
        %v3460 = vadd.f32 %v3459, %v3202
        %v3461 = vadd.f32 %v3460, %v3203
        %v3462 = vadd.f32 %v3461, %v3204
        %v3463 = vadd.f32 %v3462, %v3205
        %v3464 = vadd.f32 %v3463, %v3206
        %v3465 = vadd.f32 %v3464, %v3207
        %v3466 = vadd.f32 %v3465, %v3208
        %v3467 = vadd.f32 %v3466, %v3209
        %3468 = vadd.xlane.f32.xlu0 %v3467
        %v3469 = vpop.xlane.xlu0 %3468
        %v3470 = vadd.f32 %v3274, 0.0
        %v3471 = vadd.f32 %v3339, 0.0
        %v3472 = vadd.f32 %v3404, 0.0
        %v3473 = vadd.f32 %v3469, 0.0
        %v3474 = vmul.f32 %v3470, 0.00012207031
        %v3475 = vmul.f32 %v3471, 0.00012207031
        %v3476 = vmul.f32 %v3472, 0.00012207031
        %v3477 = vmul.f32 %v3473, 0.00012207031
        %v3478 = vadd.f32 %v3474, 1e-05
        %v3479 = vadd.f32 %v3475, 1e-05
        %v3480 = vadd.f32 %v3476, 1e-05
        %v3481 = vadd.f32 %v3477, 1e-05
        %v3482 = vrsqrt.pop %v3478
        %v3483 = vrsqrt.pop %v3479
        %v3484 = vrsqrt.pop %v3480
        %v3485 = vrsqrt.pop %v3481
        %v3486 = vmul.f32 %v546, %v3482
        %v3487 = vmul.f32 %v547, %v3483
        %v3488 = vmul.f32 %v548, %v3484
        %v3489 = vmul.f32 %v549, %v3485
        %v3490 = vmul.f32 %v2694, %v3486
        %v3491 = vmul.f32 %v2695, %v3487
        %v3492 = vmul.f32 %v2696, %v3488
        %v3493 = vmul.f32 %v2697, %v3489
        %v3494 = vsub.f32 %v550, %v3490
        %v3495 = vsub.f32 %v551, %v3491
        %v3496 = vsub.f32 %v552, %v3492
        %v3497 = vsub.f32 %v553, %v3493
        %3499 = vset.pattern.permute.xlu0 0
        %3500 = vperm.xlu0 %3499, %v3486
        %v3501 = vpop.permute.xlu0 %3500
        %3504 = vset.pattern.permute.xlu0 0
        %3505 = vperm.xlu0 %3504, %v3487
        %v3506 = vpop.permute.xlu0 %3505
        %3509 = vset.pattern.permute.xlu0 0
        %3510 = vperm.xlu0 %3509, %v3488
        %v3511 = vpop.permute.xlu0 %3510
        %3514 = vset.pattern.permute.xlu0 0
        %3515 = vperm.xlu0 %3514, %v3489
        %v3516 = vpop.permute.xlu0 %3515
        %v3518 = vmul.f32 %v2174, %v3501
        %v3519 = vmul.f32 %v2175, %v3501
        %v3520 = vmul.f32 %v2176, %v3501
        %v3521 = vmul.f32 %v2177, %v3501
        %v3522 = vmul.f32 %v2178, %v3501
        %v3523 = vmul.f32 %v2179, %v3501
        %v3524 = vmul.f32 %v2180, %v3501
        %v3525 = vmul.f32 %v2181, %v3501
        %v3526 = vmul.f32 %v2182, %v3501
        %v3527 = vmul.f32 %v2183, %v3501
        %v3528 = vmul.f32 %v2184, %v3501
        %v3529 = vmul.f32 %v2185, %v3501
        %v3530 = vmul.f32 %v2186, %v3501
        %v3531 = vmul.f32 %v2187, %v3501
        %v3532 = vmul.f32 %v2188, %v3501
        %v3533 = vmul.f32 %v2189, %v3501
        %v3534 = vmul.f32 %v2190, %v3501
        %v3535 = vmul.f32 %v2191, %v3501
        %v3536 = vmul.f32 %v2192, %v3501
        %v3537 = vmul.f32 %v2193, %v3501
        %v3538 = vmul.f32 %v2194, %v3501
        %v3539 = vmul.f32 %v2195, %v3501
        %v3540 = vmul.f32 %v2196, %v3501
        %v3541 = vmul.f32 %v2197, %v3501
        %v3542 = vmul.f32 %v2198, %v3501
        %v3543 = vmul.f32 %v2199, %v3501
        %v3544 = vmul.f32 %v2200, %v3501
        %v3545 = vmul.f32 %v2201, %v3501
        %v3546 = vmul.f32 %v2202, %v3501
        %v3547 = vmul.f32 %v2203, %v3501
        %v3548 = vmul.f32 %v2204, %v3501
        %v3549 = vmul.f32 %v2205, %v3501
        %v3550 = vmul.f32 %v2206, %v3501
        %v3551 = vmul.f32 %v2207, %v3501
        %v3552 = vmul.f32 %v2208, %v3501
        %v3553 = vmul.f32 %v2209, %v3501
        %v3554 = vmul.f32 %v2210, %v3501
        %v3555 = vmul.f32 %v2211, %v3501
        %v3556 = vmul.f32 %v2212, %v3501
        %v3557 = vmul.f32 %v2213, %v3501
        %v3558 = vmul.f32 %v2214, %v3501
        %v3559 = vmul.f32 %v2215, %v3501
        %v3560 = vmul.f32 %v2216, %v3501
        %v3561 = vmul.f32 %v2217, %v3501
        %v3562 = vmul.f32 %v2218, %v3501
        %v3563 = vmul.f32 %v2219, %v3501
        %v3564 = vmul.f32 %v2220, %v3501
        %v3565 = vmul.f32 %v2221, %v3501
        %v3566 = vmul.f32 %v2222, %v3501
        %v3567 = vmul.f32 %v2223, %v3501
        %v3568 = vmul.f32 %v2224, %v3501
        %v3569 = vmul.f32 %v2225, %v3501
        %v3570 = vmul.f32 %v2226, %v3501
        %v3571 = vmul.f32 %v2227, %v3501
        %v3572 = vmul.f32 %v2228, %v3501
        %v3573 = vmul.f32 %v2229, %v3501
        %v3574 = vmul.f32 %v2230, %v3501
        %v3575 = vmul.f32 %v2231, %v3501
        %v3576 = vmul.f32 %v2232, %v3501
        %v3577 = vmul.f32 %v2233, %v3501
        %v3578 = vmul.f32 %v2234, %v3501
        %v3579 = vmul.f32 %v2235, %v3501
        %v3580 = vmul.f32 %v2236, %v3501
        %v3581 = vmul.f32 %v2237, %v3501
        %v3582 = vmul.f32 %v2238, %v3506
        %v3583 = vmul.f32 %v2239, %v3506
        %v3584 = vmul.f32 %v2240, %v3506
        %v3585 = vmul.f32 %v2241, %v3506
        %v3586 = vmul.f32 %v2242, %v3506
        %v3587 = vmul.f32 %v2243, %v3506
        %v3588 = vmul.f32 %v2244, %v3506
        %v3589 = vmul.f32 %v2245, %v3506
        %v3590 = vmul.f32 %v2246, %v3506
        %v3591 = vmul.f32 %v2247, %v3506
        %v3592 = vmul.f32 %v2248, %v3506
        %v3593 = vmul.f32 %v2249, %v3506
        %v3594 = vmul.f32 %v2250, %v3506
        %v3595 = vmul.f32 %v2251, %v3506
        %v3596 = vmul.f32 %v2252, %v3506
        %v3597 = vmul.f32 %v2253, %v3506
        %v3598 = vmul.f32 %v2254, %v3506
        %v3599 = vmul.f32 %v2255, %v3506
        %v3600 = vmul.f32 %v2256, %v3506
        %v3601 = vmul.f32 %v2257, %v3506
        %v3602 = vmul.f32 %v2258, %v3506
        %v3603 = vmul.f32 %v2259, %v3506
        %v3604 = vmul.f32 %v2260, %v3506
        %v3605 = vmul.f32 %v2261, %v3506
        %v3606 = vmul.f32 %v2262, %v3506
        %v3607 = vmul.f32 %v2263, %v3506
        %v3608 = vmul.f32 %v2264, %v3506
        %v3609 = vmul.f32 %v2265, %v3506
        %v3610 = vmul.f32 %v2266, %v3506
        %v3611 = vmul.f32 %v2267, %v3506
        %v3612 = vmul.f32 %v2268, %v3506
        %v3613 = vmul.f32 %v2269, %v3506
        %v3614 = vmul.f32 %v2270, %v3506
        %v3615 = vmul.f32 %v2271, %v3506
        %v3616 = vmul.f32 %v2272, %v3506
        %v3617 = vmul.f32 %v2273, %v3506
        %v3618 = vmul.f32 %v2274, %v3506
        %v3619 = vmul.f32 %v2275, %v3506
        %v3620 = vmul.f32 %v2276, %v3506
        %v3621 = vmul.f32 %v2277, %v3506
        %v3622 = vmul.f32 %v2278, %v3506
        %v3623 = vmul.f32 %v2279, %v3506
        %v3624 = vmul.f32 %v2280, %v3506
        %v3625 = vmul.f32 %v2281, %v3506
        %v3626 = vmul.f32 %v2282, %v3506
        %v3627 = vmul.f32 %v2283, %v3506
        %v3628 = vmul.f32 %v2284, %v3506
        %v3629 = vmul.f32 %v2285, %v3506
        %v3630 = vmul.f32 %v2286, %v3506
        %v3631 = vmul.f32 %v2287, %v3506
        %v3632 = vmul.f32 %v2288, %v3506
        %v3633 = vmul.f32 %v2289, %v3506
        %v3634 = vmul.f32 %v2290, %v3506
        %v3635 = vmul.f32 %v2291, %v3506
        %v3636 = vmul.f32 %v2292, %v3506
        %v3637 = vmul.f32 %v2293, %v3506
        %v3638 = vmul.f32 %v2294, %v3506
        %v3639 = vmul.f32 %v2295, %v3506
        %v3640 = vmul.f32 %v2296, %v3506
        %v3641 = vmul.f32 %v2297, %v3506
        %v3642 = vmul.f32 %v2298, %v3506
        %v3643 = vmul.f32 %v2299, %v3506
        %v3644 = vmul.f32 %v2300, %v3506
        %v3645 = vmul.f32 %v2301, %v3506
        %v3646 = vmul.f32 %v2302, %v3511
        %v3647 = vmul.f32 %v2303, %v3511
        %v3648 = vmul.f32 %v2304, %v3511
        %v3649 = vmul.f32 %v2305, %v3511
        %v3650 = vmul.f32 %v2306, %v3511
        %v3651 = vmul.f32 %v2307, %v3511
        %v3652 = vmul.f32 %v2308, %v3511
        %v3653 = vmul.f32 %v2309, %v3511
        %v3654 = vmul.f32 %v2310, %v3511
        %v3655 = vmul.f32 %v2311, %v3511
        %v3656 = vmul.f32 %v2312, %v3511
        %v3657 = vmul.f32 %v2313, %v3511
        %v3658 = vmul.f32 %v2314, %v3511
        %v3659 = vmul.f32 %v2315, %v3511
        %v3660 = vmul.f32 %v2316, %v3511
        %v3661 = vmul.f32 %v2317, %v3511
        %v3662 = vmul.f32 %v2318, %v3511
        %v3663 = vmul.f32 %v2319, %v3511
        %v3664 = vmul.f32 %v2320, %v3511
        %v3665 = vmul.f32 %v2321, %v3511
        %v3666 = vmul.f32 %v2322, %v3511
        %v3667 = vmul.f32 %v2323, %v3511
        %v3668 = vmul.f32 %v2324, %v3511
        %v3669 = vmul.f32 %v2325, %v3511
        %v3670 = vmul.f32 %v2326, %v3511
        %v3671 = vmul.f32 %v2327, %v3511
        %v3672 = vmul.f32 %v2328, %v3511
        %v3673 = vmul.f32 %v2329, %v3511
        %v3674 = vmul.f32 %v2330, %v3511
        %v3675 = vmul.f32 %v2331, %v3511
        %v3676 = vmul.f32 %v2332, %v3511
        %v3677 = vmul.f32 %v2333, %v3511
        %v3678 = vmul.f32 %v2334, %v3511
        %v3679 = vmul.f32 %v2335, %v3511
        %v3680 = vmul.f32 %v2336, %v3511
        %v3681 = vmul.f32 %v2337, %v3511
        %v3682 = vmul.f32 %v2338, %v3511
        %v3683 = vmul.f32 %v2339, %v3511
        %v3684 = vmul.f32 %v2340, %v3511
        %v3685 = vmul.f32 %v2341, %v3511
        %v3686 = vmul.f32 %v2342, %v3511
        %v3687 = vmul.f32 %v2343, %v3511
        %v3688 = vmul.f32 %v2344, %v3511
        %v3689 = vmul.f32 %v2345, %v3511
        %v3690 = vmul.f32 %v2346, %v3511
        %v3691 = vmul.f32 %v2347, %v3511
        %v3692 = vmul.f32 %v2348, %v3511
        %v3693 = vmul.f32 %v2349, %v3511
        %v3694 = vmul.f32 %v2350, %v3511
        %v3695 = vmul.f32 %v2351, %v3511
        %v3696 = vmul.f32 %v2352, %v3511
        %v3697 = vmul.f32 %v2353, %v3511
        %v3698 = vmul.f32 %v2354, %v3511
        %v3699 = vmul.f32 %v2355, %v3511
        %v3700 = vmul.f32 %v2356, %v3511
        %v3701 = vmul.f32 %v2357, %v3511
        %v3702 = vmul.f32 %v2358, %v3511
        %v3703 = vmul.f32 %v2359, %v3511
        %v3704 = vmul.f32 %v2360, %v3511
        %v3705 = vmul.f32 %v2361, %v3511
        %v3706 = vmul.f32 %v2362, %v3511
        %v3707 = vmul.f32 %v2363, %v3511
        %v3708 = vmul.f32 %v2364, %v3511
        %v3709 = vmul.f32 %v2365, %v3511
        %v3710 = vmul.f32 %v2366, %v3516
        %v3711 = vmul.f32 %v2367, %v3516
        %v3712 = vmul.f32 %v2368, %v3516
        %v3713 = vmul.f32 %v2369, %v3516
        %v3714 = vmul.f32 %v2370, %v3516
        %v3715 = vmul.f32 %v2371, %v3516
        %v3716 = vmul.f32 %v2372, %v3516
        %v3717 = vmul.f32 %v2373, %v3516
        %v3718 = vmul.f32 %v2374, %v3516
        %v3719 = vmul.f32 %v2375, %v3516
        %v3720 = vmul.f32 %v2376, %v3516
        %v3721 = vmul.f32 %v2377, %v3516
        %v3722 = vmul.f32 %v2378, %v3516
        %v3723 = vmul.f32 %v2379, %v3516
        %v3724 = vmul.f32 %v2380, %v3516
        %v3725 = vmul.f32 %v2381, %v3516
        %v3726 = vmul.f32 %v2382, %v3516
        %v3727 = vmul.f32 %v2383, %v3516
        %v3728 = vmul.f32 %v2384, %v3516
        %v3729 = vmul.f32 %v2385, %v3516
        %v3730 = vmul.f32 %v2386, %v3516
        %v3731 = vmul.f32 %v2387, %v3516
        %v3732 = vmul.f32 %v2388, %v3516
        %v3733 = vmul.f32 %v2389, %v3516
        %v3734 = vmul.f32 %v2390, %v3516
        %v3735 = vmul.f32 %v2391, %v3516
        %v3736 = vmul.f32 %v2392, %v3516
        %v3737 = vmul.f32 %v2393, %v3516
        %v3738 = vmul.f32 %v2394, %v3516
        %v3739 = vmul.f32 %v2395, %v3516
        %v3740 = vmul.f32 %v2396, %v3516
        %v3741 = vmul.f32 %v2397, %v3516
        %v3742 = vmul.f32 %v2398, %v3516
        %v3743 = vmul.f32 %v2399, %v3516
        %v3744 = vmul.f32 %v2400, %v3516
        %v3745 = vmul.f32 %v2401, %v3516
        %v3746 = vmul.f32 %v2402, %v3516
        %v3747 = vmul.f32 %v2403, %v3516
        %v3748 = vmul.f32 %v2404, %v3516
        %v3749 = vmul.f32 %v2405, %v3516
        %v3750 = vmul.f32 %v2406, %v3516
        %v3751 = vmul.f32 %v2407, %v3516
        %v3752 = vmul.f32 %v2408, %v3516
        %v3753 = vmul.f32 %v2409, %v3516
        %v3754 = vmul.f32 %v2410, %v3516
        %v3755 = vmul.f32 %v2411, %v3516
        %v3756 = vmul.f32 %v2412, %v3516
        %v3757 = vmul.f32 %v2413, %v3516
        %v3758 = vmul.f32 %v2414, %v3516
        %v3759 = vmul.f32 %v2415, %v3516
        %v3760 = vmul.f32 %v2416, %v3516
        %v3761 = vmul.f32 %v2417, %v3516
        %v3762 = vmul.f32 %v2418, %v3516
        %v3763 = vmul.f32 %v2419, %v3516
        %v3764 = vmul.f32 %v2420, %v3516
        %v3765 = vmul.f32 %v2421, %v3516
        %v3766 = vmul.f32 %v2422, %v3516
        %v3767 = vmul.f32 %v2423, %v3516
        %v3768 = vmul.f32 %v2424, %v3516
        %v3769 = vmul.f32 %v2425, %v3516
        %v3770 = vmul.f32 %v2426, %v3516
        %v3771 = vmul.f32 %v2427, %v3516
        %v3772 = vmul.f32 %v2428, %v3516
        %v3773 = vmul.f32 %v2429, %v3516
        %3775 = vset.pattern.permute.xlu0 0
        %3776 = vperm.xlu0 %3775, %v3494
        %v3777 = vpop.permute.xlu0 %3776
        %3780 = vset.pattern.permute.xlu0 0
        %3781 = vperm.xlu0 %3780, %v3495
        %v3782 = vpop.permute.xlu0 %3781
        %3785 = vset.pattern.permute.xlu0 0
        %3786 = vperm.xlu0 %3785, %v3496
        %v3787 = vpop.permute.xlu0 %3786
        %3790 = vset.pattern.permute.xlu0 0
        %3791 = vperm.xlu0 %3790, %v3497
        %v3792 = vpop.permute.xlu0 %3791
        %v3794 = vadd.f32 %v3518, %v3777
        %v3795 = vadd.f32 %v3519, %v3777
        %v3796 = vadd.f32 %v3520, %v3777
        %v3797 = vadd.f32 %v3521, %v3777
        %v3798 = vadd.f32 %v3522, %v3777
        %v3799 = vadd.f32 %v3523, %v3777
        %v3800 = vadd.f32 %v3524, %v3777
        %v3801 = vadd.f32 %v3525, %v3777
        %v3802 = vadd.f32 %v3526, %v3777
        %v3803 = vadd.f32 %v3527, %v3777
        %v3804 = vadd.f32 %v3528, %v3777
        %v3805 = vadd.f32 %v3529, %v3777
        %v3806 = vadd.f32 %v3530, %v3777
        %v3807 = vadd.f32 %v3531, %v3777
        %v3808 = vadd.f32 %v3532, %v3777
        %v3809 = vadd.f32 %v3533, %v3777
        %v3810 = vadd.f32 %v3534, %v3777
        %v3811 = vadd.f32 %v3535, %v3777
        %v3812 = vadd.f32 %v3536, %v3777
        %v3813 = vadd.f32 %v3537, %v3777
        %v3814 = vadd.f32 %v3538, %v3777
        %v3815 = vadd.f32 %v3539, %v3777
        %v3816 = vadd.f32 %v3540, %v3777
        %v3817 = vadd.f32 %v3541, %v3777
        %v3818 = vadd.f32 %v3542, %v3777
        %v3819 = vadd.f32 %v3543, %v3777
        %v3820 = vadd.f32 %v3544, %v3777
        %v3821 = vadd.f32 %v3545, %v3777
        %v3822 = vadd.f32 %v3546, %v3777
        %v3823 = vadd.f32 %v3547, %v3777
        %v3824 = vadd.f32 %v3548, %v3777
        %v3825 = vadd.f32 %v3549, %v3777
        %v3826 = vadd.f32 %v3550, %v3777
        %v3827 = vadd.f32 %v3551, %v3777
        %v3828 = vadd.f32 %v3552, %v3777
        %v3829 = vadd.f32 %v3553, %v3777
        %v3830 = vadd.f32 %v3554, %v3777
        %v3831 = vadd.f32 %v3555, %v3777
        %v3832 = vadd.f32 %v3556, %v3777
        %v3833 = vadd.f32 %v3557, %v3777
        %v3834 = vadd.f32 %v3558, %v3777
        %v3835 = vadd.f32 %v3559, %v3777
        %v3836 = vadd.f32 %v3560, %v3777
        %v3837 = vadd.f32 %v3561, %v3777
        %v3838 = vadd.f32 %v3562, %v3777
        %v3839 = vadd.f32 %v3563, %v3777
        %v3840 = vadd.f32 %v3564, %v3777
        %v3841 = vadd.f32 %v3565, %v3777
        %v3842 = vadd.f32 %v3566, %v3777
        %v3843 = vadd.f32 %v3567, %v3777
        %v3844 = vadd.f32 %v3568, %v3777
        %v3845 = vadd.f32 %v3569, %v3777
        %v3846 = vadd.f32 %v3570, %v3777
        %v3847 = vadd.f32 %v3571, %v3777
        %v3848 = vadd.f32 %v3572, %v3777
        %v3849 = vadd.f32 %v3573, %v3777
        %v3850 = vadd.f32 %v3574, %v3777
        %v3851 = vadd.f32 %v3575, %v3777
        %v3852 = vadd.f32 %v3576, %v3777
        %v3853 = vadd.f32 %v3577, %v3777
        %v3854 = vadd.f32 %v3578, %v3777
        %v3855 = vadd.f32 %v3579, %v3777
        %v3856 = vadd.f32 %v3580, %v3777
        %v3857 = vadd.f32 %v3581, %v3777
        %v3858 = vadd.f32 %v3582, %v3782
        %v3859 = vadd.f32 %v3583, %v3782
        %v3860 = vadd.f32 %v3584, %v3782
        %v3861 = vadd.f32 %v3585, %v3782
        %v3862 = vadd.f32 %v3586, %v3782
        %v3863 = vadd.f32 %v3587, %v3782
        %v3864 = vadd.f32 %v3588, %v3782
        %v3865 = vadd.f32 %v3589, %v3782
        %v3866 = vadd.f32 %v3590, %v3782
        %v3867 = vadd.f32 %v3591, %v3782
        %v3868 = vadd.f32 %v3592, %v3782
        %v3869 = vadd.f32 %v3593, %v3782
        %v3870 = vadd.f32 %v3594, %v3782
        %v3871 = vadd.f32 %v3595, %v3782
        %v3872 = vadd.f32 %v3596, %v3782
        %v3873 = vadd.f32 %v3597, %v3782
        %v3874 = vadd.f32 %v3598, %v3782
        %v3875 = vadd.f32 %v3599, %v3782
        %v3876 = vadd.f32 %v3600, %v3782
        %v3877 = vadd.f32 %v3601, %v3782
        %v3878 = vadd.f32 %v3602, %v3782
        %v3879 = vadd.f32 %v3603, %v3782
        %v3880 = vadd.f32 %v3604, %v3782
        %v3881 = vadd.f32 %v3605, %v3782
        %v3882 = vadd.f32 %v3606, %v3782
        %v3883 = vadd.f32 %v3607, %v3782
        %v3884 = vadd.f32 %v3608, %v3782
        %v3885 = vadd.f32 %v3609, %v3782
        %v3886 = vadd.f32 %v3610, %v3782
        %v3887 = vadd.f32 %v3611, %v3782
        %v3888 = vadd.f32 %v3612, %v3782
        %v3889 = vadd.f32 %v3613, %v3782
        %v3890 = vadd.f32 %v3614, %v3782
        %v3891 = vadd.f32 %v3615, %v3782
        %v3892 = vadd.f32 %v3616, %v3782
        %v3893 = vadd.f32 %v3617, %v3782
        %v3894 = vadd.f32 %v3618, %v3782
        %v3895 = vadd.f32 %v3619, %v3782
        %v3896 = vadd.f32 %v3620, %v3782
        %v3897 = vadd.f32 %v3621, %v3782
        %v3898 = vadd.f32 %v3622, %v3782
        %v3899 = vadd.f32 %v3623, %v3782
        %v3900 = vadd.f32 %v3624, %v3782
        %v3901 = vadd.f32 %v3625, %v3782
        %v3902 = vadd.f32 %v3626, %v3782
        %v3903 = vadd.f32 %v3627, %v3782
        %v3904 = vadd.f32 %v3628, %v3782
        %v3905 = vadd.f32 %v3629, %v3782
        %v3906 = vadd.f32 %v3630, %v3782
        %v3907 = vadd.f32 %v3631, %v3782
        %v3908 = vadd.f32 %v3632, %v3782
        %v3909 = vadd.f32 %v3633, %v3782
        %v3910 = vadd.f32 %v3634, %v3782
        %v3911 = vadd.f32 %v3635, %v3782
        %v3912 = vadd.f32 %v3636, %v3782
        %v3913 = vadd.f32 %v3637, %v3782
        %v3914 = vadd.f32 %v3638, %v3782
        %v3915 = vadd.f32 %v3639, %v3782
        %v3916 = vadd.f32 %v3640, %v3782
        %v3917 = vadd.f32 %v3641, %v3782
        %v3918 = vadd.f32 %v3642, %v3782
        %v3919 = vadd.f32 %v3643, %v3782
        %v3920 = vadd.f32 %v3644, %v3782
        %v3921 = vadd.f32 %v3645, %v3782
        %v3922 = vadd.f32 %v3646, %v3787
        %v3923 = vadd.f32 %v3647, %v3787
        %v3924 = vadd.f32 %v3648, %v3787
        %v3925 = vadd.f32 %v3649, %v3787
        %v3926 = vadd.f32 %v3650, %v3787
        %v3927 = vadd.f32 %v3651, %v3787
        %v3928 = vadd.f32 %v3652, %v3787
        %v3929 = vadd.f32 %v3653, %v3787
        %v3930 = vadd.f32 %v3654, %v3787
        %v3931 = vadd.f32 %v3655, %v3787
        %v3932 = vadd.f32 %v3656, %v3787
        %v3933 = vadd.f32 %v3657, %v3787
        %v3934 = vadd.f32 %v3658, %v3787
        %v3935 = vadd.f32 %v3659, %v3787
        %v3936 = vadd.f32 %v3660, %v3787
        %v3937 = vadd.f32 %v3661, %v3787
        %v3938 = vadd.f32 %v3662, %v3787
        %v3939 = vadd.f32 %v3663, %v3787
        %v3940 = vadd.f32 %v3664, %v3787
        %v3941 = vadd.f32 %v3665, %v3787
        %v3942 = vadd.f32 %v3666, %v3787
        %v3943 = vadd.f32 %v3667, %v3787
        %v3944 = vadd.f32 %v3668, %v3787
        %v3945 = vadd.f32 %v3669, %v3787
        %v3946 = vadd.f32 %v3670, %v3787
        %v3947 = vadd.f32 %v3671, %v3787
        %v3948 = vadd.f32 %v3672, %v3787
        %v3949 = vadd.f32 %v3673, %v3787
        %v3950 = vadd.f32 %v3674, %v3787
        %v3951 = vadd.f32 %v3675, %v3787
        %v3952 = vadd.f32 %v3676, %v3787
        %v3953 = vadd.f32 %v3677, %v3787
        %v3954 = vadd.f32 %v3678, %v3787
        %v3955 = vadd.f32 %v3679, %v3787
        %v3956 = vadd.f32 %v3680, %v3787
        %v3957 = vadd.f32 %v3681, %v3787
        %v3958 = vadd.f32 %v3682, %v3787
        %v3959 = vadd.f32 %v3683, %v3787
        %v3960 = vadd.f32 %v3684, %v3787
        %v3961 = vadd.f32 %v3685, %v3787
        %v3962 = vadd.f32 %v3686, %v3787
        %v3963 = vadd.f32 %v3687, %v3787
        %v3964 = vadd.f32 %v3688, %v3787
        %v3965 = vadd.f32 %v3689, %v3787
        %v3966 = vadd.f32 %v3690, %v3787
        %v3967 = vadd.f32 %v3691, %v3787
        %v3968 = vadd.f32 %v3692, %v3787
        %v3969 = vadd.f32 %v3693, %v3787
        %v3970 = vadd.f32 %v3694, %v3787
        %v3971 = vadd.f32 %v3695, %v3787
        %v3972 = vadd.f32 %v3696, %v3787
        %v3973 = vadd.f32 %v3697, %v3787
        %v3974 = vadd.f32 %v3698, %v3787
        %v3975 = vadd.f32 %v3699, %v3787
        %v3976 = vadd.f32 %v3700, %v3787
        %v3977 = vadd.f32 %v3701, %v3787
        %v3978 = vadd.f32 %v3702, %v3787
        %v3979 = vadd.f32 %v3703, %v3787
        %v3980 = vadd.f32 %v3704, %v3787
        %v3981 = vadd.f32 %v3705, %v3787
        %v3982 = vadd.f32 %v3706, %v3787
        %v3983 = vadd.f32 %v3707, %v3787
        %v3984 = vadd.f32 %v3708, %v3787
        %v3985 = vadd.f32 %v3709, %v3787
        %v3986 = vadd.f32 %v3710, %v3792
        %v3987 = vadd.f32 %v3711, %v3792
        %v3988 = vadd.f32 %v3712, %v3792
        %v3989 = vadd.f32 %v3713, %v3792
        %v3990 = vadd.f32 %v3714, %v3792
        %v3991 = vadd.f32 %v3715, %v3792
        %v3992 = vadd.f32 %v3716, %v3792
        %v3993 = vadd.f32 %v3717, %v3792
        %v3994 = vadd.f32 %v3718, %v3792
        %v3995 = vadd.f32 %v3719, %v3792
        %v3996 = vadd.f32 %v3720, %v3792
        %v3997 = vadd.f32 %v3721, %v3792
        %v3998 = vadd.f32 %v3722, %v3792
        %v3999 = vadd.f32 %v3723, %v3792
        %v4000 = vadd.f32 %v3724, %v3792
        %v4001 = vadd.f32 %v3725, %v3792
        %v4002 = vadd.f32 %v3726, %v3792
        %v4003 = vadd.f32 %v3727, %v3792
        %v4004 = vadd.f32 %v3728, %v3792
        %v4005 = vadd.f32 %v3729, %v3792
        %v4006 = vadd.f32 %v3730, %v3792
        %v4007 = vadd.f32 %v3731, %v3792
        %v4008 = vadd.f32 %v3732, %v3792
        %v4009 = vadd.f32 %v3733, %v3792
        %v4010 = vadd.f32 %v3734, %v3792
        %v4011 = vadd.f32 %v3735, %v3792
        %v4012 = vadd.f32 %v3736, %v3792
        %v4013 = vadd.f32 %v3737, %v3792
        %v4014 = vadd.f32 %v3738, %v3792
        %v4015 = vadd.f32 %v3739, %v3792
        %v4016 = vadd.f32 %v3740, %v3792
        %v4017 = vadd.f32 %v3741, %v3792
        %v4018 = vadd.f32 %v3742, %v3792
        %v4019 = vadd.f32 %v3743, %v3792
        %v4020 = vadd.f32 %v3744, %v3792
        %v4021 = vadd.f32 %v3745, %v3792
        %v4022 = vadd.f32 %v3746, %v3792
        %v4023 = vadd.f32 %v3747, %v3792
        %v4024 = vadd.f32 %v3748, %v3792
        %v4025 = vadd.f32 %v3749, %v3792
        %v4026 = vadd.f32 %v3750, %v3792
        %v4027 = vadd.f32 %v3751, %v3792
        %v4028 = vadd.f32 %v3752, %v3792
        %v4029 = vadd.f32 %v3753, %v3792
        %v4030 = vadd.f32 %v3754, %v3792
        %v4031 = vadd.f32 %v3755, %v3792
        %v4032 = vadd.f32 %v3756, %v3792
        %v4033 = vadd.f32 %v3757, %v3792
        %v4034 = vadd.f32 %v3758, %v3792
        %v4035 = vadd.f32 %v3759, %v3792
        %v4036 = vadd.f32 %v3760, %v3792
        %v4037 = vadd.f32 %v3761, %v3792
        %v4038 = vadd.f32 %v3762, %v3792
        %v4039 = vadd.f32 %v3763, %v3792
        %v4040 = vadd.f32 %v3764, %v3792
        %v4041 = vadd.f32 %v3765, %v3792
        %v4042 = vadd.f32 %v3766, %v3792
        %v4043 = vadd.f32 %v3767, %v3792
        %v4044 = vadd.f32 %v3768, %v3792
        %v4045 = vadd.f32 %v3769, %v3792
        %v4046 = vadd.f32 %v3770, %v3792
        %v4047 = vadd.f32 %v3771, %v3792
        %v4048 = vadd.f32 %v3772, %v3792
        %v4049 = vadd.f32 %v3773, %v3792
        %v4050 = vtanh.pop %v3794
        %v4051 = vtanh.pop %v3795
        %v4052 = vtanh.pop %v3796
        %v4053 = vtanh.pop %v3797
        %v4054 = vtanh.pop %v3798
        %v4055 = vtanh.pop %v3799
        %v4056 = vtanh.pop %v3800
        %v4057 = vtanh.pop %v3801
        %v4058 = vtanh.pop %v3802
        %v4059 = vtanh.pop %v3803
        %v4060 = vtanh.pop %v3804
        %v4061 = vtanh.pop %v3805
        %v4062 = vtanh.pop %v3806
        %v4063 = vtanh.pop %v3807
        %v4064 = vtanh.pop %v3808
        %v4065 = vtanh.pop %v3809
        %v4066 = vtanh.pop %v3810
        %v4067 = vtanh.pop %v3811
        %v4068 = vtanh.pop %v3812
        %v4069 = vtanh.pop %v3813
        %v4070 = vtanh.pop %v3814
        %v4071 = vtanh.pop %v3815
        %v4072 = vtanh.pop %v3816
        %v4073 = vtanh.pop %v3817
        %v4074 = vtanh.pop %v3818
        %v4075 = vtanh.pop %v3819
        %v4076 = vtanh.pop %v3820
        %v4077 = vtanh.pop %v3821
        %v4078 = vtanh.pop %v3822
        %v4079 = vtanh.pop %v3823
        %v4080 = vtanh.pop %v3824
        %v4081 = vtanh.pop %v3825
        %v4082 = vtanh.pop %v3826
        %v4083 = vtanh.pop %v3827
        %v4084 = vtanh.pop %v3828
        %v4085 = vtanh.pop %v3829
        %v4086 = vtanh.pop %v3830
        %v4087 = vtanh.pop %v3831
        %v4088 = vtanh.pop %v3832
        %v4089 = vtanh.pop %v3833
        %v4090 = vtanh.pop %v3834
        %v4091 = vtanh.pop %v3835
        %v4092 = vtanh.pop %v3836
        %v4093 = vtanh.pop %v3837
        %v4094 = vtanh.pop %v3838
        %v4095 = vtanh.pop %v3839
        %v4096 = vtanh.pop %v3840
        %v4097 = vtanh.pop %v3841
        %v4098 = vtanh.pop %v3842
        %v4099 = vtanh.pop %v3843
        %v4100 = vtanh.pop %v3844
        %v4101 = vtanh.pop %v3845
        %v4102 = vtanh.pop %v3846
        %v4103 = vtanh.pop %v3847
        %v4104 = vtanh.pop %v3848
        %v4105 = vtanh.pop %v3849
        %v4106 = vtanh.pop %v3850
        %v4107 = vtanh.pop %v3851
        %v4108 = vtanh.pop %v3852
        %v4109 = vtanh.pop %v3853
        %v4110 = vtanh.pop %v3854
        %v4111 = vtanh.pop %v3855
        %v4112 = vtanh.pop %v3856
        %v4113 = vtanh.pop %v3857
        %v4114 = vtanh.pop %v3858
        %v4115 = vtanh.pop %v3859
        %v4116 = vtanh.pop %v3860
        %v4117 = vtanh.pop %v3861
        %v4118 = vtanh.pop %v3862
        %v4119 = vtanh.pop %v3863
        %v4120 = vtanh.pop %v3864
        %v4121 = vtanh.pop %v3865
        %v4122 = vtanh.pop %v3866
        %v4123 = vtanh.pop %v3867
        %v4124 = vtanh.pop %v3868
        %v4125 = vtanh.pop %v3869
        %v4126 = vtanh.pop %v3870
        %v4127 = vtanh.pop %v3871
        %v4128 = vtanh.pop %v3872
        %v4129 = vtanh.pop %v3873
        %v4130 = vtanh.pop %v3874
        %v4131 = vtanh.pop %v3875
        %v4132 = vtanh.pop %v3876
        %v4133 = vtanh.pop %v3877
        %v4134 = vtanh.pop %v3878
        %v4135 = vtanh.pop %v3879
        %v4136 = vtanh.pop %v3880
        %v4137 = vtanh.pop %v3881
        %v4138 = vtanh.pop %v3882
        %v4139 = vtanh.pop %v3883
        %v4140 = vtanh.pop %v3884
        %v4141 = vtanh.pop %v3885
        %v4142 = vtanh.pop %v3886
        %v4143 = vtanh.pop %v3887
        %v4144 = vtanh.pop %v3888
        %v4145 = vtanh.pop %v3889
        %v4146 = vtanh.pop %v3890
        %v4147 = vtanh.pop %v3891
        %v4148 = vtanh.pop %v3892
        %v4149 = vtanh.pop %v3893
        %v4150 = vtanh.pop %v3894
        %v4151 = vtanh.pop %v3895
        %v4152 = vtanh.pop %v3896
        %v4153 = vtanh.pop %v3897
        %v4154 = vtanh.pop %v3898
        %v4155 = vtanh.pop %v3899
        %v4156 = vtanh.pop %v3900
        %v4157 = vtanh.pop %v3901
        %v4158 = vtanh.pop %v3902
        %v4159 = vtanh.pop %v3903
        %v4160 = vtanh.pop %v3904
        %v4161 = vtanh.pop %v3905
        %v4162 = vtanh.pop %v3906
        %v4163 = vtanh.pop %v3907
        %v4164 = vtanh.pop %v3908
        %v4165 = vtanh.pop %v3909
        %v4166 = vtanh.pop %v3910
        %v4167 = vtanh.pop %v3911
        %v4168 = vtanh.pop %v3912
        %v4169 = vtanh.pop %v3913
        %v4170 = vtanh.pop %v3914
        %v4171 = vtanh.pop %v3915
        %v4172 = vtanh.pop %v3916
        %v4173 = vtanh.pop %v3917
        %v4174 = vtanh.pop %v3918
        %v4175 = vtanh.pop %v3919
        %v4176 = vtanh.pop %v3920
        %v4177 = vtanh.pop %v3921
        %v4178 = vtanh.pop %v3922
        %v4179 = vtanh.pop %v3923
        %v4180 = vtanh.pop %v3924
        %v4181 = vtanh.pop %v3925
        %v4182 = vtanh.pop %v3926
        %v4183 = vtanh.pop %v3927
        %v4184 = vtanh.pop %v3928
        %v4185 = vtanh.pop %v3929
        %v4186 = vtanh.pop %v3930
        %v4187 = vtanh.pop %v3931
        %v4188 = vtanh.pop %v3932
        %v4189 = vtanh.pop %v3933
        %v4190 = vtanh.pop %v3934
        %v4191 = vtanh.pop %v3935
        %v4192 = vtanh.pop %v3936
        %v4193 = vtanh.pop %v3937
        %v4194 = vtanh.pop %v3938
        %v4195 = vtanh.pop %v3939
        %v4196 = vtanh.pop %v3940
        %v4197 = vtanh.pop %v3941
        %v4198 = vtanh.pop %v3942
        %v4199 = vtanh.pop %v3943
        %v4200 = vtanh.pop %v3944
        %v4201 = vtanh.pop %v3945
        %v4202 = vtanh.pop %v3946
        %v4203 = vtanh.pop %v3947
        %v4204 = vtanh.pop %v3948
        %v4205 = vtanh.pop %v3949
        %v4206 = vtanh.pop %v3950
        %v4207 = vtanh.pop %v3951
        %v4208 = vtanh.pop %v3952
        %v4209 = vtanh.pop %v3953
        %v4210 = vtanh.pop %v3954
        %v4211 = vtanh.pop %v3955
        %v4212 = vtanh.pop %v3956
        %v4213 = vtanh.pop %v3957
        %v4214 = vtanh.pop %v3958
        %v4215 = vtanh.pop %v3959
        %v4216 = vtanh.pop %v3960
        %v4217 = vtanh.pop %v3961
        %v4218 = vtanh.pop %v3962
        %v4219 = vtanh.pop %v3963
        %v4220 = vtanh.pop %v3964
        %v4221 = vtanh.pop %v3965
        %v4222 = vtanh.pop %v3966
        %v4223 = vtanh.pop %v3967
        %v4224 = vtanh.pop %v3968
        %v4225 = vtanh.pop %v3969
        %v4226 = vtanh.pop %v3970
        %v4227 = vtanh.pop %v3971
        %v4228 = vtanh.pop %v3972
        %v4229 = vtanh.pop %v3973
        %v4230 = vtanh.pop %v3974
        %v4231 = vtanh.pop %v3975
        %v4232 = vtanh.pop %v3976
        %v4233 = vtanh.pop %v3977
        %v4234 = vtanh.pop %v3978
        %v4235 = vtanh.pop %v3979
        %v4236 = vtanh.pop %v3980
        %v4237 = vtanh.pop %v3981
        %v4238 = vtanh.pop %v3982
        %v4239 = vtanh.pop %v3983
        %v4240 = vtanh.pop %v3984
        %v4241 = vtanh.pop %v3985
        %v4242 = vtanh.pop %v3986
        %v4243 = vtanh.pop %v3987
        %v4244 = vtanh.pop %v3988
        %v4245 = vtanh.pop %v3989
        %v4246 = vtanh.pop %v3990
        %v4247 = vtanh.pop %v3991
        %v4248 = vtanh.pop %v3992
        %v4249 = vtanh.pop %v3993
        %v4250 = vtanh.pop %v3994
        %v4251 = vtanh.pop %v3995
        %v4252 = vtanh.pop %v3996
        %v4253 = vtanh.pop %v3997
        %v4254 = vtanh.pop %v3998
        %v4255 = vtanh.pop %v3999
        %v4256 = vtanh.pop %v4000
        %v4257 = vtanh.pop %v4001
        %v4258 = vtanh.pop %v4002
        %v4259 = vtanh.pop %v4003
        %v4260 = vtanh.pop %v4004
        %v4261 = vtanh.pop %v4005
        %v4262 = vtanh.pop %v4006
        %v4263 = vtanh.pop %v4007
        %v4264 = vtanh.pop %v4008
        %v4265 = vtanh.pop %v4009
        %v4266 = vtanh.pop %v4010
        %v4267 = vtanh.pop %v4011
        %v4268 = vtanh.pop %v4012
        %v4269 = vtanh.pop %v4013
        %v4270 = vtanh.pop %v4014
        %v4271 = vtanh.pop %v4015
        %v4272 = vtanh.pop %v4016
        %v4273 = vtanh.pop %v4017
        %v4274 = vtanh.pop %v4018
        %v4275 = vtanh.pop %v4019
        %v4276 = vtanh.pop %v4020
        %v4277 = vtanh.pop %v4021
        %v4278 = vtanh.pop %v4022
        %v4279 = vtanh.pop %v4023
        %v4280 = vtanh.pop %v4024
        %v4281 = vtanh.pop %v4025
        %v4282 = vtanh.pop %v4026
        %v4283 = vtanh.pop %v4027
        %v4284 = vtanh.pop %v4028
        %v4285 = vtanh.pop %v4029
        %v4286 = vtanh.pop %v4030
        %v4287 = vtanh.pop %v4031
        %v4288 = vtanh.pop %v4032
        %v4289 = vtanh.pop %v4033
        %v4290 = vtanh.pop %v4034
        %v4291 = vtanh.pop %v4035
        %v4292 = vtanh.pop %v4036
        %v4293 = vtanh.pop %v4037
        %v4294 = vtanh.pop %v4038
        %v4295 = vtanh.pop %v4039
        %v4296 = vtanh.pop %v4040
        %v4297 = vtanh.pop %v4041
        %v4298 = vtanh.pop %v4042
        %v4299 = vtanh.pop %v4043
        %v4300 = vtanh.pop %v4044
        %v4301 = vtanh.pop %v4045
        %v4302 = vtanh.pop %v4046
        %v4303 = vtanh.pop %v4047
        %v4304 = vtanh.pop %v4048
        %v4305 = vtanh.pop %v4049
        %4306 = vst [vmem:[%s278] sm:$0xff] %v4050
        %4307 = vst [vmem:[%s278 + $0x8] sm:$0xff] %v4051
        %4308 = vst [vmem:[%s278 + $0x10] sm:$0xff] %v4052
        %4309 = vst [vmem:[%s278 + $0x18] sm:$0xff] %v4053
        %4310 = vst [vmem:[%s278 + $0x20] sm:$0xff] %v4054
        %4311 = vst [vmem:[%s278 + $0x28] sm:$0xff] %v4055
        %4312 = vst [vmem:[%s278 + $0x30] sm:$0xff] %v4056
        %4313 = vst [vmem:[%s278 + $0x38] sm:$0xff] %v4057
        %4314 = vst [vmem:[%s278 + $0x40] sm:$0xff] %v4058
        %4315 = vst [vmem:[%s278 + $0x48] sm:$0xff] %v4059
        %4316 = vst [vmem:[%s278 + $0x50] sm:$0xff] %v4060
        %4317 = vst [vmem:[%s278 + $0x58] sm:$0xff] %v4061
        %4318 = vst [vmem:[%s278 + $0x60] sm:$0xff] %v4062
        %4319 = vst [vmem:[%s278 + $0x68] sm:$0xff] %v4063
        %4320 = vst [vmem:[%s278 + $0x70] sm:$0xff] %v4064
        %4321 = vst [vmem:[%s278 + $0x78] sm:$0xff] %v4065
        %4322 = vst [vmem:[%s278 + $0x80] sm:$0xff] %v4066
        %4323 = vst [vmem:[%s278 + $0x88] sm:$0xff] %v4067
        %4324 = vst [vmem:[%s278 + $0x90] sm:$0xff] %v4068
        %4325 = vst [vmem:[%s278 + $0x98] sm:$0xff] %v4069
        %4326 = vst [vmem:[%s278 + $0xa0] sm:$0xff] %v4070
        %4327 = vst [vmem:[%s278 + $0xa8] sm:$0xff] %v4071
        %4328 = vst [vmem:[%s278 + $0xb0] sm:$0xff] %v4072
        %4329 = vst [vmem:[%s278 + $0xb8] sm:$0xff] %v4073
        %4330 = vst [vmem:[%s278 + $0xc0] sm:$0xff] %v4074
        %4331 = vst [vmem:[%s278 + $0xc8] sm:$0xff] %v4075
        %4332 = vst [vmem:[%s278 + $0xd0] sm:$0xff] %v4076
        %4333 = vst [vmem:[%s278 + $0xd8] sm:$0xff] %v4077
        %4334 = vst [vmem:[%s278 + $0xe0] sm:$0xff] %v4078
        %4335 = vst [vmem:[%s278 + $0xe8] sm:$0xff] %v4079
        %4336 = vst [vmem:[%s278 + $0xf0] sm:$0xff] %v4080
        %4337 = vst [vmem:[%s278 + $0xf8] sm:$0xff] %v4081
        %4338 = vst [vmem:[%s278 + $0x100] sm:$0xff] %v4082
        %4339 = vst [vmem:[%s278 + $0x108] sm:$0xff] %v4083
        %4340 = vst [vmem:[%s278 + $0x110] sm:$0xff] %v4084
        %4341 = vst [vmem:[%s278 + $0x118] sm:$0xff] %v4085
        %4342 = vst [vmem:[%s278 + $0x120] sm:$0xff] %v4086
        %4343 = vst [vmem:[%s278 + $0x128] sm:$0xff] %v4087
        %4344 = vst [vmem:[%s278 + $0x130] sm:$0xff] %v4088
        %4345 = vst [vmem:[%s278 + $0x138] sm:$0xff] %v4089
        %4346 = vst [vmem:[%s278 + $0x140] sm:$0xff] %v4090
        %4347 = vst [vmem:[%s278 + $0x148] sm:$0xff] %v4091
        %4348 = vst [vmem:[%s278 + $0x150] sm:$0xff] %v4092
        %4349 = vst [vmem:[%s278 + $0x158] sm:$0xff] %v4093
        %4350 = vst [vmem:[%s278 + $0x160] sm:$0xff] %v4094
        %4351 = vst [vmem:[%s278 + $0x168] sm:$0xff] %v4095
        %4352 = vst [vmem:[%s278 + $0x170] sm:$0xff] %v4096
        %4353 = vst [vmem:[%s278 + $0x178] sm:$0xff] %v4097
        %4354 = vst [vmem:[%s278 + $0x180] sm:$0xff] %v4098
        %4355 = vst [vmem:[%s278 + $0x188] sm:$0xff] %v4099
        %4356 = vst [vmem:[%s278 + $0x190] sm:$0xff] %v4100
        %4357 = vst [vmem:[%s278 + $0x198] sm:$0xff] %v4101
        %4358 = vst [vmem:[%s278 + $0x1a0] sm:$0xff] %v4102
        %4359 = vst [vmem:[%s278 + $0x1a8] sm:$0xff] %v4103
        %4360 = vst [vmem:[%s278 + $0x1b0] sm:$0xff] %v4104
        %4361 = vst [vmem:[%s278 + $0x1b8] sm:$0xff] %v4105
        %4362 = vst [vmem:[%s278 + $0x1c0] sm:$0xff] %v4106
        %4363 = vst [vmem:[%s278 + $0x1c8] sm:$0xff] %v4107
        %4364 = vst [vmem:[%s278 + $0x1d0] sm:$0xff] %v4108
        %4365 = vst [vmem:[%s278 + $0x1d8] sm:$0xff] %v4109
        %4366 = vst [vmem:[%s278 + $0x1e0] sm:$0xff] %v4110
        %4367 = vst [vmem:[%s278 + $0x1e8] sm:$0xff] %v4111
        %4368 = vst [vmem:[%s278 + $0x1f0] sm:$0xff] %v4112
        %4369 = vst [vmem:[%s278 + $0x1f8] sm:$0xff] %v4113
        %4370 = vst [vmem:[%s278 + $0x200] sm:$0xff] %v4114
        %4371 = vst [vmem:[%s278 + $0x208] sm:$0xff] %v4115
        %4372 = vst [vmem:[%s278 + $0x210] sm:$0xff] %v4116
        %4373 = vst [vmem:[%s278 + $0x218] sm:$0xff] %v4117
        %4374 = vst [vmem:[%s278 + $0x220] sm:$0xff] %v4118
        %4375 = vst [vmem:[%s278 + $0x228] sm:$0xff] %v4119
        %4376 = vst [vmem:[%s278 + $0x230] sm:$0xff] %v4120
        %4377 = vst [vmem:[%s278 + $0x238] sm:$0xff] %v4121
        %4378 = vst [vmem:[%s278 + $0x240] sm:$0xff] %v4122
        %4379 = vst [vmem:[%s278 + $0x248] sm:$0xff] %v4123
        %4380 = vst [vmem:[%s278 + $0x250] sm:$0xff] %v4124
        %4381 = vst [vmem:[%s278 + $0x258] sm:$0xff] %v4125
        %4382 = vst [vmem:[%s278 + $0x260] sm:$0xff] %v4126
        %4383 = vst [vmem:[%s278 + $0x268] sm:$0xff] %v4127
        %4384 = vst [vmem:[%s278 + $0x270] sm:$0xff] %v4128
        %4385 = vst [vmem:[%s278 + $0x278] sm:$0xff] %v4129
        %4386 = vst [vmem:[%s278 + $0x280] sm:$0xff] %v4130
        %4387 = vst [vmem:[%s278 + $0x288] sm:$0xff] %v4131
        %4388 = vst [vmem:[%s278 + $0x290] sm:$0xff] %v4132
        %4389 = vst [vmem:[%s278 + $0x298] sm:$0xff] %v4133
        %4390 = vst [vmem:[%s278 + $0x2a0] sm:$0xff] %v4134
        %4391 = vst [vmem:[%s278 + $0x2a8] sm:$0xff] %v4135
        %4392 = vst [vmem:[%s278 + $0x2b0] sm:$0xff] %v4136
        %4393 = vst [vmem:[%s278 + $0x2b8] sm:$0xff] %v4137
        %4394 = vst [vmem:[%s278 + $0x2c0] sm:$0xff] %v4138
        %4395 = vst [vmem:[%s278 + $0x2c8] sm:$0xff] %v4139
        %4396 = vst [vmem:[%s278 + $0x2d0] sm:$0xff] %v4140
        %4397 = vst [vmem:[%s278 + $0x2d8] sm:$0xff] %v4141
        %4398 = vst [vmem:[%s278 + $0x2e0] sm:$0xff] %v4142
        %4399 = vst [vmem:[%s278 + $0x2e8] sm:$0xff] %v4143
        %4400 = vst [vmem:[%s278 + $0x2f0] sm:$0xff] %v4144
        %4401 = vst [vmem:[%s278 + $0x2f8] sm:$0xff] %v4145
        %4402 = vst [vmem:[%s278 + $0x300] sm:$0xff] %v4146
        %4403 = vst [vmem:[%s278 + $0x308] sm:$0xff] %v4147
        %4404 = vst [vmem:[%s278 + $0x310] sm:$0xff] %v4148
        %4405 = vst [vmem:[%s278 + $0x318] sm:$0xff] %v4149
        %4406 = vst [vmem:[%s278 + $0x320] sm:$0xff] %v4150
        %4407 = vst [vmem:[%s278 + $0x328] sm:$0xff] %v4151
        %4408 = vst [vmem:[%s278 + $0x330] sm:$0xff] %v4152
        %4409 = vst [vmem:[%s278 + $0x338] sm:$0xff] %v4153
        %4410 = vst [vmem:[%s278 + $0x340] sm:$0xff] %v4154
        %4411 = vst [vmem:[%s278 + $0x348] sm:$0xff] %v4155
        %4412 = vst [vmem:[%s278 + $0x350] sm:$0xff] %v4156
        %4413 = vst [vmem:[%s278 + $0x358] sm:$0xff] %v4157
        %4414 = vst [vmem:[%s278 + $0x360] sm:$0xff] %v4158
        %4415 = vst [vmem:[%s278 + $0x368] sm:$0xff] %v4159
        %4416 = vst [vmem:[%s278 + $0x370] sm:$0xff] %v4160
        %4417 = vst [vmem:[%s278 + $0x378] sm:$0xff] %v4161
        %4418 = vst [vmem:[%s278 + $0x380] sm:$0xff] %v4162
        %4419 = vst [vmem:[%s278 + $0x388] sm:$0xff] %v4163
        %4420 = vst [vmem:[%s278 + $0x390] sm:$0xff] %v4164
        %4421 = vst [vmem:[%s278 + $0x398] sm:$0xff] %v4165
        %4422 = vst [vmem:[%s278 + $0x3a0] sm:$0xff] %v4166
        %4423 = vst [vmem:[%s278 + $0x3a8] sm:$0xff] %v4167
        %4424 = vst [vmem:[%s278 + $0x3b0] sm:$0xff] %v4168
        %4425 = vst [vmem:[%s278 + $0x3b8] sm:$0xff] %v4169
        %4426 = vst [vmem:[%s278 + $0x3c0] sm:$0xff] %v4170
        %4427 = vst [vmem:[%s278 + $0x3c8] sm:$0xff] %v4171
        %4428 = vst [vmem:[%s278 + $0x3d0] sm:$0xff] %v4172
        %4429 = vst [vmem:[%s278 + $0x3d8] sm:$0xff] %v4173
        %4430 = vst [vmem:[%s278 + $0x3e0] sm:$0xff] %v4174
        %4431 = vst [vmem:[%s278 + $0x3e8] sm:$0xff] %v4175
        %4432 = vst [vmem:[%s278 + $0x3f0] sm:$0xff] %v4176
        %4433 = vst [vmem:[%s278 + $0x3f8] sm:$0xff] %v4177
        %4434 = vst [vmem:[%s278 + $0x400] sm:$0xff] %v4178
        %4435 = vst [vmem:[%s278 + $0x408] sm:$0xff] %v4179
        %4436 = vst [vmem:[%s278 + $0x410] sm:$0xff] %v4180
        %4437 = vst [vmem:[%s278 + $0x418] sm:$0xff] %v4181
        %4438 = vst [vmem:[%s278 + $0x420] sm:$0xff] %v4182
        %4439 = vst [vmem:[%s278 + $0x428] sm:$0xff] %v4183
        %4440 = vst [vmem:[%s278 + $0x430] sm:$0xff] %v4184
        %4441 = vst [vmem:[%s278 + $0x438] sm:$0xff] %v4185
        %4442 = vst [vmem:[%s278 + $0x440] sm:$0xff] %v4186
        %4443 = vst [vmem:[%s278 + $0x448] sm:$0xff] %v4187
        %4444 = vst [vmem:[%s278 + $0x450] sm:$0xff] %v4188
        %4445 = vst [vmem:[%s278 + $0x458] sm:$0xff] %v4189
        %4446 = vst [vmem:[%s278 + $0x460] sm:$0xff] %v4190
        %4447 = vst [vmem:[%s278 + $0x468] sm:$0xff] %v4191
        %4448 = vst [vmem:[%s278 + $0x470] sm:$0xff] %v4192
        %4449 = vst [vmem:[%s278 + $0x478] sm:$0xff] %v4193
        %4450 = vst [vmem:[%s278 + $0x480] sm:$0xff] %v4194
        %4451 = vst [vmem:[%s278 + $0x488] sm:$0xff] %v4195
        %4452 = vst [vmem:[%s278 + $0x490] sm:$0xff] %v4196
        %4453 = vst [vmem:[%s278 + $0x498] sm:$0xff] %v4197
        %4454 = vst [vmem:[%s278 + $0x4a0] sm:$0xff] %v4198
        %4455 = vst [vmem:[%s278 + $0x4a8] sm:$0xff] %v4199
        %4456 = vst [vmem:[%s278 + $0x4b0] sm:$0xff] %v4200
        %4457 = vst [vmem:[%s278 + $0x4b8] sm:$0xff] %v4201
        %4458 = vst [vmem:[%s278 + $0x4c0] sm:$0xff] %v4202
        %4459 = vst [vmem:[%s278 + $0x4c8] sm:$0xff] %v4203
        %4460 = vst [vmem:[%s278 + $0x4d0] sm:$0xff] %v4204
        %4461 = vst [vmem:[%s278 + $0x4d8] sm:$0xff] %v4205
        %4462 = vst [vmem:[%s278 + $0x4e0] sm:$0xff] %v4206
        %4463 = vst [vmem:[%s278 + $0x4e8] sm:$0xff] %v4207
        %4464 = vst [vmem:[%s278 + $0x4f0] sm:$0xff] %v4208
        %4465 = vst [vmem:[%s278 + $0x4f8] sm:$0xff] %v4209
        %4466 = vst [vmem:[%s278 + $0x500] sm:$0xff] %v4210
        %4467 = vst [vmem:[%s278 + $0x508] sm:$0xff] %v4211
        %4468 = vst [vmem:[%s278 + $0x510] sm:$0xff] %v4212
        %4469 = vst [vmem:[%s278 + $0x518] sm:$0xff] %v4213
        %4470 = vst [vmem:[%s278 + $0x520] sm:$0xff] %v4214
        %4471 = vst [vmem:[%s278 + $0x528] sm:$0xff] %v4215
        %4472 = vst [vmem:[%s278 + $0x530] sm:$0xff] %v4216
        %4473 = vst [vmem:[%s278 + $0x538] sm:$0xff] %v4217
        %4474 = vst [vmem:[%s278 + $0x540] sm:$0xff] %v4218
        %4475 = vst [vmem:[%s278 + $0x548] sm:$0xff] %v4219
        %4476 = vst [vmem:[%s278 + $0x550] sm:$0xff] %v4220
        %4477 = vst [vmem:[%s278 + $0x558] sm:$0xff] %v4221
        %4478 = vst [vmem:[%s278 + $0x560] sm:$0xff] %v4222
        %4479 = vst [vmem:[%s278 + $0x568] sm:$0xff] %v4223
        %4480 = vst [vmem:[%s278 + $0x570] sm:$0xff] %v4224
        %4481 = vst [vmem:[%s278 + $0x578] sm:$0xff] %v4225
        %4482 = vst [vmem:[%s278 + $0x580] sm:$0xff] %v4226
        %4483 = vst [vmem:[%s278 + $0x588] sm:$0xff] %v4227
        %4484 = vst [vmem:[%s278 + $0x590] sm:$0xff] %v4228
        %4485 = vst [vmem:[%s278 + $0x598] sm:$0xff] %v4229
        %4486 = vst [vmem:[%s278 + $0x5a0] sm:$0xff] %v4230
        %4487 = vst [vmem:[%s278 + $0x5a8] sm:$0xff] %v4231
        %4488 = vst [vmem:[%s278 + $0x5b0] sm:$0xff] %v4232
        %4489 = vst [vmem:[%s278 + $0x5b8] sm:$0xff] %v4233
        %4490 = vst [vmem:[%s278 + $0x5c0] sm:$0xff] %v4234
        %4491 = vst [vmem:[%s278 + $0x5c8] sm:$0xff] %v4235
        %4492 = vst [vmem:[%s278 + $0x5d0] sm:$0xff] %v4236
        %4493 = vst [vmem:[%s278 + $0x5d8] sm:$0xff] %v4237
        %4494 = vst [vmem:[%s278 + $0x5e0] sm:$0xff] %v4238
        %4495 = vst [vmem:[%s278 + $0x5e8] sm:$0xff] %v4239
        %4496 = vst [vmem:[%s278 + $0x5f0] sm:$0xff] %v4240
        %4497 = vst [vmem:[%s278 + $0x5f8] sm:$0xff] %v4241
        %4498 = vst [vmem:[%s278 + $0x600] sm:$0xff] %v4242
        %4499 = vst [vmem:[%s278 + $0x608] sm:$0xff] %v4243
        %4500 = vst [vmem:[%s278 + $0x610] sm:$0xff] %v4244
        %4501 = vst [vmem:[%s278 + $0x618] sm:$0xff] %v4245
        %4502 = vst [vmem:[%s278 + $0x620] sm:$0xff] %v4246
        %4503 = vst [vmem:[%s278 + $0x628] sm:$0xff] %v4247
        %4504 = vst [vmem:[%s278 + $0x630] sm:$0xff] %v4248
        %4505 = vst [vmem:[%s278 + $0x638] sm:$0xff] %v4249
        %4506 = vst [vmem:[%s278 + $0x640] sm:$0xff] %v4250
        %4507 = vst [vmem:[%s278 + $0x648] sm:$0xff] %v4251
        %4508 = vst [vmem:[%s278 + $0x650] sm:$0xff] %v4252
        %4509 = vst [vmem:[%s278 + $0x658] sm:$0xff] %v4253
        %4510 = vst [vmem:[%s278 + $0x660] sm:$0xff] %v4254
        %4511 = vst [vmem:[%s278 + $0x668] sm:$0xff] %v4255
        %4512 = vst [vmem:[%s278 + $0x670] sm:$0xff] %v4256
        %4513 = vst [vmem:[%s278 + $0x678] sm:$0xff] %v4257
        %4514 = vst [vmem:[%s278 + $0x680] sm:$0xff] %v4258
        %4515 = vst [vmem:[%s278 + $0x688] sm:$0xff] %v4259
        %4516 = vst [vmem:[%s278 + $0x690] sm:$0xff] %v4260
        %4517 = vst [vmem:[%s278 + $0x698] sm:$0xff] %v4261
        %4518 = vst [vmem:[%s278 + $0x6a0] sm:$0xff] %v4262
        %4519 = vst [vmem:[%s278 + $0x6a8] sm:$0xff] %v4263
        %4520 = vst [vmem:[%s278 + $0x6b0] sm:$0xff] %v4264
        %4521 = vst [vmem:[%s278 + $0x6b8] sm:$0xff] %v4265
        %4522 = vst [vmem:[%s278 + $0x6c0] sm:$0xff] %v4266
        %4523 = vst [vmem:[%s278 + $0x6c8] sm:$0xff] %v4267
        %4524 = vst [vmem:[%s278 + $0x6d0] sm:$0xff] %v4268
        %4525 = vst [vmem:[%s278 + $0x6d8] sm:$0xff] %v4269
        %4526 = vst [vmem:[%s278 + $0x6e0] sm:$0xff] %v4270
        %4527 = vst [vmem:[%s278 + $0x6e8] sm:$0xff] %v4271
        %4528 = vst [vmem:[%s278 + $0x6f0] sm:$0xff] %v4272
        %4529 = vst [vmem:[%s278 + $0x6f8] sm:$0xff] %v4273
        %4530 = vst [vmem:[%s278 + $0x700] sm:$0xff] %v4274
        %4531 = vst [vmem:[%s278 + $0x708] sm:$0xff] %v4275
        %4532 = vst [vmem:[%s278 + $0x710] sm:$0xff] %v4276
        %4533 = vst [vmem:[%s278 + $0x718] sm:$0xff] %v4277
        %4534 = vst [vmem:[%s278 + $0x720] sm:$0xff] %v4278
        %4535 = vst [vmem:[%s278 + $0x728] sm:$0xff] %v4279
        %4536 = vst [vmem:[%s278 + $0x730] sm:$0xff] %v4280
        %4537 = vst [vmem:[%s278 + $0x738] sm:$0xff] %v4281
        %4538 = vst [vmem:[%s278 + $0x740] sm:$0xff] %v4282
        %4539 = vst [vmem:[%s278 + $0x748] sm:$0xff] %v4283
        %4540 = vst [vmem:[%s278 + $0x750] sm:$0xff] %v4284
        %4541 = vst [vmem:[%s278 + $0x758] sm:$0xff] %v4285
        %4542 = vst [vmem:[%s278 + $0x760] sm:$0xff] %v4286
        %4543 = vst [vmem:[%s278 + $0x768] sm:$0xff] %v4287
        %4544 = vst [vmem:[%s278 + $0x770] sm:$0xff] %v4288
        %4545 = vst [vmem:[%s278 + $0x778] sm:$0xff] %v4289
        %4546 = vst [vmem:[%s278 + $0x780] sm:$0xff] %v4290
        %4547 = vst [vmem:[%s278 + $0x788] sm:$0xff] %v4291
        %4548 = vst [vmem:[%s278 + $0x790] sm:$0xff] %v4292
        %4549 = vst [vmem:[%s278 + $0x798] sm:$0xff] %v4293
        %4550 = vst [vmem:[%s278 + $0x7a0] sm:$0xff] %v4294
        %4551 = vst [vmem:[%s278 + $0x7a8] sm:$0xff] %v4295
        %4552 = vst [vmem:[%s278 + $0x7b0] sm:$0xff] %v4296
        %4553 = vst [vmem:[%s278 + $0x7b8] sm:$0xff] %v4297
        %4554 = vst [vmem:[%s278 + $0x7c0] sm:$0xff] %v4298
        %4555 = vst [vmem:[%s278 + $0x7c8] sm:$0xff] %v4299
        %4556 = vst [vmem:[%s278 + $0x7d0] sm:$0xff] %v4300
        %4557 = vst [vmem:[%s278 + $0x7d8] sm:$0xff] %v4301
        %4558 = vst [vmem:[%s278 + $0x7e0] sm:$0xff] %v4302
        %4559 = vst [vmem:[%s278 + $0x7e8] sm:$0xff] %v4303
        %4560 = vst [vmem:[%s278 + $0x7f0] sm:$0xff] %v4304
        %4561 = vst [vmem:[%s278 + $0x7f8] sm:$0xff] %v4305
        %s4562 = sand.u32 %s79, 1
        %s4563 = scalar_lea.sflag [#allocation4], %s4562
        %s4564 = sand.u32 %s79, 1
        %s4565 = smul.addr %s4564, 2048
        %s4566 = scalar_lea.vmem [#allocation6], %s4565
        // Predicated region
        $region71: #{tpu_custom_call.1} parent=61 // pred_check
          %p4567 = pneg %p89
        $region72: #{tpu_custom_call.1} parent=61 // pred_check_branch
          %4569 = sbr.rel (%p4567) target = $region74
        $region73: #{tpu_custom_call.1} parent=61 // pred_region
          %s4570 = smul.u32 4, %s19
          %s4572 = ssub.s32 32768, 32768
          %4573 = vsyncadd %s4563, %s4572
          %s4574 = smul.addr %s4570, 64
          %s4575 = smul.addr %s4574, 128
          %s4576 = scalar_lea.hbm %s2, %s4575
          %s4577 = sshll.u32 %s4566, 4
          %s4578 = int_to_ptr.vmem [resolvable:$true] %s4577
          %4583 = dma.vmem_to_hbm [thread:$0]  %s4578, 32768, %s4576, %s4563, 8192, 8192, 512
        $region74: #{tpu_custom_call.1} parent=61 // pred_fallthru
          _
      $region62: #{tpu_custom_call.1} parent=5 // pred_fallthru
        _
      %p4584 = scmp.le.s32.totalorder 2, %s14
      // Predicated region
      $region75: #{tpu_custom_call.1} parent=5 // pred_check
        %p4585 = pneg %p4584
      $region76: #{tpu_custom_call.1} parent=5 // pred_check_branch
        %4587 = sbr.rel (%p4585) target = $region78
      $region77: #{tpu_custom_call.1} parent=5 // pred_region
        %s4588 = ssub.s32 %s14, 2
        // Predicated region
        $region79: #{tpu_custom_call.1} parent=77 // pred_check
          %p4589 = pneg %p95
        $region80: #{tpu_custom_call.1} parent=77 // pred_check_branch
          %4591 = sbr.rel (%p4589) target = $region82
        $region81: #{tpu_custom_call.1} parent=77 // pred_region
          %s4592 = sand.u32 %s80, 1
          %s4593 = scalar_lea.sflag [#allocation4], %s4592
          %s4594 = sand.u32 %s80, 1
          %s4595 = smul.addr %s4594, 2048
          %s4596 = scalar_lea.vmem [#allocation6], %s4595
          %4597 = dma.done %s4593, 32768
        $region82: #{tpu_custom_call.1} parent=77 // pred_fallthru
          _
      $region78: #{tpu_custom_call.1} parent=5 // pred_fallthru
        _
    $region6: #{tpu_custom_call.1} parent=1 // loop_footer
      %s18 = sadd.s32 1, %s14
    $region7: #{tpu_custom_call.1} parent=1 // loop_footer_branch
      %13 = sbr.rel target = $region3
    $region8: #{tpu_custom_call.1} parent=1 // loop_exit
      _
    %4598 = vsyncpa [#allocation3], 1
    %s4599 = scalar_lea.sflag [#allocation3], 1
    %4600 = vsyncpa %s4599, 1
    %4601 = vsyncpa [#allocation4], 1
    %s4602 = scalar_lea.sflag [#allocation4], 1
    %4603 = vsyncpa %s4602, 1

</llo_original>
